<compile_context>
chip_gen: v7x
topology: tpu7x:2x2x1
jax: 0.10.0
libtpu: 0.0.40
codegen_flags: <defaults>
</compile_context>

<pallas_src>
import functools

import jax
import jax.numpy as jnp
from jax.experimental import pallas as pl
from jax.experimental.pallas import tpu as pltpu

EPS = 1e-5  # PyTorch nn.LayerNorm default eps


def _layernorm(x, w, b):
    mean = jnp.mean(x, axis=-1, keepdims=True)
    var = jnp.mean((x - mean) ** 2, axis=-1, keepdims=True)
    return (x - mean) * jax.lax.rsqrt(var + EPS) * w + b


def encoder_layer_kernel(x_ref, mask_ref, ln1w_ref, ln1b_ref, wqkv_ref, wproj_ref,
                         ln2w_ref, ln2b_ref, w1_ref, b1_ref, w2_ref, b2_ref,
                         out_ref, *, num_heads, head_dim, seq_len, batch_block):
    Bt, S, H, hd = batch_block, seq_len, num_heads, head_dim
    D = H * hd
    cdt = wqkv_ref.dtype                      # MXU compute dtype (f32 or bf16)

    x = x_ref[...]                            # (Bt*S, D) f32, rows of Bt batches
    mask = mask_ref[...]                      # (H, D) f32 one-hot head mask

    # Hoisted parameter reads (read once per grid step).
    ln1_w, ln1_b = ln1w_ref[0], ln1b_ref[0]
    ln2_w, ln2_b = ln2w_ref[0], ln2b_ref[0]
    b1, b2 = b1_ref[0], b2_ref[0]

    # ---- sub-layer 1: LN -> multi-head softmax attention -> proj, residual ----
    h1 = _layernorm(x, ln1_w, ln1_b).astype(cdt)
    qkv = jnp.dot(h1, wqkv_ref[...], preferred_element_type=jnp.float32)  # (Bt*S, 3D)

    # 128-aligned lane slices of the fused projection (free), scale folded into q.
    q = (qkv[:, 0 * D:1 * D] * (hd ** -0.5)).reshape(Bt, S, D)            # f32
    k = qkv[:, 1 * D:2 * D].reshape(Bt, S, D).astype(cdt)
    v = qkv[:, 2 * D:3 * D].reshape(Bt, S, D).astype(cdt)

    # Head-masked q: row n = q_idx*H + h holds q masked to head h's columns, so a
    # single full-D contraction per batch yields all per-head score tiles.
    qh = (q[:, :, None, :] * mask[None, None, :, :]).astype(cdt)          # (Bt,S,H,D)
    qh = qh.reshape(Bt, S * H, D)

    s = jnp.einsum('bnd,bkd->bnk', qh, k,
                   preferred_element_type=jnp.float32)                    # (Bt,S*H,S)
    m = jnp.max(s, axis=-1, keepdims=True)
    p = jnp.exp(s - m)
    # approx reciprocal: softmax rows sum to 1 within ~1e-3 (fine for inference).
    p = p * pl.reciprocal(jnp.sum(p, axis=-1, keepdims=True), approx=True)

    o = jnp.einsum('bnk,bkd->bnd', p.astype(cdt), v,
                   preferred_element_type=jnp.float32)                    # (Bt,S*H,D)
    # Combine heads: output column d takes head d // hd -> masked sublane reduce.
    attn = jnp.sum(o.reshape(Bt, S, H, D) * mask[None, None, :, :], axis=2)
    attn = attn.reshape(Bt * S, D)                                        # lane-packed

    x1 = x + jnp.dot(attn.astype(cdt), wproj_ref[...],
                     preferred_element_type=jnp.float32)

    # ---- sub-layer 2: LN -> MLP (Linear, ReLU, Linear), residual ----
    h2 = _layernorm(x1, ln2_w, ln2_b).astype(cdt)
    hmid = jnp.dot(h2, w1_ref[...], preferred_element_type=jnp.float32) + b1
    hmid = jnp.maximum(hmid, 0.0).astype(cdt)
    out_ref[...] = x1 + jnp.dot(hmid, w2_ref[...],
                                preferred_element_type=jnp.float32) + b2


def memory_efficient_encoder_layer(x, params, num_heads, *, batch_block=None,
                                   compute_dtype=jnp.float32, min_grid_steps=2):
    """x: (B, S, D) f32. params hold transposed weights (ready for x @ W^T)."""
    B, S, D = x.shape
    Dh = params["w1"].shape[1]
    assert D % num_heads == 0
    head_dim = D // num_heads

    if batch_block is None:
        # Largest divisor of B that still gives >= min_grid_steps grid steps
        # (pipelines the x / out DMA; use min_grid_steps=4 on v7x for 2 per TC).
        target = max(1, min(B, min_grid_steps))
        batch_block = 1
        for d in range(1, B + 1):
            if B % d == 0 and B // d >= target:
                batch_block = d
    assert B % batch_block == 0
    rows = batch_block * S                     # rows per grid step (multiple of 8)

    cdt = compute_dtype
    # Only matmul weights are cast to the MXU compute dtype; LN params, biases and
    # all elementwise math stay f32 (valid on v5e/v6e/v7x alike).
    wqkv = params["wqkv_t"].astype(cdt)
    wproj = params["wproj_t"].astype(cdt)
    w1 = params["w1"].astype(cdt)
    w2 = params["w2"].astype(cdt)

    # One-hot head-membership mask: mask[h, d] = 1 iff column d belongs to head h.
    head_mask = (jnp.arange(D, dtype=jnp.int32)[None, :] // head_dim
                 == jnp.arange(num_heads, dtype=jnp.int32)[:, None]
                 ).astype(jnp.float32)

    x2d = x.reshape(B * S, D)                  # lane-dense 2-D view

    kernel = functools.partial(encoder_layer_kernel, num_heads=num_heads,
                               head_dim=head_dim, seq_len=S,
                               batch_block=batch_block)

    def const2d(shape):
        # Grid-invariant block: constant index map + single buffer (fetched once).
        return pl.BlockSpec(shape, lambda i: (0, 0), pipeline_mode=pl.Buffered(1))

    wbytes = jnp.dtype(cdt).itemsize
    flops = (2 * B * S * D * 3 * D                     # fused QKV
             + 4 * B * num_heads * S * S * D           # scores + PV (masked full-D)
             + 2 * B * S * D * D                       # proj
             + 4 * B * S * D * Dh)                     # MLP
    cost = pl.CostEstimate(
        flops=int(flops),
        transcendentals=int(B * num_heads * S * S),
        bytes_accessed=int(2 * B * S * D * 4 + (4 * D * D + 2 * D * Dh) * wbytes))

    out2d = pl.pallas_call(
        kernel,
        out_shape=jax.ShapeDtypeStruct((B * S, D), jnp.float32),
        grid_spec=pltpu.PrefetchScalarGridSpec(
            num_scalar_prefetch=0,
            grid=(B // batch_block,),
            in_specs=[
                pl.BlockSpec((rows, D), lambda i: (i, 0)),     # x rows of this block
                const2d((num_heads, D)),                       # head mask
                const2d((1, D)), const2d((1, D)),              # LN1 weight / bias
                const2d((D, 3 * D)),                           # fused Wqkv^T
                const2d((D, D)),                               # Wproj^T
                const2d((1, D)), const2d((1, D)),              # LN2 weight / bias
                const2d((D, Dh)), const2d((1, Dh)),            # MLP W1^T, b1
                const2d((Dh, D)), const2d((1, D)),             # MLP W2^T, b2
            ],
            out_specs=pl.BlockSpec((rows, D), lambda i: (i, 0)),
        ),
        compiler_params=pltpu.CompilerParams(
            dimension_semantics=("parallel",),                 # v7x: shard across TCs
            vmem_limit_bytes=64 * 1024 * 1024),
        input_output_aliases={0: 0},                           # out overwrites x rows
        cost_estimate=cost,
    )(x2d, head_mask, params["ln1_w"], params["ln1_b"], wqkv, wproj,
      params["ln2_w"], params["ln2_b"], w1, params["b1"], w2, params["b2"])

    return out2d.reshape(B, S, D)


def ref_forward(x, p, num_heads):
    """Pure-JAX reference mirroring the PyTorch module (eval mode)."""
    B, S, D = x.shape
    hd = D // num_heads

    def ln(t, w, b):
        m = t.mean(-1, keepdims=True)
        v = ((t - m) ** 2).mean(-1, keepdims=True)
        return (t - m) / jnp.sqrt(v + EPS) * w + b

    h1 = ln(x, p["ln1_w"][0], p["ln1_b"][0])
    qkv = h1 @ p["wqkv_t"]                                      # (B, S, 3D)
    q = qkv[..., 0 * D:1 * D].reshape(B, S, num_heads, hd).transpose(0, 2, 1, 3)
    k = qkv[..., 1 * D:2 * D].reshape(B, S, num_heads, hd).transpose(0, 2, 1, 3)
    v = qkv[..., 2 * D:3 * D].reshape(B, S, num_heads, hd).transpose(0, 2, 1, 3)
    s = jnp.einsum("bhqd,bhkd->bhqk", q, k) * hd ** -0.5
    pa = jax.nn.softmax(s, axis=-1)
    o = jnp.einsum("bhqk,bhkd->bhqd", pa, v).transpose(0, 2, 1, 3).reshape(B, S, D)
    x1 = x + o @ p["wproj_t"]
    h2 = ln(x1, p["ln2_w"][0], p["ln2_b"][0])
    mlp = jnp.maximum(h2 @ p["w1"] + p["b1"][0], 0.0) @ p["w2"] + p["b2"][0]
    return x1 + mlp


if __name__ == "__main__":
    B, S, D = 4, 16, 128
    num_heads = 8            # module default; head_dim = 16
    mlp_ratio = 2
    Dh = D * mlp_ratio

    key = jax.random.PRNGKey(0)
    ks = jax.random.split(key, 12)
    x = jax.random.normal(ks[0], (B, S, D), dtype=jnp.float32)

    # PyTorch Linear weights are (out, in); store transposes so x @ W^T is row-major.
    Wqkv = (0.05 * jax.random.normal(ks[1], (3 * D, D))).astype(jnp.float32)
    params = {
        "ln1_w": (1.0 + 0.1 * jax.random.normal(ks[7], (1, D))).astype(jnp.float32),
        "ln1_b": (0.1 * jax.random.normal(ks[8], (1, D))).astype(jnp.float32),
        "wqkv_t": Wqkv.T,                                               # (D, 3D)
        "wproj_t": (0.05 * jax.random.normal(ks[2], (D, D))).T.astype(jnp.float32),
        "ln2_w": (1.0 + 0.1 * jax.random.normal(ks[9], (1, D))).astype(jnp.float32),
        "ln2_b": (0.1 * jax.random.normal(ks[10], (1, D))).astype(jnp.float32),
        "w1": (0.05 * jax.random.normal(ks[3], (Dh, D))).T.astype(jnp.float32),
        "b1": (0.05 * jax.random.normal(ks[4], (1, Dh))).astype(jnp.float32),
        "w2": (0.05 * jax.random.normal(ks[5], (D, Dh))).T.astype(jnp.float32),
        "b2": (0.05 * jax.random.normal(ks[6], (1, D))).astype(jnp.float32),
    }

    ref = ref_forward(x, params, num_heads)

    # f32 MXU path (tight tolerance; approx reciprocal is the only deviation).
    out_f32 = memory_efficient_encoder_layer(x, params, num_heads,
                                             compute_dtype=jnp.float32)
    out_f32 = jax.block_until_ready(out_f32)
    assert out_f32.shape == (B, S, D)
    assert jnp.allclose(out_f32, ref, atol=5e-3, rtol=5e-3), (
        f"f32 max abs err {jnp.max(jnp.abs(out_f32 - ref))}")

    # bf16 MXU-operand fast path (valid on v5e/v6e/v7x); f32 accumulation.
    out_bf16 = memory_efficient_encoder_layer(x, params, num_heads,
                                              compute_dtype=jnp.bfloat16)
    out_bf16 = jax.block_until_ready(out_bf16)
    assert jnp.allclose(out_bf16, ref, atol=1e-1, rtol=5e-2), (
        f"bf16 max abs err {jnp.max(jnp.abs(out_bf16 - ref))}")

    print("KERNEL_OK")
</pallas_src>

<mosaic_0001>
module attributes {stable_mosaic.version = 11 : i64} {
  func.func @encoder_layer_kernel(%arg0: i32, %arg1: memref<32x128xf32, #tpu.memory_space<vmem>>, %arg2: memref<8x128xf32, #tpu.memory_space<vmem>>, %arg3: memref<1x128xf32, #tpu.memory_space<vmem>>, %arg4: memref<1x128xf32, #tpu.memory_space<vmem>>, %arg5: memref<128x384xf32, #tpu.memory_space<vmem>>, %arg6: memref<128x128xf32, #tpu.memory_space<vmem>>, %arg7: memref<1x128xf32, #tpu.memory_space<vmem>>, %arg8: memref<1x128xf32, #tpu.memory_space<vmem>>, %arg9: memref<128x256xf32, #tpu.memory_space<vmem>>, %arg10: memref<1x256xf32, #tpu.memory_space<vmem>>, %arg11: memref<256x128xf32, #tpu.memory_space<vmem>>, %arg12: memref<1x128xf32, #tpu.memory_space<vmem>>, %arg13: memref<32x128xf32, #tpu.memory_space<vmem>>) attributes {dimension_semantics = [#tpu.dimension_semantics<parallel>], iteration_bounds = array<i64: 2>, scalar_prefetch = 0 : i64, scratch_operands = 0 : i64, tpu.core_type = #tpu.core_type<tc>, window_params = [{transform_indices = @transform_0, window_bounds = array<i64: 32, 128>}, {pipeline_mode = #tpu.pipeline_mode<synchronous>, transform_indices = @transform_1, window_bounds = array<i64: 8, 128>}, {pipeline_mode = #tpu.pipeline_mode<synchronous>, transform_indices = @transform_2, window_bounds = array<i64: 1, 128>}, {pipeline_mode = #tpu.pipeline_mode<synchronous>, transform_indices = @transform_3, window_bounds = array<i64: 1, 128>}, {pipeline_mode = #tpu.pipeline_mode<synchronous>, transform_indices = @transform_4, window_bounds = array<i64: 128, 384>}, {pipeline_mode = #tpu.pipeline_mode<synchronous>, transform_indices = @transform_5, window_bounds = array<i64: 128, 128>}, {pipeline_mode = #tpu.pipeline_mode<synchronous>, transform_indices = @transform_6, window_bounds = array<i64: 1, 128>}, {pipeline_mode = #tpu.pipeline_mode<synchronous>, transform_indices = @transform_7, window_bounds = array<i64: 1, 128>}, {pipeline_mode = #tpu.pipeline_mode<synchronous>, transform_indices = @transform_8, window_bounds = array<i64: 128, 256>}, {pipeline_mode = #tpu.pipeline_mode<synchronous>, transform_indices = @transform_9, window_bounds = array<i64: 1, 256>}, {pipeline_mode = #tpu.pipeline_mode<synchronous>, transform_indices = @transform_10, window_bounds = array<i64: 256, 128>}, {pipeline_mode = #tpu.pipeline_mode<synchronous>, transform_indices = @transform_11, window_bounds = array<i64: 1, 128>}, {transform_indices = @transform_12, window_bounds = array<i64: 32, 128>}]} {
    %c0 = arith.constant 0 : index
    %c0_0 = arith.constant 0 : index
    %0 = vector.load %arg1[%c0, %c0_0] : memref<32x128xf32, #tpu.memory_space<vmem>>, vector<32x128xf32>
    %c0_1 = arith.constant 0 : index
    %c0_2 = arith.constant 0 : index
    %1 = vector.load %arg2[%c0_1, %c0_2] : memref<8x128xf32, #tpu.memory_space<vmem>>, vector<8x128xf32>
    %c0_3 = arith.constant 0 : index
    %c0_4 = arith.constant 0 : index
    %2 = vector.load %arg3[%c0_3, %c0_4] : memref<1x128xf32, #tpu.memory_space<vmem>>, vector<1x128xf32>
    %3 = vector.shape_cast %2 : vector<1x128xf32> to vector<128xf32>
    %c0_5 = arith.constant 0 : index
    %c0_6 = arith.constant 0 : index
    %4 = vector.load %arg4[%c0_5, %c0_6] : memref<1x128xf32, #tpu.memory_space<vmem>>, vector<1x128xf32>
    %5 = vector.shape_cast %4 : vector<1x128xf32> to vector<128xf32>
    %c0_7 = arith.constant 0 : index
    %c0_8 = arith.constant 0 : index
    %6 = vector.load %arg7[%c0_7, %c0_8] : memref<1x128xf32, #tpu.memory_space<vmem>>, vector<1x128xf32>
    %7 = vector.shape_cast %6 : vector<1x128xf32> to vector<128xf32>
    %c0_9 = arith.constant 0 : index
    %c0_10 = arith.constant 0 : index
    %8 = vector.load %arg8[%c0_9, %c0_10] : memref<1x128xf32, #tpu.memory_space<vmem>>, vector<1x128xf32>
    %9 = vector.shape_cast %8 : vector<1x128xf32> to vector<128xf32>
    %c0_11 = arith.constant 0 : index
    %c0_12 = arith.constant 0 : index
    %10 = vector.load %arg10[%c0_11, %c0_12] : memref<1x256xf32, #tpu.memory_space<vmem>>, vector<1x256xf32>
    %11 = vector.shape_cast %10 : vector<1x256xf32> to vector<256xf32>
    %c0_13 = arith.constant 0 : index
    %c0_14 = arith.constant 0 : index
    %12 = vector.load %arg12[%c0_13, %c0_14] : memref<1x128xf32, #tpu.memory_space<vmem>>, vector<1x128xf32>
    %13 = vector.shape_cast %12 : vector<1x128xf32> to vector<128xf32>
    %cst = arith.constant dense<0.000000e+00> : vector<32xf32>
    %14 = vector.multi_reduction <add>, %0, %cst [1] : vector<32x128xf32> to vector<32xf32>
    %15 = vector.shape_cast %14 : vector<32xf32> to vector<32x1xf32>
    %cst_15 = arith.constant 1.280000e+02 : f32
    %16 = vector.broadcast %cst_15 : f32 to vector<32x1xf32>
    %17 = arith.divf %15, %16 : vector<32x1xf32>
    %18 = vector.broadcast %17 : vector<32x1xf32> to vector<32x128xf32>
    %19 = arith.subf %0, %18 : vector<32x128xf32>
    %20 = arith.mulf %19, %19 : vector<32x128xf32>
    %cst_16 = arith.constant dense<0.000000e+00> : vector<32xf32>
    %21 = vector.multi_reduction <add>, %20, %cst_16 [1] : vector<32x128xf32> to vector<32xf32>
    %22 = vector.shape_cast %21 : vector<32xf32> to vector<32x1xf32>
    %cst_17 = arith.constant 1.280000e+02 : f32
    %23 = vector.broadcast %cst_17 : f32 to vector<32x1xf32>
    %24 = arith.divf %22, %23 : vector<32x1xf32>
    %25 = vector.broadcast %17 : vector<32x1xf32> to vector<32x128xf32>
    %26 = arith.subf %0, %25 : vector<32x128xf32>
    %cst_18 = arith.constant 9.99999974E-6 : f32
    %27 = vector.broadcast %cst_18 : f32 to vector<32x1xf32>
    %28 = arith.addf %24, %27 : vector<32x1xf32>
    %29 = math.rsqrt %28 : vector<32x1xf32>
    %30 = vector.broadcast %29 : vector<32x1xf32> to vector<32x128xf32>
    %31 = arith.mulf %26, %30 : vector<32x128xf32>
    %32 = vector.shape_cast %3 : vector<128xf32> to vector<1x128xf32>
    %33 = vector.broadcast %32 : vector<1x128xf32> to vector<32x128xf32>
    %34 = arith.mulf %31, %33 : vector<32x128xf32>
    %35 = vector.shape_cast %5 : vector<128xf32> to vector<1x128xf32>
    %36 = vector.broadcast %35 : vector<1x128xf32> to vector<32x128xf32>
    %37 = arith.addf %34, %36 : vector<32x128xf32>
    %c0_19 = arith.constant 0 : index
    %c0_20 = arith.constant 0 : index
    %38 = vector.load %arg5[%c0_19, %c0_20] : memref<128x384xf32, #tpu.memory_space<vmem>>, vector<128x384xf32>
    %cst_21 = arith.constant dense<0.000000e+00> : vector<32x384xf32>
    %39 = tpu.matmul %37, %38, %cst_21 {dimension_numbers = #tpu.dot_dimension_numbers<[1], [0], [0], [1], [0, 0, 1, 1], [], []>} : vector<32x128xf32>, vector<128x384xf32>, vector<32x384xf32> -> vector<32x384xf32>
    %40 = vector.extract_strided_slice %39 {offsets = [0, 0], sizes = [32, 128], strides = [1, 1]} : vector<32x384xf32> to vector<32x128xf32>
    %cst_22 = arith.constant 2.500000e-01 : f32
    %41 = vector.broadcast %cst_22 : f32 to vector<32x128xf32>
    %42 = arith.mulf %40, %41 : vector<32x128xf32>
    %43 = vector.shape_cast %42 : vector<32x128xf32> to vector<2x16x128xf32>
    %44 = vector.extract_strided_slice %39 {offsets = [0, 128], sizes = [32, 128], strides = [1, 1]} : vector<32x384xf32> to vector<32x128xf32>
    %45 = vector.shape_cast %44 : vector<32x128xf32> to vector<2x16x128xf32>
    %46 = vector.extract_strided_slice %39 {offsets = [0, 256], sizes = [32, 128], strides = [1, 1]} : vector<32x384xf32> to vector<32x128xf32>
    %47 = vector.shape_cast %46 : vector<32x128xf32> to vector<2x16x128xf32>
    %48 = vector.shape_cast %43 : vector<2x16x128xf32> to vector<2x16x1x128xf32>
    %49 = vector.shape_cast %1 : vector<8x128xf32> to vector<1x1x8x128xf32>
    %50 = vector.broadcast %48 : vector<2x16x1x128xf32> to vector<2x16x8x128xf32>
    %51 = vector.broadcast %49 : vector<1x1x8x128xf32> to vector<2x16x8x128xf32>
    %52 = arith.mulf %50, %51 : vector<2x16x8x128xf32>
    %53 = vector.shape_cast %52 : vector<2x16x8x128xf32> to vector<2x128x128xf32>
    "tpu.trace_start"() <{level = 10 : i32, message = "bnd,bkd->bnk"}> : () -> ()
    %cst_23 = arith.constant dense<0.000000e+00> : vector<2x128x16xf32>
    %54 = tpu.matmul %53, %45, %cst_23 {dimension_numbers = #tpu.dot_dimension_numbers<[2], [2], [1], [1], [0, 0, 0, 1, 1, 1], [0], [0]>} : vector<2x128x128xf32>, vector<2x16x128xf32>, vector<2x128x16xf32> -> vector<2x128x16xf32>
    "tpu.trace_stop"() : () -> ()
    %cst_24 = arith.constant dense<0xFF800000> : vector<2x128xf32>
    %55 = vector.multi_reduction <maximumf>, %54, %cst_24 [2] : vector<2x128x16xf32> to vector<2x128xf32>
    %56 = vector.shape_cast %55 : vector<2x128xf32> to vector<2x128x1xf32>
    %57 = vector.broadcast %56 : vector<2x128x1xf32> to vector<2x128x16xf32>
    %58 = arith.subf %54, %57 : vector<2x128x16xf32>
    %59 = math.exp %58 : vector<2x128x16xf32>
    %cst_25 = arith.constant dense<0.000000e+00> : vector<2x128xf32>
    %60 = vector.multi_reduction <add>, %59, %cst_25 [2] : vector<2x128x16xf32> to vector<2x128xf32>
    %61 = vector.shape_cast %60 : vector<2x128xf32> to vector<2x128x1xf32>
    %62 = tpu.reciprocal %61 {approx = true} : vector<2x128x1xf32> -> vector<2x128x1xf32>
    %63 = vector.broadcast %62 : vector<2x128x1xf32> to vector<2x128x16xf32>
    %64 = arith.mulf %59, %63 : vector<2x128x16xf32>
    "tpu.trace_start"() <{level = 10 : i32, message = "bnk,bkd->bnd"}> : () -> ()
    %cst_26 = arith.constant dense<0.000000e+00> : vector<2x128x128xf32>
    %65 = tpu.matmul %64, %47, %cst_26 {dimension_numbers = #tpu.dot_dimension_numbers<[2], [1], [1], [2], [0, 0, 0, 1, 1, 2], [0], [0]>} : vector<2x128x16xf32>, vector<2x16x128xf32>, vector<2x128x128xf32> -> vector<2x128x128xf32>
    "tpu.trace_stop"() : () -> ()
    %66 = vector.shape_cast %65 : vector<2x128x128xf32> to vector<2x16x8x128xf32>
    %67 = vector.shape_cast %1 : vector<8x128xf32> to vector<1x1x8x128xf32>
    %68 = vector.broadcast %67 : vector<1x1x8x128xf32> to vector<2x16x8x128xf32>
    %69 = arith.mulf %66, %68 : vector<2x16x8x128xf32>
    %cst_27 = arith.constant dense<0.000000e+00> : vector<2x16x128xf32>
    %70 = vector.multi_reduction <add>, %69, %cst_27 [2] : vector<2x16x8x128xf32> to vector<2x16x128xf32>
    %71 = vector.shape_cast %70 : vector<2x16x128xf32> to vector<32x128xf32>
    %c0_28 = arith.constant 0 : index
    %c0_29 = arith.constant 0 : index
    %72 = vector.load %arg6[%c0_28, %c0_29] : memref<128x128xf32, #tpu.memory_space<vmem>>, vector<128x128xf32>
    %cst_30 = arith.constant dense<0.000000e+00> : vector<32x128xf32>
    %73 = tpu.matmul %71, %72, %cst_30 {dimension_numbers = #tpu.dot_dimension_numbers<[1], [0], [0], [1], [0, 0, 1, 1], [], []>} : vector<32x128xf32>, vector<128x128xf32>, vector<32x128xf32> -> vector<32x128xf32>
    %74 = arith.addf %0, %73 : vector<32x128xf32>
    %cst_31 = arith.constant dense<0.000000e+00> : vector<32xf32>
    %75 = vector.multi_reduction <add>, %74, %cst_31 [1] : vector<32x128xf32> to vector<32xf32>
    %76 = vector.shape_cast %75 : vector<32xf32> to vector<32x1xf32>
    %cst_32 = arith.constant 1.280000e+02 : f32
    %77 = vector.broadcast %cst_32 : f32 to vector<32x1xf32>
    %78 = arith.divf %76, %77 : vector<32x1xf32>
    %79 = vector.broadcast %78 : vector<32x1xf32> to vector<32x128xf32>
    %80 = arith.subf %74, %79 : vector<32x128xf32>
    %81 = arith.mulf %80, %80 : vector<32x128xf32>
    %cst_33 = arith.constant dense<0.000000e+00> : vector<32xf32>
    %82 = vector.multi_reduction <add>, %81, %cst_33 [1] : vector<32x128xf32> to vector<32xf32>
    %83 = vector.shape_cast %82 : vector<32xf32> to vector<32x1xf32>
    %cst_34 = arith.constant 1.280000e+02 : f32
    %84 = vector.broadcast %cst_34 : f32 to vector<32x1xf32>
    %85 = arith.divf %83, %84 : vector<32x1xf32>
    %86 = vector.broadcast %78 : vector<32x1xf32> to vector<32x128xf32>
    %87 = arith.subf %74, %86 : vector<32x128xf32>
    %cst_35 = arith.constant 9.99999974E-6 : f32
    %88 = vector.broadcast %cst_35 : f32 to vector<32x1xf32>
    %89 = arith.addf %85, %88 : vector<32x1xf32>
    %90 = math.rsqrt %89 : vector<32x1xf32>
    %91 = vector.broadcast %90 : vector<32x1xf32> to vector<32x128xf32>
    %92 = arith.mulf %87, %91 : vector<32x128xf32>
    %93 = vector.shape_cast %7 : vector<128xf32> to vector<1x128xf32>
    %94 = vector.broadcast %93 : vector<1x128xf32> to vector<32x128xf32>
    %95 = arith.mulf %92, %94 : vector<32x128xf32>
    %96 = vector.shape_cast %9 : vector<128xf32> to vector<1x128xf32>
    %97 = vector.broadcast %96 : vector<1x128xf32> to vector<32x128xf32>
    %98 = arith.addf %95, %97 : vector<32x128xf32>
    %c0_36 = arith.constant 0 : index
    %c0_37 = arith.constant 0 : index
    %99 = vector.load %arg9[%c0_36, %c0_37] : memref<128x256xf32, #tpu.memory_space<vmem>>, vector<128x256xf32>
    %cst_38 = arith.constant dense<0.000000e+00> : vector<32x256xf32>
    %100 = tpu.matmul %98, %99, %cst_38 {dimension_numbers = #tpu.dot_dimension_numbers<[1], [0], [0], [1], [0, 0, 1, 1], [], []>} : vector<32x128xf32>, vector<128x256xf32>, vector<32x256xf32> -> vector<32x256xf32>
    %101 = vector.shape_cast %11 : vector<256xf32> to vector<1x256xf32>
    %102 = vector.broadcast %101 : vector<1x256xf32> to vector<32x256xf32>
    %103 = arith.addf %100, %102 : vector<32x256xf32>
    %cst_39 = arith.constant 0.000000e+00 : f32
    %104 = vector.broadcast %cst_39 : f32 to vector<32x256xf32>
    %105 = arith.maximumf %103, %104 : vector<32x256xf32>
    %c0_40 = arith.constant 0 : index
    %c0_41 = arith.constant 0 : index
    %106 = vector.load %arg11[%c0_40, %c0_41] : memref<256x128xf32, #tpu.memory_space<vmem>>, vector<256x128xf32>
    %cst_42 = arith.constant dense<0.000000e+00> : vector<32x128xf32>
    %107 = tpu.matmul %105, %106, %cst_42 {dimension_numbers = #tpu.dot_dimension_numbers<[1], [0], [0], [1], [0, 0, 1, 1], [], []>} : vector<32x256xf32>, vector<256x128xf32>, vector<32x128xf32> -> vector<32x128xf32>
    %108 = arith.addf %74, %107 : vector<32x128xf32>
    %109 = vector.shape_cast %13 : vector<128xf32> to vector<1x128xf32>
    %110 = vector.broadcast %109 : vector<1x128xf32> to vector<32x128xf32>
    %111 = arith.addf %108, %110 : vector<32x128xf32>
    %c0_43 = arith.constant 0 : index
    %c0_44 = arith.constant 0 : index
    %112 = vector.load %arg13[%c0_43, %c0_44] : memref<32x128xf32, #tpu.memory_space<vmem>>, vector<32x128xf32>
    tpu.vector_store %arg13[%c0_43, %c0_44], %111 {strides = array<i32>} : memref<32x128xf32, #tpu.memory_space<vmem>>, vector<32x128xf32>,
    return
  }
  func.func @transform_0(%arg0: i32) -> (i32, i32) {
    %c0_i32 = arith.constant 0 : i32
    %c0_i32_0 = arith.constant 0 : i32
    return %arg0, %c0_i32 : i32, i32
  }
  func.func @transform_1(%arg0: i32) -> (i32, i32) {
    %c0_i32 = arith.constant 0 : i32
    %c0_i32_0 = arith.constant 0 : i32
    %c0_i32_1 = arith.constant 0 : i32
    return %c0_i32, %c0_i32_0 : i32, i32
  }
  func.func @transform_2(%arg0: i32) -> (i32, i32) {
    %c0_i32 = arith.constant 0 : i32
    %c0_i32_0 = arith.constant 0 : i32
    %c0_i32_1 = arith.constant 0 : i32
    return %c0_i32, %c0_i32_0 : i32, i32
  }
  func.func @transform_3(%arg0: i32) -> (i32, i32) {
    %c0_i32 = arith.constant 0 : i32
    %c0_i32_0 = arith.constant 0 : i32
    %c0_i32_1 = arith.constant 0 : i32
    return %c0_i32, %c0_i32_0 : i32, i32
  }
  func.func @transform_4(%arg0: i32) -> (i32, i32) {
    %c0_i32 = arith.constant 0 : i32
    %c0_i32_0 = arith.constant 0 : i32
    %c0_i32_1 = arith.constant 0 : i32
    return %c0_i32, %c0_i32_0 : i32, i32
  }
  func.func @transform_5(%arg0: i32) -> (i32, i32) {
    %c0_i32 = arith.constant 0 : i32
    %c0_i32_0 = arith.constant 0 : i32
    %c0_i32_1 = arith.constant 0 : i32
    return %c0_i32, %c0_i32_0 : i32, i32
  }
  func.func @transform_6(%arg0: i32) -> (i32, i32) {
    %c0_i32 = arith.constant 0 : i32
    %c0_i32_0 = arith.constant 0 : i32
    %c0_i32_1 = arith.constant 0 : i32
    return %c0_i32, %c0_i32_0 : i32, i32
  }
  func.func @transform_7(%arg0: i32) -> (i32, i32) {
    %c0_i32 = arith.constant 0 : i32
    %c0_i32_0 = arith.constant 0 : i32
    %c0_i32_1 = arith.constant 0 : i32
    return %c0_i32, %c0_i32_0 : i32, i32
  }
  func.func @transform_8(%arg0: i32) -> (i32, i32) {
    %c0_i32 = arith.constant 0 : i32
    %c0_i32_0 = arith.constant 0 : i32
    %c0_i32_1 = arith.constant 0 : i32
    return %c0_i32, %c0_i32_0 : i32, i32
  }
  func.func @transform_9(%arg0: i32) -> (i32, i32) {
    %c0_i32 = arith.constant 0 : i32
    %c0_i32_0 = arith.constant 0 : i32
    %c0_i32_1 = arith.constant 0 : i32
    return %c0_i32, %c0_i32_0 : i32, i32
  }
  func.func @transform_10(%arg0: i32) -> (i32, i32) {
    %c0_i32 = arith.constant 0 : i32
    %c0_i32_0 = arith.constant 0 : i32
    %c0_i32_1 = arith.constant 0 : i32
    return %c0_i32, %c0_i32_0 : i32, i32
  }
  func.func @transform_11(%arg0: i32) -> (i32, i32) {
    %c0_i32 = arith.constant 0 : i32
    %c0_i32_0 = arith.constant 0 : i32
    %c0_i32_1 = arith.constant 0 : i32
    return %c0_i32, %c0_i32_0 : i32, i32
  }
  func.func @transform_12(%arg0: i32) -> (i32, i32) {
    %c0_i32 = arith.constant 0 : i32
    %c0_i32_0 = arith.constant 0 : i32
    return %arg0, %c0_i32 : i32, i32
  }
}

</mosaic_0001>

<llo_original>
// kernel: tpu_custom_call.1
$region0: #{tpu_custom_call.1}
  #allocation0 [shape = 'u32[]', space=smem, size = 0x4, offset = 0x4, fixed_abs, tag = 'smem constant byte address 0x4 - core index']
  #allocation1 [shape = 'u32[144,128]{1,0:T(1,128)}', space=vmem, size = 0x12000, scoped, tag = 'internal scratch']
  %s0 = inlined_call_operand.hbm [shape: f32[64,128], index: 0, kind: input, shape index: {}, may-alias: {0,12}]
  %s1 = inlined_call_operand.hbm [shape: f32[8,128], index: 1, kind: input, shape index: {}]
  %s2 = inlined_call_operand.hbm [shape: f32[1,128], index: 2, kind: input, shape index: {}]
  %s3 = inlined_call_operand.hbm [shape: f32[1,128], index: 3, kind: input, shape index: {}]
  %s4 = inlined_call_operand.hbm [shape: f32[128,384], index: 4, kind: input, shape index: {}]
  %s5 = inlined_call_operand.hbm [shape: f32[128,128], index: 5, kind: input, shape index: {}]
  %s6 = inlined_call_operand.hbm [shape: f32[1,128], index: 6, kind: input, shape index: {}]
  %s7 = inlined_call_operand.hbm [shape: f32[1,128], index: 7, kind: input, shape index: {}]
  %s8 = inlined_call_operand.hbm [shape: f32[128,256], index: 8, kind: input, shape index: {}]
  %s9 = inlined_call_operand.hbm [shape: f32[1,256], index: 9, kind: input, shape index: {}]
  %s10 = inlined_call_operand.hbm [shape: f32[256,128], index: 10, kind: input, shape index: {}]
  %s11 = inlined_call_operand.hbm [shape: f32[1,128], index: 11, kind: input, shape index: {}]
  %s12 = inlined_call_operand.hbm [shape: f32[64,128], index: 12, kind: output, shape index: {}, may-alias: {0,12}]
  %s13 = sld [smem:[#allocation0]]
  $region129: #{tpu_custom_call.1} parent=0
    _
  %s15 = ssub.s32 1, %s13
  %s16 = scalar_select 0, %s15, %s13
  $region1: #{tpu_custom_call.1} parent=0
    #allocation2 [shape = 'u8[32768]{0}', space=vmem, size = 0x8000, scoped, tag = 'input window, operand 0']
    #allocation3 [shape = 's32[2]{0}', space=sflag, size = 0x8, scoped, tag = 'scoped memory for tpu_custom_call.1']
    #allocation4 [shape = 's32[2]{0}', space=sflag, size = 0x8, scoped, tag = 'scoped memory for tpu_custom_call.1']
    #allocation5 [shape = 'u8[4096]{0}', space=vmem, size = 0x1000, scoped, tag = 'input window, operand 1, single buffered']
    #allocation6 [shape = 's32[1]{0}', space=sflag, size = 0x4, scoped, tag = 'scoped memory for tpu_custom_call.1']
    #allocation7 [shape = 'u8[512]{0}', space=vmem, size = 0x400, scoped, tag = 'input window, operand 2, single buffered']
    #allocation8 [shape = 'u8[512]{0}', space=vmem, size = 0x400, scoped, tag = 'input window, operand 3, single buffered']
    #allocation9 [shape = 's32[1]{0}', space=sflag, size = 0x4, scoped, tag = 'scoped memory for tpu_custom_call.1']
    #allocation10 [shape = 'u8[196608]{0}', space=vmem, size = 0x30000, scoped, tag = 'input window, operand 4, single buffered']
    #allocation11 [shape = 'u8[65536]{0}', space=vmem, size = 0x10000, scoped, tag = 'input window, operand 5, single buffered']
    #allocation12 [shape = 's32[1]{0}', space=sflag, size = 0x4, scoped, tag = 'scoped memory for tpu_custom_call.1']
    #allocation13 [shape = 'u8[512]{0}', space=vmem, size = 0x400, scoped, tag = 'input window, operand 6, single buffered']
    #allocation14 [shape = 'u8[512]{0}', space=vmem, size = 0x400, scoped, tag = 'input window, operand 7, single buffered']
    #allocation15 [shape = 's32[1]{0}', space=sflag, size = 0x4, scoped, tag = 'scoped memory for tpu_custom_call.1']
    #allocation16 [shape = 'u8[131072]{0}', space=vmem, size = 0x20000, scoped, tag = 'input window, operand 8, single buffered']
    #allocation17 [shape = 'u8[1024]{0}', space=vmem, size = 0x400, scoped, tag = 'input window, operand 9, single buffered']
    #allocation18 [shape = 's32[1]{0}', space=sflag, size = 0x4, scoped, tag = 'scoped memory for tpu_custom_call.1']
    #allocation19 [shape = 'u8[131072]{0}', space=vmem, size = 0x20000, scoped, tag = 'input window, operand 10, single buffered']
    #allocation20 [shape = 'u8[512]{0}', space=vmem, size = 0x400, scoped, tag = 'input window, operand 11, single buffered']
    #allocation21 [shape = 's32[1]{0}', space=sflag, size = 0x4, scoped, tag = 'scoped memory for tpu_custom_call.1']
    #allocation22 [shape = 'u8[32768]{0}', space=vmem, size = 0x8000, scoped, tag = 'output window, operand 0']
    %17 = vsyncpa [#allocation3], 0
    %s18 = scalar_lea.sflag [#allocation3], 1
    %19 = vsyncpa %s18, 0
    %20 = vsyncpa [#allocation6], 0
    %21 = vsyncpa [#allocation9], 0
    %22 = vsyncpa [#allocation12], 0
    %23 = vsyncpa [#allocation15], 0
    %24 = vsyncpa [#allocation18], 0
    %25 = vsyncpa [#allocation21], 0
    %26 = vsyncpa [#allocation4], 0
    %s27 = scalar_lea.sflag [#allocation4], 1
    %28 = vsyncpa %s27, 0
    loop: start=0, step=1, limit=4
    $region2: #{tpu_custom_call.1} parent=1 // loop_pre_header
      _
    $region3: #{tpu_custom_call.1} parent=1 // loop_header
      %s30 = sphi 0, %s34
      %p31 = scmp.ge.s32.totalorder %s30, 4
      %s40 = sphi 0, %s42
      %s43 = sphi 0, %s40
      %s44 = sphi 0, %s43
      %s60 = sphi 0, %s44
      %s64 = sphi 0, %s64
      %s66 = sphi 0, %s64
      %s67 = sphi 0, %s66
      %s81 = sphi 0, %s67
      %s85 = sphi 0, %s85
      %s87 = sphi 0, %s85
      %s88 = sphi 0, %s87
      %s102 = sphi 0, %s88
      %s106 = sphi 0, %s106
      %s108 = sphi 0, %s106
      %s109 = sphi 0, %s108
      %s123 = sphi 0, %s109
      %s127 = sphi 0, %s127
      %s129 = sphi 0, %s127
      %s130 = sphi 0, %s129
      %s144 = sphi 0, %s130
      %s148 = sphi 0, %s148
      %s150 = sphi 0, %s148
      %s151 = sphi 0, %s150
      %s165 = sphi 0, %s151
      %s169 = sphi 0, %s169
      %s171 = sphi 0, %s169
      %s172 = sphi 0, %s171
      %s186 = sphi 0, %s172
      %s190 = sphi 0, %s190
      %s192 = sphi 0, %s190
      %s193 = sphi 0, %s192
      %s207 = sphi 0, %s193
      %s211 = sphi 0, %s211
      %s213 = sphi 0, %s211
      %s214 = sphi 0, %s213
      %s228 = sphi 0, %s214
      %s232 = sphi 0, %s232
      %s234 = sphi 0, %s232
      %s235 = sphi 0, %s234
      %s249 = sphi 0, %s235
      %s253 = sphi 0, %s253
      %s255 = sphi 0, %s253
      %s256 = sphi 0, %s255
      %s270 = sphi 0, %s256
      %s274 = sphi 0, %s274
      %s276 = sphi 0, %s274
      %s277 = sphi 0, %s276
      %s291 = sphi 0, %s277
      %s297 = sphi 0, %s299
      %s300 = sphi 0, %s297
      %s301 = sphi 0, %s300
      %s317 = sphi 0, %s301
    $region4: #{tpu_custom_call.1} parent=1 // loop_header_branch
      %33 = sbr.rel (%p31) target = $region8
    $region5: #{tpu_custom_call.1} parent=1 // loop_body
      %s35 = ssub.s32 %s30, 1
      %s36 = ssub.s32 %s30, 2
      %s37 = sadd.s32 %s30, 1
      %s38 = ssub.s32 %s30, %s37
      %p39 = scmp.eq.s32.totalorder %s38, 0
      %s41 = sadd.s32 %s40, 1
      %s42 = scalar_select %p39, %s40, %s41
      %p45 = pneg %p39
      %p46 = scmp.eq.s32.totalorder %s30, 1
      %p47 = por %p45, %p46
      %p48 = scmp.ne.s32.totalorder %s40, %s43
      %p49 = scmp.eq.s32.totalorder %s30, 0
      %p50 = por %p48, %p49
      %p51 = scmp.ne.s32.totalorder %s40, %s43
      %p52 = scmp.eq.s32.totalorder %s35, 1
      %p53 = por %p51, %p52
      %p54 = scmp.ne.s32.totalorder %s43, %s44
      %p55 = scmp.eq.s32.totalorder %s35, 0
      %p56 = por %p54, %p55
      %p57 = scmp.ne.s32.totalorder %s43, %s44
      %p58 = scmp.eq.s32.totalorder %s36, 1
      %p59 = por %p57, %p58
      %p61 = scmp.ne.s32.totalorder %s44, %s60
      %p62 = scmp.eq.s32.totalorder %s36, 0
      %p63 = por %p61, %p62
      %s65 = sadd.s32 %s64, 1
      %p68 = scmp.eq.s32.totalorder %s30, 1
      %p69 = scmp.ne.s32.totalorder %s64, %s66
      %p70 = scmp.eq.s32.totalorder %s30, 0
      %p71 = por %p69, %p70
      %p72 = scmp.ne.s32.totalorder %s64, %s66
      %p73 = scmp.eq.s32.totalorder %s35, 1
      %p74 = por %p72, %p73
      %p75 = scmp.ne.s32.totalorder %s66, %s67
      %p76 = scmp.eq.s32.totalorder %s35, 0
      %p77 = por %p75, %p76
      %p78 = scmp.ne.s32.totalorder %s66, %s67
      %p79 = scmp.eq.s32.totalorder %s36, 1
      %p80 = por %p78, %p79
      %p82 = scmp.ne.s32.totalorder %s67, %s81
      %p83 = scmp.eq.s32.totalorder %s36, 0
      %p84 = por %p82, %p83
      %s86 = sadd.s32 %s85, 1
      %p89 = scmp.eq.s32.totalorder %s30, 1
      %p90 = scmp.ne.s32.totalorder %s85, %s87
      %p91 = scmp.eq.s32.totalorder %s30, 0
      %p92 = por %p90, %p91
      %p93 = scmp.ne.s32.totalorder %s85, %s87
      %p94 = scmp.eq.s32.totalorder %s35, 1
      %p95 = por %p93, %p94
      %p96 = scmp.ne.s32.totalorder %s87, %s88
      %p97 = scmp.eq.s32.totalorder %s35, 0
      %p98 = por %p96, %p97
      %p99 = scmp.ne.s32.totalorder %s87, %s88
      %p100 = scmp.eq.s32.totalorder %s36, 1
      %p101 = por %p99, %p100
      %p103 = scmp.ne.s32.totalorder %s88, %s102
      %p104 = scmp.eq.s32.totalorder %s36, 0
      %p105 = por %p103, %p104
      %s107 = sadd.s32 %s106, 1
      %p110 = scmp.eq.s32.totalorder %s30, 1
      %p111 = scmp.ne.s32.totalorder %s106, %s108
      %p112 = scmp.eq.s32.totalorder %s30, 0
      %p113 = por %p111, %p112
      %p114 = scmp.ne.s32.totalorder %s106, %s108
      %p115 = scmp.eq.s32.totalorder %s35, 1
      %p116 = por %p114, %p115
      %p117 = scmp.ne.s32.totalorder %s108, %s109
      %p118 = scmp.eq.s32.totalorder %s35, 0
      %p119 = por %p117, %p118
      %p120 = scmp.ne.s32.totalorder %s108, %s109
      %p121 = scmp.eq.s32.totalorder %s36, 1
      %p122 = por %p120, %p121
      %p124 = scmp.ne.s32.totalorder %s109, %s123
      %p125 = scmp.eq.s32.totalorder %s36, 0
      %p126 = por %p124, %p125
      %s128 = sadd.s32 %s127, 1
      %p131 = scmp.eq.s32.totalorder %s30, 1
      %p132 = scmp.ne.s32.totalorder %s127, %s129
      %p133 = scmp.eq.s32.totalorder %s30, 0
      %p134 = por %p132, %p133
      %p135 = scmp.ne.s32.totalorder %s127, %s129
      %p136 = scmp.eq.s32.totalorder %s35, 1
      %p137 = por %p135, %p136
      %p138 = scmp.ne.s32.totalorder %s129, %s130
      %p139 = scmp.eq.s32.totalorder %s35, 0
      %p140 = por %p138, %p139
      %p141 = scmp.ne.s32.totalorder %s129, %s130
      %p142 = scmp.eq.s32.totalorder %s36, 1
      %p143 = por %p141, %p142
      %p145 = scmp.ne.s32.totalorder %s130, %s144
      %p146 = scmp.eq.s32.totalorder %s36, 0
      %p147 = por %p145, %p146
      %s149 = sadd.s32 %s148, 1
      %p152 = scmp.eq.s32.totalorder %s30, 1
      %p153 = scmp.ne.s32.totalorder %s148, %s150
      %p154 = scmp.eq.s32.totalorder %s30, 0
      %p155 = por %p153, %p154
      %p156 = scmp.ne.s32.totalorder %s148, %s150
      %p157 = scmp.eq.s32.totalorder %s35, 1
      %p158 = por %p156, %p157
      %p159 = scmp.ne.s32.totalorder %s150, %s151
      %p160 = scmp.eq.s32.totalorder %s35, 0
      %p161 = por %p159, %p160
      %p162 = scmp.ne.s32.totalorder %s150, %s151
      %p163 = scmp.eq.s32.totalorder %s36, 1
      %p164 = por %p162, %p163
      %p166 = scmp.ne.s32.totalorder %s151, %s165
      %p167 = scmp.eq.s32.totalorder %s36, 0
      %p168 = por %p166, %p167
      %s170 = sadd.s32 %s169, 1
      %p173 = scmp.eq.s32.totalorder %s30, 1
      %p174 = scmp.ne.s32.totalorder %s169, %s171
      %p175 = scmp.eq.s32.totalorder %s30, 0
      %p176 = por %p174, %p175
      %p177 = scmp.ne.s32.totalorder %s169, %s171
      %p178 = scmp.eq.s32.totalorder %s35, 1
      %p179 = por %p177, %p178
      %p180 = scmp.ne.s32.totalorder %s171, %s172
      %p181 = scmp.eq.s32.totalorder %s35, 0
      %p182 = por %p180, %p181
      %p183 = scmp.ne.s32.totalorder %s171, %s172
      %p184 = scmp.eq.s32.totalorder %s36, 1
      %p185 = por %p183, %p184
      %p187 = scmp.ne.s32.totalorder %s172, %s186
      %p188 = scmp.eq.s32.totalorder %s36, 0
      %p189 = por %p187, %p188
      %s191 = sadd.s32 %s190, 1
      %p194 = scmp.eq.s32.totalorder %s30, 1
      %p195 = scmp.ne.s32.totalorder %s190, %s192
      %p196 = scmp.eq.s32.totalorder %s30, 0
      %p197 = por %p195, %p196
      %p198 = scmp.ne.s32.totalorder %s190, %s192
      %p199 = scmp.eq.s32.totalorder %s35, 1
      %p200 = por %p198, %p199
      %p201 = scmp.ne.s32.totalorder %s192, %s193
      %p202 = scmp.eq.s32.totalorder %s35, 0
      %p203 = por %p201, %p202
      %p204 = scmp.ne.s32.totalorder %s192, %s193
      %p205 = scmp.eq.s32.totalorder %s36, 1
      %p206 = por %p204, %p205
      %p208 = scmp.ne.s32.totalorder %s193, %s207
      %p209 = scmp.eq.s32.totalorder %s36, 0
      %p210 = por %p208, %p209
      %s212 = sadd.s32 %s211, 1
      %p215 = scmp.eq.s32.totalorder %s30, 1
      %p216 = scmp.ne.s32.totalorder %s211, %s213
      %p217 = scmp.eq.s32.totalorder %s30, 0
      %p218 = por %p216, %p217
      %p219 = scmp.ne.s32.totalorder %s211, %s213
      %p220 = scmp.eq.s32.totalorder %s35, 1
      %p221 = por %p219, %p220
      %p222 = scmp.ne.s32.totalorder %s213, %s214
      %p223 = scmp.eq.s32.totalorder %s35, 0
      %p224 = por %p222, %p223
      %p225 = scmp.ne.s32.totalorder %s213, %s214
      %p226 = scmp.eq.s32.totalorder %s36, 1
      %p227 = por %p225, %p226
      %p229 = scmp.ne.s32.totalorder %s214, %s228
      %p230 = scmp.eq.s32.totalorder %s36, 0
      %p231 = por %p229, %p230
      %s233 = sadd.s32 %s232, 1
      %p236 = scmp.eq.s32.totalorder %s30, 1
      %p237 = scmp.ne.s32.totalorder %s232, %s234
      %p238 = scmp.eq.s32.totalorder %s30, 0
      %p239 = por %p237, %p238
      %p240 = scmp.ne.s32.totalorder %s232, %s234
      %p241 = scmp.eq.s32.totalorder %s35, 1
      %p242 = por %p240, %p241
      %p243 = scmp.ne.s32.totalorder %s234, %s235
      %p244 = scmp.eq.s32.totalorder %s35, 0
      %p245 = por %p243, %p244
      %p246 = scmp.ne.s32.totalorder %s234, %s235
      %p247 = scmp.eq.s32.totalorder %s36, 1
      %p248 = por %p246, %p247
      %p250 = scmp.ne.s32.totalorder %s235, %s249
      %p251 = scmp.eq.s32.totalorder %s36, 0
      %p252 = por %p250, %p251
      %s254 = sadd.s32 %s253, 1
      %p257 = scmp.eq.s32.totalorder %s30, 1
      %p258 = scmp.ne.s32.totalorder %s253, %s255
      %p259 = scmp.eq.s32.totalorder %s30, 0
      %p260 = por %p258, %p259
      %p261 = scmp.ne.s32.totalorder %s253, %s255
      %p262 = scmp.eq.s32.totalorder %s35, 1
      %p263 = por %p261, %p262
      %p264 = scmp.ne.s32.totalorder %s255, %s256
      %p265 = scmp.eq.s32.totalorder %s35, 0
      %p266 = por %p264, %p265
      %p267 = scmp.ne.s32.totalorder %s255, %s256
      %p268 = scmp.eq.s32.totalorder %s36, 1
      %p269 = por %p267, %p268
      %p271 = scmp.ne.s32.totalorder %s256, %s270
      %p272 = scmp.eq.s32.totalorder %s36, 0
      %p273 = por %p271, %p272
      %s275 = sadd.s32 %s274, 1
      %p278 = scmp.eq.s32.totalorder %s30, 1
      %p279 = scmp.ne.s32.totalorder %s274, %s276
      %p280 = scmp.eq.s32.totalorder %s30, 0
      %p281 = por %p279, %p280
      %p282 = scmp.ne.s32.totalorder %s274, %s276
      %p283 = scmp.eq.s32.totalorder %s35, 1
      %p284 = por %p282, %p283
      %p285 = scmp.ne.s32.totalorder %s276, %s277
      %p286 = scmp.eq.s32.totalorder %s35, 0
      %p287 = por %p285, %p286
      %p288 = scmp.ne.s32.totalorder %s276, %s277
      %p289 = scmp.eq.s32.totalorder %s36, 1
      %p290 = por %p288, %p289
      %p292 = scmp.ne.s32.totalorder %s277, %s291
      %p293 = scmp.eq.s32.totalorder %s36, 0
      %p294 = por %p292, %p293
      %s295 = ssub.s32 %s30, %s37
      %p296 = scmp.eq.s32.totalorder %s295, 0
      %s298 = sadd.s32 %s297, 1
      %s299 = scalar_select %p296, %s297, %s298
      %p302 = pneg %p296
      %p303 = scmp.eq.s32.totalorder %s30, 1
      %p304 = por %p302, %p303
      %p305 = scmp.ne.s32.totalorder %s297, %s300
      %p306 = scmp.eq.s32.totalorder %s30, 0
      %p307 = por %p305, %p306
      %p308 = scmp.ne.s32.totalorder %s297, %s300
      %p309 = scmp.eq.s32.totalorder %s35, 1
      %p310 = por %p308, %p309
      %p311 = scmp.ne.s32.totalorder %s300, %s301
      %p312 = scmp.eq.s32.totalorder %s35, 0
      %p313 = por %p311, %p312
      %p314 = scmp.ne.s32.totalorder %s300, %s301
      %p315 = scmp.eq.s32.totalorder %s36, 1
      %p316 = por %p314, %p315
      %p318 = scmp.ne.s32.totalorder %s301, %s317
      %p319 = scmp.eq.s32.totalorder %s36, 0
      %p320 = por %p318, %p319
      %p321 = scmp.le.s32.totalorder 1, %s30
      %p322 = scmp.lt.s32.totalorder %s30, 3
      %p323 = pnand %p321, %p322
      %p324 = pneg %p323
      // Predicated region
      $region9: #{tpu_custom_call.1} parent=5 // pred_check
        _
      $region10: #{tpu_custom_call.1} parent=5 // pred_check_branch
        %326 = sbr.rel (%p323) target = $region12
      $region11: #{tpu_custom_call.1} parent=5 // pred_region
        %s327 = ssub.s32 %s30, 1
        // Predicated region
        $region13: #{tpu_custom_call.1} parent=11 // pred_check
          %p328 = pneg %p77
        $region14: #{tpu_custom_call.1} parent=11 // pred_check_branch
          %330 = sbr.rel (%p328) target = $region16
        $region15: #{tpu_custom_call.1} parent=11 // pred_region
          %s332 = ssub.s32 128, 128
          %333 = vsyncadd [#allocation6], %s332
          %s335 = sshll.u32 [#allocation5], 4
          %s336 = int_to_ptr.vmem [resolvable:$true] %s335
          %338 = dma.hbm_to_vmem [thread:$0]  %s1, 128, %s336, [#allocation6]
        $region16: #{tpu_custom_call.1} parent=11 // pred_fallthru
          _
        // Predicated region
        $region17: #{tpu_custom_call.1} parent=11 // pred_check
          %p339 = pneg %p98
        $region18: #{tpu_custom_call.1} parent=11 // pred_check_branch
          %341 = sbr.rel (%p339) target = $region20
        $region19: #{tpu_custom_call.1} parent=11 // pred_region
          %s343 = ssub.s32 16, 16
          %344 = vsyncadd [#allocation6], %s343
          %s346 = sshll.u32 [#allocation7], 4
          %s347 = int_to_ptr.vmem [resolvable:$true] %s346
          %349 = dma.hbm_to_vmem [thread:$0]  %s2, 16, %s347, [#allocation6]
        $region20: #{tpu_custom_call.1} parent=11 // pred_fallthru
          _
        // Predicated region
        $region21: #{tpu_custom_call.1} parent=11 // pred_check
          %p350 = pneg %p119
        $region22: #{tpu_custom_call.1} parent=11 // pred_check_branch
          %352 = sbr.rel (%p350) target = $region24
        $region23: #{tpu_custom_call.1} parent=11 // pred_region
          %s354 = ssub.s32 16, 16
          %355 = vsyncadd [#allocation9], %s354
          %s357 = sshll.u32 [#allocation8], 4
          %s358 = int_to_ptr.vmem [resolvable:$true] %s357
          %360 = dma.hbm_to_vmem [thread:$0]  %s3, 16, %s358, [#allocation9]
        $region24: #{tpu_custom_call.1} parent=11 // pred_fallthru
          _
        // Predicated region
        $region25: #{tpu_custom_call.1} parent=11 // pred_check
          %p361 = pneg %p140
        $region26: #{tpu_custom_call.1} parent=11 // pred_check_branch
          %363 = sbr.rel (%p361) target = $region28
        $region27: #{tpu_custom_call.1} parent=11 // pred_region
          %s365 = ssub.s32 6144, 6144
          %366 = vsyncadd [#allocation9], %s365
          %s367 = sshll.u32 [#allocation10], 4
          %s368 = int_to_ptr.vmem [resolvable:$true] %s367
          %373 = dma.hbm_to_vmem [thread:$0]  %s4, 6144, %s368, [#allocation9], 384, 384, 24
        $region28: #{tpu_custom_call.1} parent=11 // pred_fallthru
          _
        // Predicated region
        $region29: #{tpu_custom_call.1} parent=11 // pred_check
          %p374 = pneg %p161
        $region30: #{tpu_custom_call.1} parent=11 // pred_check_branch
          %376 = sbr.rel (%p374) target = $region32
        $region31: #{tpu_custom_call.1} parent=11 // pred_region
          %s378 = ssub.s32 2048, 2048
          %379 = vsyncadd [#allocation12], %s378
          %s380 = sshll.u32 [#allocation11], 4
          %s381 = int_to_ptr.vmem [resolvable:$true] %s380
          %386 = dma.hbm_to_vmem [thread:$0]  %s5, 2048, %s381, [#allocation12], 128, 128, 8
        $region32: #{tpu_custom_call.1} parent=11 // pred_fallthru
          _
        // Predicated region
        $region33: #{tpu_custom_call.1} parent=11 // pred_check
          %p387 = pneg %p182
        $region34: #{tpu_custom_call.1} parent=11 // pred_check_branch
          %389 = sbr.rel (%p387) target = $region36
        $region35: #{tpu_custom_call.1} parent=11 // pred_region
          %s391 = ssub.s32 16, 16
          %392 = vsyncadd [#allocation12], %s391
          %s394 = sshll.u32 [#allocation13], 4
          %s395 = int_to_ptr.vmem [resolvable:$true] %s394
          %397 = dma.hbm_to_vmem [thread:$0]  %s6, 16, %s395, [#allocation12]
        $region36: #{tpu_custom_call.1} parent=11 // pred_fallthru
          _
        // Predicated region
        $region37: #{tpu_custom_call.1} parent=11 // pred_check
          %p398 = pneg %p203
        $region38: #{tpu_custom_call.1} parent=11 // pred_check_branch
          %400 = sbr.rel (%p398) target = $region40
        $region39: #{tpu_custom_call.1} parent=11 // pred_region
          %s402 = ssub.s32 16, 16
          %403 = vsyncadd [#allocation15], %s402
          %s405 = sshll.u32 [#allocation14], 4
          %s406 = int_to_ptr.vmem [resolvable:$true] %s405
          %408 = dma.hbm_to_vmem [thread:$0]  %s7, 16, %s406, [#allocation15]
        $region40: #{tpu_custom_call.1} parent=11 // pred_fallthru
          _
        // Predicated region
        $region41: #{tpu_custom_call.1} parent=11 // pred_check
          %p409 = pneg %p224
        $region42: #{tpu_custom_call.1} parent=11 // pred_check_branch
          %411 = sbr.rel (%p409) target = $region44
        $region43: #{tpu_custom_call.1} parent=11 // pred_region
          %s413 = ssub.s32 4096, 4096
          %414 = vsyncadd [#allocation15], %s413
          %s415 = sshll.u32 [#allocation16], 4
          %s416 = int_to_ptr.vmem [resolvable:$true] %s415
          %421 = dma.hbm_to_vmem [thread:$0]  %s8, 4096, %s416, [#allocation15], 256, 256, 16
        $region44: #{tpu_custom_call.1} parent=11 // pred_fallthru
          _
        // Predicated region
        $region45: #{tpu_custom_call.1} parent=11 // pred_check
          %p422 = pneg %p245
        $region46: #{tpu_custom_call.1} parent=11 // pred_check_branch
          %424 = sbr.rel (%p422) target = $region48
        $region47: #{tpu_custom_call.1} parent=11 // pred_region
          %s426 = ssub.s32 32, 32
          %427 = vsyncadd [#allocation18], %s426
          %s429 = sshll.u32 [#allocation17], 4
          %s430 = int_to_ptr.vmem [resolvable:$true] %s429
          %432 = dma.hbm_to_vmem [thread:$0]  %s9, 32, %s430, [#allocation18]
        $region48: #{tpu_custom_call.1} parent=11 // pred_fallthru
          _
        // Predicated region
        $region49: #{tpu_custom_call.1} parent=11 // pred_check
          %p433 = pneg %p266
        $region50: #{tpu_custom_call.1} parent=11 // pred_check_branch
          %435 = sbr.rel (%p433) target = $region52
        $region51: #{tpu_custom_call.1} parent=11 // pred_region
          %s437 = ssub.s32 4096, 4096
          %438 = vsyncadd [#allocation18], %s437
          %s439 = sshll.u32 [#allocation19], 4
          %s440 = int_to_ptr.vmem [resolvable:$true] %s439
          %445 = dma.hbm_to_vmem [thread:$0]  %s10, 4096, %s440, [#allocation18], 128, 128, 8
        $region52: #{tpu_custom_call.1} parent=11 // pred_fallthru
          _
        // Predicated region
        $region53: #{tpu_custom_call.1} parent=11 // pred_check
          %p446 = pneg %p287
        $region54: #{tpu_custom_call.1} parent=11 // pred_check_branch
          %448 = sbr.rel (%p446) target = $region56
        $region55: #{tpu_custom_call.1} parent=11 // pred_region
          %s450 = ssub.s32 16, 16
          %451 = vsyncadd [#allocation21], %s450
          %s453 = sshll.u32 [#allocation20], 4
          %s454 = int_to_ptr.vmem [resolvable:$true] %s453
          %456 = dma.hbm_to_vmem [thread:$0]  %s11, 16, %s454, [#allocation21]
        $region56: #{tpu_custom_call.1} parent=11 // pred_fallthru
          _
      $region12: #{tpu_custom_call.1} parent=5 // pred_fallthru
        _
      %p457 = scmp.lt.s32.totalorder %s30, 2
      // Predicated region
      $region57: #{tpu_custom_call.1} parent=5 // pred_check
        %p458 = pneg %p457
      $region58: #{tpu_custom_call.1} parent=5 // pred_check_branch
        %460 = sbr.rel (%p458) target = $region60
      $region59: #{tpu_custom_call.1} parent=5 // pred_region
        // Predicated region
        $region61: #{tpu_custom_call.1} parent=59 // pred_check
          %p461 = pneg %p50
        $region62: #{tpu_custom_call.1} parent=59 // pred_check_branch
          %463 = sbr.rel (%p461) target = $region64
        $region63: #{tpu_custom_call.1} parent=59 // pred_region
          %s464 = sand.u32 %s40, 1
          %s465 = scalar_lea.sflag [#allocation3], %s464
          %s466 = sand.u32 %s40, 1
          %s467 = smul.addr %s466, 32
          %s468 = scalar_lea.vmem [#allocation2], %s467
          %s469 = smul.u32 4, %s30
          %s471 = ssub.s32 512, 512
          %472 = vsyncadd %s465, %s471
          %s473 = smul.addr %s469, 128
          %s474 = scalar_lea.hbm %s0, %s473
          %s475 = sshll.u32 %s468, 4
          %s476 = int_to_ptr.vmem [resolvable:$true] %s475
          %481 = dma.hbm_to_vmem [thread:$0]  %s474, 512, %s476, %s465, 128, 128, 8
        $region64: #{tpu_custom_call.1} parent=59 // pred_fallthru
          _
      $region60: #{tpu_custom_call.1} parent=5 // pred_fallthru
        _
      %p482 = scmp.le.s32.totalorder 1, %s30
      %p483 = scmp.lt.s32.totalorder %s30, 3
      %p484 = pnand %p482, %p483
      %p485 = pneg %p484
      // Predicated region
      $region65: #{tpu_custom_call.1} parent=5 // pred_check
        _
      $region66: #{tpu_custom_call.1} parent=5 // pred_check_branch
        %487 = sbr.rel (%p484) target = $region68
      $region67: #{tpu_custom_call.1} parent=5 // pred_region
        %s488 = ssub.s32 %s30, 1
        %s489 = sand.u32 %s43, 1
        %s490 = scalar_lea.sflag [#allocation3], %s489
        %s491 = sand.u32 %s43, 1
        %s492 = smul.addr %s491, 32
        %s493 = scalar_lea.vmem [#allocation2], %s492
        // Predicated region
        $region69: #{tpu_custom_call.1} parent=67 // pred_check
          %p494 = pneg %p56
        $region70: #{tpu_custom_call.1} parent=67 // pred_check_branch
          %496 = sbr.rel (%p494) target = $region72
        $region71: #{tpu_custom_call.1} parent=67 // pred_region
          %497 = dma.done %s490, 512
        $region72: #{tpu_custom_call.1} parent=67 // pred_fallthru
          _
        // Predicated region
        $region73: #{tpu_custom_call.1} parent=67 // pred_check
          %p498 = pneg %p77
        $region74: #{tpu_custom_call.1} parent=67 // pred_check_branch
          %500 = sbr.rel (%p498) target = $region76
        $region75: #{tpu_custom_call.1} parent=67 // pred_region
          %501 = dma.done [#allocation6], 128
        $region76: #{tpu_custom_call.1} parent=67 // pred_fallthru
          _
        // Predicated region
        $region77: #{tpu_custom_call.1} parent=67 // pred_check
          %p502 = pneg %p98
        $region78: #{tpu_custom_call.1} parent=67 // pred_check_branch
          %504 = sbr.rel (%p502) target = $region80
        $region79: #{tpu_custom_call.1} parent=67 // pred_region
          %505 = dma.done [#allocation6], 16
        $region80: #{tpu_custom_call.1} parent=67 // pred_fallthru
          _
        // Predicated region
        $region81: #{tpu_custom_call.1} parent=67 // pred_check
          %p506 = pneg %p119
        $region82: #{tpu_custom_call.1} parent=67 // pred_check_branch
          %508 = sbr.rel (%p506) target = $region84
        $region83: #{tpu_custom_call.1} parent=67 // pred_region
          %509 = dma.done [#allocation9], 16
        $region84: #{tpu_custom_call.1} parent=67 // pred_fallthru
          _
        // Predicated region
        $region85: #{tpu_custom_call.1} parent=67 // pred_check
          %p510 = pneg %p140
        $region86: #{tpu_custom_call.1} parent=67 // pred_check_branch
          %512 = sbr.rel (%p510) target = $region88
        $region87: #{tpu_custom_call.1} parent=67 // pred_region
          %513 = dma.done [#allocation9], 6144
        $region88: #{tpu_custom_call.1} parent=67 // pred_fallthru
          _
        // Predicated region
        $region89: #{tpu_custom_call.1} parent=67 // pred_check
          %p514 = pneg %p161
        $region90: #{tpu_custom_call.1} parent=67 // pred_check_branch
          %516 = sbr.rel (%p514) target = $region92
        $region91: #{tpu_custom_call.1} parent=67 // pred_region
          %517 = dma.done [#allocation12], 2048
        $region92: #{tpu_custom_call.1} parent=67 // pred_fallthru
          _
        // Predicated region
        $region93: #{tpu_custom_call.1} parent=67 // pred_check
          %p518 = pneg %p182
        $region94: #{tpu_custom_call.1} parent=67 // pred_check_branch
          %520 = sbr.rel (%p518) target = $region96
        $region95: #{tpu_custom_call.1} parent=67 // pred_region
          %521 = dma.done [#allocation12], 16
        $region96: #{tpu_custom_call.1} parent=67 // pred_fallthru
          _
        // Predicated region
        $region97: #{tpu_custom_call.1} parent=67 // pred_check
          %p522 = pneg %p203
        $region98: #{tpu_custom_call.1} parent=67 // pred_check_branch
          %524 = sbr.rel (%p522) target = $region100
        $region99: #{tpu_custom_call.1} parent=67 // pred_region
          %525 = dma.done [#allocation15], 16
        $region100: #{tpu_custom_call.1} parent=67 // pred_fallthru
          _
        // Predicated region
        $region101: #{tpu_custom_call.1} parent=67 // pred_check
          %p526 = pneg %p224
        $region102: #{tpu_custom_call.1} parent=67 // pred_check_branch
          %528 = sbr.rel (%p526) target = $region104
        $region103: #{tpu_custom_call.1} parent=67 // pred_region
          %529 = dma.done [#allocation15], 4096
        $region104: #{tpu_custom_call.1} parent=67 // pred_fallthru
          _
        // Predicated region
        $region105: #{tpu_custom_call.1} parent=67 // pred_check
          %p530 = pneg %p245
        $region106: #{tpu_custom_call.1} parent=67 // pred_check_branch
          %532 = sbr.rel (%p530) target = $region108
        $region107: #{tpu_custom_call.1} parent=67 // pred_region
          %533 = dma.done [#allocation18], 32
        $region108: #{tpu_custom_call.1} parent=67 // pred_fallthru
          _
        // Predicated region
        $region109: #{tpu_custom_call.1} parent=67 // pred_check
          %p534 = pneg %p266
        $region110: #{tpu_custom_call.1} parent=67 // pred_check_branch
          %536 = sbr.rel (%p534) target = $region112
        $region111: #{tpu_custom_call.1} parent=67 // pred_region
          %537 = dma.done [#allocation18], 4096
        $region112: #{tpu_custom_call.1} parent=67 // pred_fallthru
          _
        // Predicated region
        $region113: #{tpu_custom_call.1} parent=67 // pred_check
          %p538 = pneg %p287
        $region114: #{tpu_custom_call.1} parent=67 // pred_check_branch
          %540 = sbr.rel (%p538) target = $region116
        $region115: #{tpu_custom_call.1} parent=67 // pred_region
          %541 = dma.done [#allocation21], 16
        $region116: #{tpu_custom_call.1} parent=67 // pred_fallthru
          _
        %s542 = sand.u32 %s43, 1
        %s543 = scalar_lea.sflag [#allocation3], %s542
        %s544 = sand.u32 %s43, 1
        %s545 = smul.addr %s544, 32
        %s546 = scalar_lea.vmem [#allocation2], %s545
        %p547 = pneg %p56
        %p548 = pneg %p53
        %p549 = pneg %p77
        %p550 = pneg %p74
        %p551 = pneg %p98
        %p552 = pneg %p95
        %p553 = pneg %p119
        %p554 = pneg %p116
        %p555 = pneg %p140
        %p556 = pneg %p137
        %p557 = pneg %p161
        %p558 = pneg %p158
        %p559 = pneg %p182
        %p560 = pneg %p179
        %p561 = pneg %p203
        %p562 = pneg %p200
        %p563 = pneg %p224
        %p564 = pneg %p221
        %p565 = pneg %p245
        %p566 = pneg %p242
        %p567 = pneg %p266
        %p568 = pneg %p263
        %p569 = pneg %p287
        %p570 = pneg %p284
        %p571 = pneg %p313
        %p572 = pneg %p310
        %s573 = sand.u32 %s300, 1
        %s574 = scalar_lea.sflag [#allocation4], %s573
        %s575 = sand.u32 %s300, 1
        %s576 = smul.addr %s575, 32
        %s577 = scalar_lea.vmem [#allocation22], %s576
        %s578 = smul.u32 4, %s35
        %s579 = smul.u32 4, %s35
        %v580 = vld [vmem:[%s493] sm:$0xff]
        %v581 = vld [vmem:[%s493 + $0x8] sm:$0xff]
        %v582 = vld [vmem:[%s493 + $0x10] sm:$0xff]
        %v583 = vld [vmem:[%s493 + $0x18] sm:$0xff]
        %v584 = vld [vmem:[#allocation5] sm:$0xff]
        %v585 = vld [vmem:[#allocation7] sm:$0x1]
        %v586 = vld [vmem:[#allocation8] sm:$0x1]
        %v587 = vld [vmem:[#allocation13] sm:$0x1]
        %v588 = vld [vmem:[#allocation14] sm:$0x1]
        %v589 = vld [vmem:[#allocation17] sm:$0x3]
        %v590 = vld [vmem:[#allocation20] sm:$0x1]
        %591 = vadd.xlane.f32.xlu0 %v580
        %v592 = vpop.xlane.xlu0 %591
        %593 = vadd.xlane.f32.xlu0 %v581
        %v594 = vpop.xlane.xlu0 %593
        %595 = vadd.xlane.f32.xlu0 %v582
        %v596 = vpop.xlane.xlu0 %595
        %597 = vadd.xlane.f32.xlu0 %v583
        %v598 = vpop.xlane.xlu0 %597
        %v599 = vrcp.pop 128.0
        %v600 = vmul.f32 %v592, %v599
        %v601 = vmul.f32 %v594, %v599
        %v602 = vmul.f32 %v596, %v599
        %v603 = vmul.f32 %v598, %v599
        %v604 = vsub.f32 %v580, %v600
        %v605 = vsub.f32 %v581, %v601
        %v606 = vsub.f32 %v582, %v602
        %v607 = vsub.f32 %v583, %v603
        %v608 = vmul.f32 %v604, %v604
        %v609 = vmul.f32 %v605, %v605
        %v610 = vmul.f32 %v606, %v606
        %v611 = vmul.f32 %v607, %v607
        %612 = vadd.xlane.f32.xlu0 %v608
        %v613 = vpop.xlane.xlu0 %612
        %614 = vadd.xlane.f32.xlu0 %v609
        %v615 = vpop.xlane.xlu0 %614
        %616 = vadd.xlane.f32.xlu0 %v610
        %v617 = vpop.xlane.xlu0 %616
        %618 = vadd.xlane.f32.xlu0 %v611
        %v619 = vpop.xlane.xlu0 %618
        %v620 = vmul.f32 %v613, %v599
        %v621 = vmul.f32 %v615, %v599
        %v622 = vmul.f32 %v617, %v599
        %v623 = vmul.f32 %v619, %v599
        %v624 = vadd.f32 %v620, 1e-05
        %v625 = vadd.f32 %v621, 1e-05
        %v626 = vadd.f32 %v622, 1e-05
        %v627 = vadd.f32 %v623, 1e-05
        %v628 = vrsqrt.pop %v624
        %v629 = vrsqrt.pop %v625
        %v630 = vrsqrt.pop %v626
        %v631 = vrsqrt.pop %v627
        %v632 = vmul.f32 %v604, %v628
        %v633 = vmul.f32 %v605, %v629
        %v634 = vmul.f32 %v606, %v630
        %v635 = vmul.f32 %v607, %v631
        %v637 = vlaneseq
        %v638 = vshrl.u32 %v637, 7
        %v639 = vsub.s32 0, %v638
        %v640 = vrot.slane %v585, %v639
        %v642 = vmul.f32 %v632, %v640
        %v643 = vmul.f32 %v633, %v640
        %v644 = vmul.f32 %v634, %v640
        %v645 = vmul.f32 %v635, %v640
        %v647 = vlaneseq
        %v648 = vshrl.u32 %v647, 7
        %v649 = vsub.s32 0, %v648
        %v650 = vrot.slane %v586, %v649
        %v652 = vadd.f32 %v642, %v650
        %v653 = vadd.f32 %v643, %v650
        %v654 = vadd.f32 %v644, %v650
        %v655 = vadd.f32 %v645, %v650
        %v656 = vld [vmem:[#allocation10] sm:$0xff]
        %v657 = vld [vmem:[#allocation10 + $0x8] sm:$0xff]
        %v658 = vld [vmem:[#allocation10 + $0x10] sm:$0xff]
        %v659 = vld [vmem:[#allocation10 + $0x18] sm:$0xff]
        %v660 = vld [vmem:[#allocation10 + $0x20] sm:$0xff]
        %v661 = vld [vmem:[#allocation10 + $0x28] sm:$0xff]
        %v662 = vld [vmem:[#allocation10 + $0x30] sm:$0xff]
        %v663 = vld [vmem:[#allocation10 + $0x38] sm:$0xff]
        %v664 = vld [vmem:[#allocation10 + $0x40] sm:$0xff]
        %v665 = vld [vmem:[#allocation10 + $0x48] sm:$0xff]
        %v666 = vld [vmem:[#allocation10 + $0x50] sm:$0xff]
        %v667 = vld [vmem:[#allocation10 + $0x58] sm:$0xff]
        %v668 = vld [vmem:[#allocation10 + $0x60] sm:$0xff]
        %v669 = vld [vmem:[#allocation10 + $0x68] sm:$0xff]
        %v670 = vld [vmem:[#allocation10 + $0x70] sm:$0xff]
        %v671 = vld [vmem:[#allocation10 + $0x78] sm:$0xff]
        %v672 = vld [vmem:[#allocation10 + $0x80] sm:$0xff]
        %v673 = vld [vmem:[#allocation10 + $0x88] sm:$0xff]
        %v674 = vld [vmem:[#allocation10 + $0x90] sm:$0xff]
        %v675 = vld [vmem:[#allocation10 + $0x98] sm:$0xff]
        %v676 = vld [vmem:[#allocation10 + $0xa0] sm:$0xff]
        %v677 = vld [vmem:[#allocation10 + $0xa8] sm:$0xff]
        %v678 = vld [vmem:[#allocation10 + $0xb0] sm:$0xff]
        %v679 = vld [vmem:[#allocation10 + $0xb8] sm:$0xff]
        %v680 = vld [vmem:[#allocation10 + $0xc0] sm:$0xff]
        %v681 = vld [vmem:[#allocation10 + $0xc8] sm:$0xff]
        %v682 = vld [vmem:[#allocation10 + $0xd0] sm:$0xff]
        %v683 = vld [vmem:[#allocation10 + $0xd8] sm:$0xff]
        %v684 = vld [vmem:[#allocation10 + $0xe0] sm:$0xff]
        %v685 = vld [vmem:[#allocation10 + $0xe8] sm:$0xff]
        %v686 = vld [vmem:[#allocation10 + $0xf0] sm:$0xff]
        %v687 = vld [vmem:[#allocation10 + $0xf8] sm:$0xff]
        %v688 = vld [vmem:[#allocation10 + $0x100] sm:$0xff]
        %v689 = vld [vmem:[#allocation10 + $0x108] sm:$0xff]
        %v690 = vld [vmem:[#allocation10 + $0x110] sm:$0xff]
        %v691 = vld [vmem:[#allocation10 + $0x118] sm:$0xff]
        %v692 = vld [vmem:[#allocation10 + $0x120] sm:$0xff]
        %v693 = vld [vmem:[#allocation10 + $0x128] sm:$0xff]
        %v694 = vld [vmem:[#allocation10 + $0x130] sm:$0xff]
        %v695 = vld [vmem:[#allocation10 + $0x138] sm:$0xff]
        %v696 = vld [vmem:[#allocation10 + $0x140] sm:$0xff]
        %v697 = vld [vmem:[#allocation10 + $0x148] sm:$0xff]
        %v698 = vld [vmem:[#allocation10 + $0x150] sm:$0xff]
        %v699 = vld [vmem:[#allocation10 + $0x158] sm:$0xff]
        %v700 = vld [vmem:[#allocation10 + $0x160] sm:$0xff]
        %v701 = vld [vmem:[#allocation10 + $0x168] sm:$0xff]
        %v702 = vld [vmem:[#allocation10 + $0x170] sm:$0xff]
        %v703 = vld [vmem:[#allocation10 + $0x178] sm:$0xff]
        %704 = vmatprep.subr.mxu0 %v657
        %705 = vmatpush1.msra.mxu0 %v656
        %706 = vmatprep.subr.mxu0 %v660
        %707 = vmatpush1.msra.mxu0 %v659
        %708 = vmatprep.subr.mxu0 %v663
        %709 = vmatpush1.msra.mxu0 %v662
        %710 = vmatprep.subr.mxu0 %v666
        %711 = vmatpush1.msra.mxu0 %v665
        %712 = vmatprep.subr.mxu0 %v669
        %713 = vmatpush1.msra.mxu0 %v668
        %714 = vmatprep.subr.mxu0 %v672
        %715 = vmatpush1.msra.mxu0 %v671
        %716 = vmatprep.subr.mxu0 %v675
        %717 = vmatpush1.msra.mxu0 %v674
        %718 = vmatprep.subr.mxu0 %v678
        %719 = vmatpush1.msra.mxu0 %v677
        %720 = vmatprep.subr.mxu0 %v681
        %721 = vmatpush1.msra.mxu0 %v680
        %722 = vmatprep.subr.mxu0 %v684
        %723 = vmatpush1.msra.mxu0 %v683
        %724 = vmatprep.subr.mxu0 %v687
        %725 = vmatpush1.msra.mxu0 %v686
        %726 = vmatprep.subr.mxu0 %v690
        %727 = vmatpush1.msra.mxu0 %v689
        %728 = vmatprep.subr.mxu0 %v693
        %729 = vmatpush1.msra.mxu0 %v692
        %730 = vmatprep.subr.mxu0 %v696
        %731 = vmatpush1.msra.mxu0 %v695
        %732 = vmatprep.subr.mxu0 %v699
        %733 = vmatpush1.msra.mxu0 %v698
        %734 = vmatprep.subr.mxu0 %v702
        %735 = vmatpush1.msra.mxu0 %v701
        %736 = vmatprep.subr.mxu0 0.0
        %737 = vmatpush1.msra.mxu0 0.0
        %738 = vmatprep.subr.mxu0 0.0
        %739 = vmatpush1.msra.mxu0 0.0
        %740 = vmatprep.subr.mxu0 0.0
        %741 = vmatpush1.msra.mxu0 0.0
        %742 = vmatprep.subr.mxu0 0.0
        %743 = vmatpush1.msra.mxu0 0.0
        %744 = vmatprep.subr.mxu0 0.0
        %745 = vmatpush1.msra.mxu0 0.0
        %746 = vmatprep.subr.mxu0 0.0
        %747 = vmatpush1.msra.mxu0 0.0
        %748 = vmatprep.subr.mxu0 0.0
        %749 = vmatpush1.msra.mxu0 0.0
        %750 = vmatprep.subr.mxu0 0.0
        %751 = vmatpush1.msra.mxu0 0.0
        %752 = vmatprep.subr.mxu0 0.0
        %753 = vmatpush1.msra.mxu0 0.0
        %754 = vmatprep.subr.mxu0 0.0
        %755 = vmatpush1.msra.mxu0 0.0
        %756 = vmatprep.subr.mxu0 0.0
        %757 = vmatpush1.msra.mxu0 0.0
        %758 = vmatprep.subr.mxu0 0.0
        %759 = vmatpush1.msra.mxu0 0.0
        %760 = vmatprep.subr.mxu0 0.0
        %761 = vmatpush1.msra.mxu0 0.0
        %762 = vmatprep.subr.mxu0 0.0
        %763 = vmatpush1.msra.mxu0 0.0
        %764 = vmatprep.subr.mxu0 0.0
        %765 = vmatpush1.msra.mxu0 0.0
        %766 = vmatprep.subr.mxu0 0.0
        %767 = vmatpush1.msra.mxu0 0.0
        %768 = vmatprep.mubr.f32.mxu0 0.0
        %769 = vmatmul.mubr.f32.gmra.mrb[0].mxu0 %v652
        %v770 = vpop.f32.mrb[0].mxu0
        %v771 = vadd.f32 0.0, %v770
        %v772 = vpop.f32.mrb[0].mxu0
        %v773 = vadd.f32 0.0, %v772
        %774 = vmatprep.mubr.f32.mxu0 0.0
        %775 = vmatmul.mubr.f32.gmra.mrb[0].mxu0 %v653
        %v776 = vpop.f32.mrb[0].mxu0
        %v777 = vadd.f32 0.0, %v776
        %v778 = vpop.f32.mrb[0].mxu0
        %v779 = vadd.f32 0.0, %v778
        %780 = vmatprep.mubr.f32.mxu0 0.0
        %781 = vmatmul.mubr.f32.gmra.mrb[0].mxu0 %v654
        %v782 = vpop.f32.mrb[0].mxu0
        %v783 = vadd.f32 0.0, %v782
        %v784 = vpop.f32.mrb[0].mxu0
        %v785 = vadd.f32 0.0, %v784
        %786 = vmatprep.mubr.f32.mxu0 0.0
        %787 = vmatmul.mubr.f32.gmra.mrb[0].mxu0 %v655
        %v788 = vpop.f32.mrb[0].mxu0
        %v789 = vadd.f32 0.0, %v788
        %v790 = vpop.f32.mrb[0].mxu0
        %v791 = vadd.f32 0.0, %v790
        %792 = vdwg.mxu0
        %793 = vmatprep.subr.mxu0 0.0
        %794 = vmatpush1.msra.mxu0 %v658
        %795 = vmatprep.subr.mxu0 0.0
        %796 = vmatpush1.msra.mxu0 %v661
        %797 = vmatprep.subr.mxu0 0.0
        %798 = vmatpush1.msra.mxu0 %v664
        %799 = vmatprep.subr.mxu0 0.0
        %800 = vmatpush1.msra.mxu0 %v667
        %801 = vmatprep.subr.mxu0 0.0
        %802 = vmatpush1.msra.mxu0 %v670
        %803 = vmatprep.subr.mxu0 0.0
        %804 = vmatpush1.msra.mxu0 %v673
        %805 = vmatprep.subr.mxu0 0.0
        %806 = vmatpush1.msra.mxu0 %v676
        %807 = vmatprep.subr.mxu0 0.0
        %808 = vmatpush1.msra.mxu0 %v679
        %809 = vmatprep.subr.mxu0 0.0
        %810 = vmatpush1.msra.mxu0 %v682
        %811 = vmatprep.subr.mxu0 0.0
        %812 = vmatpush1.msra.mxu0 %v685
        %813 = vmatprep.subr.mxu0 0.0
        %814 = vmatpush1.msra.mxu0 %v688
        %815 = vmatprep.subr.mxu0 0.0
        %816 = vmatpush1.msra.mxu0 %v691
        %817 = vmatprep.subr.mxu0 0.0
        %818 = vmatpush1.msra.mxu0 %v694
        %819 = vmatprep.subr.mxu0 0.0
        %820 = vmatpush1.msra.mxu0 %v697
        %821 = vmatprep.subr.mxu0 0.0
        %822 = vmatpush1.msra.mxu0 %v700
        %823 = vmatprep.subr.mxu0 0.0
        %824 = vmatpush1.msra.mxu0 %v703
        %825 = vmatprep.subr.mxu0 0.0
        %826 = vmatpush1.msra.mxu0 0.0
        %827 = vmatprep.subr.mxu0 0.0
        %828 = vmatpush1.msra.mxu0 0.0
        %829 = vmatprep.subr.mxu0 0.0
        %830 = vmatpush1.msra.mxu0 0.0
        %831 = vmatprep.subr.mxu0 0.0
        %832 = vmatpush1.msra.mxu0 0.0
        %833 = vmatprep.subr.mxu0 0.0
        %834 = vmatpush1.msra.mxu0 0.0
        %835 = vmatprep.subr.mxu0 0.0
        %836 = vmatpush1.msra.mxu0 0.0
        %837 = vmatprep.subr.mxu0 0.0
        %838 = vmatpush1.msra.mxu0 0.0
        %839 = vmatprep.subr.mxu0 0.0
        %840 = vmatpush1.msra.mxu0 0.0
        %841 = vmatprep.subr.mxu0 0.0
        %842 = vmatpush1.msra.mxu0 0.0
        %843 = vmatprep.subr.mxu0 0.0
        %844 = vmatpush1.msra.mxu0 0.0
        %845 = vmatprep.subr.mxu0 0.0
        %846 = vmatpush1.msra.mxu0 0.0
        %847 = vmatprep.subr.mxu0 0.0
        %848 = vmatpush1.msra.mxu0 0.0
        %849 = vmatprep.subr.mxu0 0.0
        %850 = vmatpush1.msra.mxu0 0.0
        %851 = vmatprep.subr.mxu0 0.0
        %852 = vmatpush1.msra.mxu0 0.0
        %853 = vmatprep.subr.mxu0 0.0
        %854 = vmatpush1.msra.mxu0 0.0
        %855 = vmatprep.subr.mxu0 0.0
        %856 = vmatpush1.msra.mxu0 0.0
        %857 = vmatprep.mubr.f32.mxu0 0.0
        %858 = vmatmul.mubr.f32.gmra.mrb[0].mxu0 %v652
        %v859 = vpop.f32.mrb[0].mxu0
        %v860 = vadd.f32 0.0, %v859
        %v861 = vpop.f32.mrb[0].mxu0
        %862 = vmatprep.mubr.f32.mxu0 0.0
        %863 = vmatmul.mubr.f32.gmra.mrb[0].mxu0 %v653
        %v864 = vpop.f32.mrb[0].mxu0
        %v865 = vadd.f32 0.0, %v864
        %v866 = vpop.f32.mrb[0].mxu0
        %867 = vmatprep.mubr.f32.mxu0 0.0
        %868 = vmatmul.mubr.f32.gmra.mrb[0].mxu0 %v654
        %v869 = vpop.f32.mrb[0].mxu0
        %v870 = vadd.f32 0.0, %v869
        %v871 = vpop.f32.mrb[0].mxu0
        %872 = vmatprep.mubr.f32.mxu0 0.0
        %873 = vmatmul.mubr.f32.gmra.mrb[0].mxu0 %v655
        %v874 = vpop.f32.mrb[0].mxu0
        %v875 = vadd.f32 0.0, %v874
        %v876 = vpop.f32.mrb[0].mxu0
        %877 = vdwg.mxu0
        %v878 = vmul.f32 %v771, 0.25
        %v879 = vmul.f32 %v777, 0.25
        %v880 = vmul.f32 %v783, 0.25
        %v881 = vmul.f32 %v789, 0.25
        %v886 = vcombine.high %v878, %v878
        %v888 = vunpack.c.l.s4 1966171168
        %v889 = vunpack.c.0.s8 %v888
        %v890 = vlaneseq
        %v891 = vshrl.u32 %v890, 7
        %v892 = vsub.s32 %v889, %v891
        %v893 = vrot.slane %v878, %v892
        %v895 = vunpack.c.l.s4 1966171168
        %v896 = vunpack.c.0.s8 %v895
        %v897 = vlaneseq
        %v898 = vshrl.u32 %v897, 7
        %v899 = vsub.s32 %v896, %v898
        %v900 = vrot.slane %v886, %v899
        %v901 = vcombine.high %v893, %v893
        %v902 = vcombine.high %v900, %v900
        %v904 = vunpack.c.l.s4 1966171168
        %v905 = vunpack.c.0.s8 %v904
        %v906 = vlaneseq
        %v907 = vshrl.u32 %v906, 7
        %v908 = vsub.s32 %v905, %v907
        %v909 = vrot.slane %v893, %v908
        %v911 = vunpack.c.l.s4 1966171168
        %v912 = vunpack.c.0.s8 %v911
        %v913 = vlaneseq
        %v914 = vshrl.u32 %v913, 7
        %v915 = vsub.s32 %v912, %v914
        %v916 = vrot.slane %v900, %v915
        %v918 = vunpack.c.l.s4 1966171168
        %v919 = vunpack.c.0.s8 %v918
        %v920 = vlaneseq
        %v921 = vshrl.u32 %v920, 7
        %v922 = vsub.s32 %v919, %v921
        %v923 = vrot.slane %v901, %v922
        %v925 = vunpack.c.l.s4 1966171168
        %v926 = vunpack.c.0.s8 %v925
        %v927 = vlaneseq
        %v928 = vshrl.u32 %v927, 7
        %v929 = vsub.s32 %v926, %v928
        %v930 = vrot.slane %v902, %v929
        %v931 = vcombine.high %v909, %v909
        %v932 = vcombine.high %v916, %v916
        %v933 = vcombine.high %v923, %v923
        %v934 = vcombine.high %v930, %v930
        %v935 = vcombine.high %v879, %v879
        %v937 = vunpack.c.l.s4 1966171168
        %v938 = vunpack.c.0.s8 %v937
        %v939 = vlaneseq
        %v940 = vshrl.u32 %v939, 7
        %v941 = vsub.s32 %v938, %v940
        %v942 = vrot.slane %v879, %v941
        %v944 = vunpack.c.l.s4 1966171168
        %v945 = vunpack.c.0.s8 %v944
        %v946 = vlaneseq
        %v947 = vshrl.u32 %v946, 7
        %v948 = vsub.s32 %v945, %v947
        %v949 = vrot.slane %v935, %v948
        %v950 = vcombine.high %v942, %v942
        %v951 = vcombine.high %v949, %v949
        %v953 = vunpack.c.l.s4 1966171168
        %v954 = vunpack.c.0.s8 %v953
        %v955 = vlaneseq
        %v956 = vshrl.u32 %v955, 7
        %v957 = vsub.s32 %v954, %v956
        %v958 = vrot.slane %v942, %v957
        %v960 = vunpack.c.l.s4 1966171168
        %v961 = vunpack.c.0.s8 %v960
        %v962 = vlaneseq
        %v963 = vshrl.u32 %v962, 7
        %v964 = vsub.s32 %v961, %v963
        %v965 = vrot.slane %v949, %v964
        %v967 = vunpack.c.l.s4 1966171168
        %v968 = vunpack.c.0.s8 %v967
        %v969 = vlaneseq
        %v970 = vshrl.u32 %v969, 7
        %v971 = vsub.s32 %v968, %v970
        %v972 = vrot.slane %v950, %v971
        %v974 = vunpack.c.l.s4 1966171168
        %v975 = vunpack.c.0.s8 %v974
        %v976 = vlaneseq
        %v977 = vshrl.u32 %v976, 7
        %v978 = vsub.s32 %v975, %v977
        %v979 = vrot.slane %v951, %v978
        %v980 = vcombine.high %v958, %v958
        %v981 = vcombine.high %v965, %v965
        %v982 = vcombine.high %v972, %v972
        %v983 = vcombine.high %v979, %v979
        %v984 = vcombine.high %v880, %v880
        %v986 = vunpack.c.l.s4 1966171168
        %v987 = vunpack.c.0.s8 %v986
        %v988 = vlaneseq
        %v989 = vshrl.u32 %v988, 7
        %v990 = vsub.s32 %v987, %v989
        %v991 = vrot.slane %v880, %v990
        %v993 = vunpack.c.l.s4 1966171168
        %v994 = vunpack.c.0.s8 %v993
        %v995 = vlaneseq
        %v996 = vshrl.u32 %v995, 7
        %v997 = vsub.s32 %v994, %v996
        %v998 = vrot.slane %v984, %v997
        %v999 = vcombine.high %v991, %v991
        %v1000 = vcombine.high %v998, %v998
        %v1002 = vunpack.c.l.s4 1966171168
        %v1003 = vunpack.c.0.s8 %v1002
        %v1004 = vlaneseq
        %v1005 = vshrl.u32 %v1004, 7
        %v1006 = vsub.s32 %v1003, %v1005
        %v1007 = vrot.slane %v991, %v1006
        %v1009 = vunpack.c.l.s4 1966171168
        %v1010 = vunpack.c.0.s8 %v1009
        %v1011 = vlaneseq
        %v1012 = vshrl.u32 %v1011, 7
        %v1013 = vsub.s32 %v1010, %v1012
        %v1014 = vrot.slane %v998, %v1013
        %v1016 = vunpack.c.l.s4 1966171168
        %v1017 = vunpack.c.0.s8 %v1016
        %v1018 = vlaneseq
        %v1019 = vshrl.u32 %v1018, 7
        %v1020 = vsub.s32 %v1017, %v1019
        %v1021 = vrot.slane %v999, %v1020
        %v1023 = vunpack.c.l.s4 1966171168
        %v1024 = vunpack.c.0.s8 %v1023
        %v1025 = vlaneseq
        %v1026 = vshrl.u32 %v1025, 7
        %v1027 = vsub.s32 %v1024, %v1026
        %v1028 = vrot.slane %v1000, %v1027
        %v1029 = vcombine.high %v1007, %v1007
        %v1030 = vcombine.high %v1014, %v1014
        %v1031 = vcombine.high %v1021, %v1021
        %v1032 = vcombine.high %v1028, %v1028
        %v1033 = vcombine.high %v881, %v881
        %v1035 = vunpack.c.l.s4 1966171168
        %v1036 = vunpack.c.0.s8 %v1035
        %v1037 = vlaneseq
        %v1038 = vshrl.u32 %v1037, 7
        %v1039 = vsub.s32 %v1036, %v1038
        %v1040 = vrot.slane %v881, %v1039
        %v1042 = vunpack.c.l.s4 1966171168
        %v1043 = vunpack.c.0.s8 %v1042
        %v1044 = vlaneseq
        %v1045 = vshrl.u32 %v1044, 7
        %v1046 = vsub.s32 %v1043, %v1045
        %v1047 = vrot.slane %v1033, %v1046
        %v1048 = vcombine.high %v1040, %v1040
        %v1049 = vcombine.high %v1047, %v1047
        %v1051 = vunpack.c.l.s4 1966171168
        %v1052 = vunpack.c.0.s8 %v1051
        %v1053 = vlaneseq
        %v1054 = vshrl.u32 %v1053, 7
        %v1055 = vsub.s32 %v1052, %v1054
        %v1056 = vrot.slane %v1040, %v1055
        %v1058 = vunpack.c.l.s4 1966171168
        %v1059 = vunpack.c.0.s8 %v1058
        %v1060 = vlaneseq
        %v1061 = vshrl.u32 %v1060, 7
        %v1062 = vsub.s32 %v1059, %v1061
        %v1063 = vrot.slane %v1047, %v1062
        %v1065 = vunpack.c.l.s4 1966171168
        %v1066 = vunpack.c.0.s8 %v1065
        %v1067 = vlaneseq
        %v1068 = vshrl.u32 %v1067, 7
        %v1069 = vsub.s32 %v1066, %v1068
        %v1070 = vrot.slane %v1048, %v1069
        %v1072 = vunpack.c.l.s4 1966171168
        %v1073 = vunpack.c.0.s8 %v1072
        %v1074 = vlaneseq
        %v1075 = vshrl.u32 %v1074, 7
        %v1076 = vsub.s32 %v1073, %v1075
        %v1077 = vrot.slane %v1049, %v1076
        %v1078 = vcombine.high %v1056, %v1056
        %v1079 = vcombine.high %v1063, %v1063
        %v1080 = vcombine.high %v1070, %v1070
        %v1081 = vcombine.high %v1077, %v1077
        %v1082 = vlaneseq
        %v1083 = vshrl.u32 %v1082, 7
        %v1084 = vsub.s32 0, %v1083
        %v1085 = vrot.slane %v909, %v1084
        %v1086 = vlaneseq
        %v1087 = vshrl.u32 %v1086, 7
        %v1088 = vsub.s32 0, %v1087
        %v1089 = vrot.slane %v923, %v1088
        %v1090 = vlaneseq
        %v1091 = vshrl.u32 %v1090, 7
        %v1092 = vsub.s32 0, %v1091
        %v1093 = vrot.slane %v931, %v1092
        %v1094 = vlaneseq
        %v1095 = vshrl.u32 %v1094, 7
        %v1096 = vsub.s32 0, %v1095
        %v1097 = vrot.slane %v933, %v1096
        %v1098 = vlaneseq
        %v1099 = vshrl.u32 %v1098, 7
        %v1100 = vsub.s32 0, %v1099
        %v1101 = vrot.slane %v916, %v1100
        %v1102 = vlaneseq
        %v1103 = vshrl.u32 %v1102, 7
        %v1104 = vsub.s32 0, %v1103
        %v1105 = vrot.slane %v930, %v1104
        %v1106 = vlaneseq
        %v1107 = vshrl.u32 %v1106, 7
        %v1108 = vsub.s32 0, %v1107
        %v1109 = vrot.slane %v932, %v1108
        %v1110 = vlaneseq
        %v1111 = vshrl.u32 %v1110, 7
        %v1112 = vsub.s32 0, %v1111
        %v1113 = vrot.slane %v934, %v1112
        %v1114 = vlaneseq
        %v1115 = vshrl.u32 %v1114, 7
        %v1116 = vsub.s32 0, %v1115
        %v1117 = vrot.slane %v958, %v1116
        %v1118 = vlaneseq
        %v1119 = vshrl.u32 %v1118, 7
        %v1120 = vsub.s32 0, %v1119
        %v1121 = vrot.slane %v972, %v1120
        %v1122 = vlaneseq
        %v1123 = vshrl.u32 %v1122, 7
        %v1124 = vsub.s32 0, %v1123
        %v1125 = vrot.slane %v980, %v1124
        %v1126 = vlaneseq
        %v1127 = vshrl.u32 %v1126, 7
        %v1128 = vsub.s32 0, %v1127
        %v1129 = vrot.slane %v982, %v1128
        %v1130 = vlaneseq
        %v1131 = vshrl.u32 %v1130, 7
        %v1132 = vsub.s32 0, %v1131
        %v1133 = vrot.slane %v965, %v1132
        %v1134 = vlaneseq
        %v1135 = vshrl.u32 %v1134, 7
        %v1136 = vsub.s32 0, %v1135
        %v1137 = vrot.slane %v979, %v1136
        %v1138 = vlaneseq
        %v1139 = vshrl.u32 %v1138, 7
        %v1140 = vsub.s32 0, %v1139
        %v1141 = vrot.slane %v981, %v1140
        %v1142 = vlaneseq
        %v1143 = vshrl.u32 %v1142, 7
        %v1144 = vsub.s32 0, %v1143
        %v1145 = vrot.slane %v983, %v1144
        %v1146 = vlaneseq
        %v1147 = vshrl.u32 %v1146, 7
        %v1148 = vsub.s32 0, %v1147
        %v1149 = vrot.slane %v1007, %v1148
        %v1150 = vlaneseq
        %v1151 = vshrl.u32 %v1150, 7
        %v1152 = vsub.s32 0, %v1151
        %v1153 = vrot.slane %v1021, %v1152
        %v1154 = vlaneseq
        %v1155 = vshrl.u32 %v1154, 7
        %v1156 = vsub.s32 0, %v1155
        %v1157 = vrot.slane %v1029, %v1156
        %v1158 = vlaneseq
        %v1159 = vshrl.u32 %v1158, 7
        %v1160 = vsub.s32 0, %v1159
        %v1161 = vrot.slane %v1031, %v1160
        %v1162 = vlaneseq
        %v1163 = vshrl.u32 %v1162, 7
        %v1164 = vsub.s32 0, %v1163
        %v1165 = vrot.slane %v1014, %v1164
        %v1166 = vlaneseq
        %v1167 = vshrl.u32 %v1166, 7
        %v1168 = vsub.s32 0, %v1167
        %v1169 = vrot.slane %v1028, %v1168
        %v1170 = vlaneseq
        %v1171 = vshrl.u32 %v1170, 7
        %v1172 = vsub.s32 0, %v1171
        %v1173 = vrot.slane %v1030, %v1172
        %v1174 = vlaneseq
        %v1175 = vshrl.u32 %v1174, 7
        %v1176 = vsub.s32 0, %v1175
        %v1177 = vrot.slane %v1032, %v1176
        %v1178 = vlaneseq
        %v1179 = vshrl.u32 %v1178, 7
        %v1180 = vsub.s32 0, %v1179
        %v1181 = vrot.slane %v1056, %v1180
        %v1182 = vlaneseq
        %v1183 = vshrl.u32 %v1182, 7
        %v1184 = vsub.s32 0, %v1183
        %v1185 = vrot.slane %v1070, %v1184
        %v1186 = vlaneseq
        %v1187 = vshrl.u32 %v1186, 7
        %v1188 = vsub.s32 0, %v1187
        %v1189 = vrot.slane %v1078, %v1188
        %v1190 = vlaneseq
        %v1191 = vshrl.u32 %v1190, 7
        %v1192 = vsub.s32 0, %v1191
        %v1193 = vrot.slane %v1080, %v1192
        %v1194 = vlaneseq
        %v1195 = vshrl.u32 %v1194, 7
        %v1196 = vsub.s32 0, %v1195
        %v1197 = vrot.slane %v1063, %v1196
        %v1198 = vlaneseq
        %v1199 = vshrl.u32 %v1198, 7
        %v1200 = vsub.s32 0, %v1199
        %v1201 = vrot.slane %v1077, %v1200
        %v1202 = vlaneseq
        %v1203 = vshrl.u32 %v1202, 7
        %v1204 = vsub.s32 0, %v1203
        %v1205 = vrot.slane %v1079, %v1204
        %v1206 = vlaneseq
        %v1207 = vshrl.u32 %v1206, 7
        %v1208 = vsub.s32 0, %v1207
        %v1209 = vrot.slane %v1081, %v1208
        %v1242 = vmul.f32 %v1085, %v584
        %v1243 = vmul.f32 %v1089, %v584
        %v1244 = vmul.f32 %v1093, %v584
        %v1245 = vmul.f32 %v1097, %v584
        %v1246 = vmul.f32 %v1101, %v584
        %v1247 = vmul.f32 %v1105, %v584
        %v1248 = vmul.f32 %v1109, %v584
        %v1249 = vmul.f32 %v1113, %v584
        %v1250 = vmul.f32 %v1117, %v584
        %v1251 = vmul.f32 %v1121, %v584
        %v1252 = vmul.f32 %v1125, %v584
        %v1253 = vmul.f32 %v1129, %v584
        %v1254 = vmul.f32 %v1133, %v584
        %v1255 = vmul.f32 %v1137, %v584
        %v1256 = vmul.f32 %v1141, %v584
        %v1257 = vmul.f32 %v1145, %v584
        %v1258 = vmul.f32 %v1149, %v584
        %v1259 = vmul.f32 %v1153, %v584
        %v1260 = vmul.f32 %v1157, %v584
        %v1261 = vmul.f32 %v1161, %v584
        %v1262 = vmul.f32 %v1165, %v584
        %v1263 = vmul.f32 %v1169, %v584
        %v1264 = vmul.f32 %v1173, %v584
        %v1265 = vmul.f32 %v1177, %v584
        %v1266 = vmul.f32 %v1181, %v584
        %v1267 = vmul.f32 %v1185, %v584
        %v1268 = vmul.f32 %v1189, %v584
        %v1269 = vmul.f32 %v1193, %v584
        %v1270 = vmul.f32 %v1197, %v584
        %v1271 = vmul.f32 %v1201, %v584
        %v1272 = vmul.f32 %v1205, %v584
        %v1273 = vmul.f32 %v1209, %v584
        %1274 = vmatprep.subr.mxu0 0.0
        %1275 = vmatpush1.xpose.msra.mxu0 %v773
        %1276 = vmatprep.subr.mxu0 0.0
        %1277 = vmatpush1.xpose.msra.mxu0 %v779
        %1278 = vmatprep.subr.mxu0 0.0
        %1279 = vmatpush1.xpose.msra.mxu0 0.0
        %1280 = vmatprep.subr.mxu0 0.0
        %1281 = vmatpush1.xpose.msra.mxu0 0.0
        %1282 = vmatprep.subr.mxu0 0.0
        %1283 = vmatpush1.xpose.msra.mxu0 0.0
        %1284 = vmatprep.subr.mxu0 0.0
        %1285 = vmatpush1.xpose.msra.mxu0 0.0
        %1286 = vmatprep.subr.mxu0 0.0
        %1287 = vmatpush1.xpose.msra.mxu0 0.0
        %1288 = vmatprep.subr.mxu0 0.0
        %1289 = vmatpush1.xpose.msra.mxu0 0.0
        %1290 = vmatprep.subr.mxu0 0.0
        %1291 = vmatpush1.xpose.msra.mxu0 0.0
        %1292 = vmatprep.subr.mxu0 0.0
        %1293 = vmatpush1.xpose.msra.mxu0 0.0
        %1294 = vmatprep.subr.mxu0 0.0
        %1295 = vmatpush1.xpose.msra.mxu0 0.0
        %1296 = vmatprep.subr.mxu0 0.0
        %1297 = vmatpush1.xpose.msra.mxu0 0.0
        %1298 = vmatprep.subr.mxu0 0.0
        %1299 = vmatpush1.xpose.msra.mxu0 0.0
        %1300 = vmatprep.subr.mxu0 0.0
        %1301 = vmatpush1.xpose.msra.mxu0 0.0
        %1302 = vmatprep.subr.mxu0 0.0
        %1303 = vmatpush1.xpose.msra.mxu0 0.0
        %1304 = vmatprep.subr.mxu0 0.0
        %1305 = vmatpush1.xpose.msra.mxu0 0.0
        %1306 = vmatprep.subr.mxu0 0.0
        %1307 = vmatpush1.xpose.msra.mxu0 0.0
        %1308 = vmatprep.subr.mxu0 0.0
        %1309 = vmatpush1.xpose.msra.mxu0 0.0
        %1310 = vmatprep.subr.mxu0 0.0
        %1311 = vmatpush1.xpose.msra.mxu0 0.0
        %1312 = vmatprep.subr.mxu0 0.0
        %1313 = vmatpush1.xpose.msra.mxu0 0.0
        %1314 = vmatprep.subr.mxu0 0.0
        %1315 = vmatpush1.xpose.msra.mxu0 0.0
        %1316 = vmatprep.subr.mxu0 0.0
        %1317 = vmatpush1.xpose.msra.mxu0 0.0
        %1318 = vmatprep.subr.mxu0 0.0
        %1319 = vmatpush1.xpose.msra.mxu0 0.0
        %1320 = vmatprep.subr.mxu0 0.0
        %1321 = vmatpush1.xpose.msra.mxu0 0.0
        %1322 = vmatprep.subr.mxu0 0.0
        %1323 = vmatpush1.xpose.msra.mxu0 0.0
        %1324 = vmatprep.subr.mxu0 0.0
        %1325 = vmatpush1.xpose.msra.mxu0 0.0
        %1326 = vmatprep.subr.mxu0 0.0
        %1327 = vmatpush1.xpose.msra.mxu0 0.0
        %1328 = vmatprep.subr.mxu0 0.0
        %1329 = vmatpush1.xpose.msra.mxu0 0.0
        %1330 = vmatprep.subr.mxu0 0.0
        %1331 = vmatpush1.xpose.msra.mxu0 0.0
        %1332 = vmatprep.subr.mxu0 0.0
        %1333 = vmatpush1.xpose.msra.mxu0 0.0
        %1334 = vmatprep.subr.mxu0 0.0
        %1335 = vmatpush1.xpose.msra.mxu0 0.0
        %1336 = vmatprep.subr.mxu0 0.0
        %1337 = vmatpush1.xpose.msra.mxu0 0.0
        %1338 = vmatprep.mubr.f32.mxu0 0.0
        %1339 = vmatmul.mubr.f32.gmra.mrb[0].mxu0 %v1242
        %v1340 = vpop.f32.mrb[0].mxu0
        %v1341 = vadd.f32 0.0, %v1340
        %v1342 = vpop.f32.mrb[0].mxu0
        %1343 = vmatprep.mubr.f32.mxu0 0.0
        %1344 = vmatmul.mubr.f32.gmra.mrb[0].mxu0 %v1243
        %v1345 = vpop.f32.mrb[0].mxu0
        %v1346 = vadd.f32 0.0, %v1345
        %v1347 = vpop.f32.mrb[0].mxu0
        %1348 = vmatprep.mubr.f32.mxu0 0.0
        %1349 = vmatmul.mubr.f32.gmra.mrb[0].mxu0 %v1244
        %v1350 = vpop.f32.mrb[0].mxu0
        %v1351 = vadd.f32 0.0, %v1350
        %v1352 = vpop.f32.mrb[0].mxu0
        %1353 = vmatprep.mubr.f32.mxu0 0.0
        %1354 = vmatmul.mubr.f32.gmra.mrb[0].mxu0 %v1245
        %v1355 = vpop.f32.mrb[0].mxu0
        %v1356 = vadd.f32 0.0, %v1355
        %v1357 = vpop.f32.mrb[0].mxu0
        %1358 = vmatprep.mubr.f32.mxu0 0.0
        %1359 = vmatmul.mubr.f32.gmra.mrb[0].mxu0 %v1246
        %v1360 = vpop.f32.mrb[0].mxu0
        %v1361 = vadd.f32 0.0, %v1360
        %v1362 = vpop.f32.mrb[0].mxu0
        %1363 = vmatprep.mubr.f32.mxu0 0.0
        %1364 = vmatmul.mubr.f32.gmra.mrb[0].mxu0 %v1247
        %v1365 = vpop.f32.mrb[0].mxu0
        %v1366 = vadd.f32 0.0, %v1365
        %v1367 = vpop.f32.mrb[0].mxu0
        %1368 = vmatprep.mubr.f32.mxu0 0.0
        %1369 = vmatmul.mubr.f32.gmra.mrb[0].mxu0 %v1248
        %v1370 = vpop.f32.mrb[0].mxu0
        %v1371 = vadd.f32 0.0, %v1370
        %v1372 = vpop.f32.mrb[0].mxu0
        %1373 = vmatprep.mubr.f32.mxu0 0.0
        %1374 = vmatmul.mubr.f32.gmra.mrb[0].mxu0 %v1249
        %v1375 = vpop.f32.mrb[0].mxu0
        %v1376 = vadd.f32 0.0, %v1375
        %v1377 = vpop.f32.mrb[0].mxu0
        %1378 = vmatprep.mubr.f32.mxu0 0.0
        %1379 = vmatmul.mubr.f32.gmra.mrb[0].mxu0 %v1250
        %v1380 = vpop.f32.mrb[0].mxu0
        %v1381 = vadd.f32 0.0, %v1380
        %v1382 = vpop.f32.mrb[0].mxu0
        %1383 = vmatprep.mubr.f32.mxu0 0.0
        %1384 = vmatmul.mubr.f32.gmra.mrb[0].mxu0 %v1251
        %v1385 = vpop.f32.mrb[0].mxu0
        %v1386 = vadd.f32 0.0, %v1385
        %v1387 = vpop.f32.mrb[0].mxu0
        %1388 = vmatprep.mubr.f32.mxu0 0.0
        %1389 = vmatmul.mubr.f32.gmra.mrb[0].mxu0 %v1252
        %v1390 = vpop.f32.mrb[0].mxu0
        %v1391 = vadd.f32 0.0, %v1390
        %v1392 = vpop.f32.mrb[0].mxu0
        %1393 = vmatprep.mubr.f32.mxu0 0.0
        %1394 = vmatmul.mubr.f32.gmra.mrb[0].mxu0 %v1253
        %v1395 = vpop.f32.mrb[0].mxu0
        %v1396 = vadd.f32 0.0, %v1395
        %v1397 = vpop.f32.mrb[0].mxu0
        %1398 = vmatprep.mubr.f32.mxu0 0.0
        %1399 = vmatmul.mubr.f32.gmra.mrb[0].mxu0 %v1254
        %v1400 = vpop.f32.mrb[0].mxu0
        %v1401 = vadd.f32 0.0, %v1400
        %v1402 = vpop.f32.mrb[0].mxu0
        %1403 = vmatprep.mubr.f32.mxu0 0.0
        %1404 = vmatmul.mubr.f32.gmra.mrb[0].mxu0 %v1255
        %v1405 = vpop.f32.mrb[0].mxu0
        %v1406 = vadd.f32 0.0, %v1405
        %v1407 = vpop.f32.mrb[0].mxu0
        %1408 = vmatprep.mubr.f32.mxu0 0.0
        %1409 = vmatmul.mubr.f32.gmra.mrb[0].mxu0 %v1256
        %v1410 = vpop.f32.mrb[0].mxu0
        %v1411 = vadd.f32 0.0, %v1410
        %v1412 = vpop.f32.mrb[0].mxu0
        %1413 = vmatprep.mubr.f32.mxu0 0.0
        %1414 = vmatmul.mubr.f32.gmra.mrb[0].mxu0 %v1257
        %v1415 = vpop.f32.mrb[0].mxu0
        %v1416 = vadd.f32 0.0, %v1415
        %v1417 = vpop.f32.mrb[0].mxu0
        %1418 = vdwg.mxu0
        %1419 = vmatprep.subr.mxu0 0.0
        %1420 = vmatpush1.xpose.msra.mxu0 %v785
        %1421 = vmatprep.subr.mxu0 0.0
        %1422 = vmatpush1.xpose.msra.mxu0 %v791
        %1423 = vmatprep.subr.mxu0 0.0
        %1424 = vmatpush1.xpose.msra.mxu0 0.0
        %1425 = vmatprep.subr.mxu0 0.0
        %1426 = vmatpush1.xpose.msra.mxu0 0.0
        %1427 = vmatprep.subr.mxu0 0.0
        %1428 = vmatpush1.xpose.msra.mxu0 0.0
        %1429 = vmatprep.subr.mxu0 0.0
        %1430 = vmatpush1.xpose.msra.mxu0 0.0
        %1431 = vmatprep.subr.mxu0 0.0
        %1432 = vmatpush1.xpose.msra.mxu0 0.0
        %1433 = vmatprep.subr.mxu0 0.0
        %1434 = vmatpush1.xpose.msra.mxu0 0.0
        %1435 = vmatprep.subr.mxu0 0.0
        %1436 = vmatpush1.xpose.msra.mxu0 0.0
        %1437 = vmatprep.subr.mxu0 0.0
        %1438 = vmatpush1.xpose.msra.mxu0 0.0
        %1439 = vmatprep.subr.mxu0 0.0
        %1440 = vmatpush1.xpose.msra.mxu0 0.0
        %1441 = vmatprep.subr.mxu0 0.0
        %1442 = vmatpush1.xpose.msra.mxu0 0.0
        %1443 = vmatprep.subr.mxu0 0.0
        %1444 = vmatpush1.xpose.msra.mxu0 0.0
        %1445 = vmatprep.subr.mxu0 0.0
        %1446 = vmatpush1.xpose.msra.mxu0 0.0
        %1447 = vmatprep.subr.mxu0 0.0
        %1448 = vmatpush1.xpose.msra.mxu0 0.0
        %1449 = vmatprep.subr.mxu0 0.0
        %1450 = vmatpush1.xpose.msra.mxu0 0.0
        %1451 = vmatprep.subr.mxu0 0.0
        %1452 = vmatpush1.xpose.msra.mxu0 0.0
        %1453 = vmatprep.subr.mxu0 0.0
        %1454 = vmatpush1.xpose.msra.mxu0 0.0
        %1455 = vmatprep.subr.mxu0 0.0
        %1456 = vmatpush1.xpose.msra.mxu0 0.0
        %1457 = vmatprep.subr.mxu0 0.0
        %1458 = vmatpush1.xpose.msra.mxu0 0.0
        %1459 = vmatprep.subr.mxu0 0.0
        %1460 = vmatpush1.xpose.msra.mxu0 0.0
        %1461 = vmatprep.subr.mxu0 0.0
        %1462 = vmatpush1.xpose.msra.mxu0 0.0
        %1463 = vmatprep.subr.mxu0 0.0
        %1464 = vmatpush1.xpose.msra.mxu0 0.0
        %1465 = vmatprep.subr.mxu0 0.0
        %1466 = vmatpush1.xpose.msra.mxu0 0.0
        %1467 = vmatprep.subr.mxu0 0.0
        %1468 = vmatpush1.xpose.msra.mxu0 0.0
        %1469 = vmatprep.subr.mxu0 0.0
        %1470 = vmatpush1.xpose.msra.mxu0 0.0
        %1471 = vmatprep.subr.mxu0 0.0
        %1472 = vmatpush1.xpose.msra.mxu0 0.0
        %1473 = vmatprep.subr.mxu0 0.0
        %1474 = vmatpush1.xpose.msra.mxu0 0.0
        %1475 = vmatprep.subr.mxu0 0.0
        %1476 = vmatpush1.xpose.msra.mxu0 0.0
        %1477 = vmatprep.subr.mxu0 0.0
        %1478 = vmatpush1.xpose.msra.mxu0 0.0
        %1479 = vmatprep.subr.mxu0 0.0
        %1480 = vmatpush1.xpose.msra.mxu0 0.0
        %1481 = vmatprep.subr.mxu0 0.0
        %1482 = vmatpush1.xpose.msra.mxu0 0.0
        %1483 = vmatprep.mubr.f32.mxu0 0.0
        %1484 = vmatmul.mubr.f32.gmra.mrb[0].mxu0 %v1258
        %v1485 = vpop.f32.mrb[0].mxu0
        %v1486 = vadd.f32 0.0, %v1485
        %v1487 = vpop.f32.mrb[0].mxu0
        %1488 = vmatprep.mubr.f32.mxu0 0.0
        %1489 = vmatmul.mubr.f32.gmra.mrb[0].mxu0 %v1259
        %v1490 = vpop.f32.mrb[0].mxu0
        %v1491 = vadd.f32 0.0, %v1490
        %v1492 = vpop.f32.mrb[0].mxu0
        %1493 = vmatprep.mubr.f32.mxu0 0.0
        %1494 = vmatmul.mubr.f32.gmra.mrb[0].mxu0 %v1260
        %v1495 = vpop.f32.mrb[0].mxu0
        %v1496 = vadd.f32 0.0, %v1495
        %v1497 = vpop.f32.mrb[0].mxu0
        %1498 = vmatprep.mubr.f32.mxu0 0.0
        %1499 = vmatmul.mubr.f32.gmra.mrb[0].mxu0 %v1261
        %v1500 = vpop.f32.mrb[0].mxu0
        %v1501 = vadd.f32 0.0, %v1500
        %v1502 = vpop.f32.mrb[0].mxu0
        %1503 = vmatprep.mubr.f32.mxu0 0.0
        %1504 = vmatmul.mubr.f32.gmra.mrb[0].mxu0 %v1262
        %v1505 = vpop.f32.mrb[0].mxu0
        %v1506 = vadd.f32 0.0, %v1505
        %v1507 = vpop.f32.mrb[0].mxu0
        %1508 = vmatprep.mubr.f32.mxu0 0.0
        %1509 = vmatmul.mubr.f32.gmra.mrb[0].mxu0 %v1263
        %v1510 = vpop.f32.mrb[0].mxu0
        %v1511 = vadd.f32 0.0, %v1510
        %v1512 = vpop.f32.mrb[0].mxu0
        %1513 = vmatprep.mubr.f32.mxu0 0.0
        %1514 = vmatmul.mubr.f32.gmra.mrb[0].mxu0 %v1264
        %v1515 = vpop.f32.mrb[0].mxu0
        %v1516 = vadd.f32 0.0, %v1515
        %v1517 = vpop.f32.mrb[0].mxu0
        %1518 = vmatprep.mubr.f32.mxu0 0.0
        %1519 = vmatmul.mubr.f32.gmra.mrb[0].mxu0 %v1265
        %v1520 = vpop.f32.mrb[0].mxu0
        %v1521 = vadd.f32 0.0, %v1520
        %v1522 = vpop.f32.mrb[0].mxu0
        %1523 = vmatprep.mubr.f32.mxu0 0.0
        %1524 = vmatmul.mubr.f32.gmra.mrb[0].mxu0 %v1266
        %v1525 = vpop.f32.mrb[0].mxu0
        %v1526 = vadd.f32 0.0, %v1525
        %v1527 = vpop.f32.mrb[0].mxu0
        %1528 = vmatprep.mubr.f32.mxu0 0.0
        %1529 = vmatmul.mubr.f32.gmra.mrb[0].mxu0 %v1267
        %v1530 = vpop.f32.mrb[0].mxu0
        %v1531 = vadd.f32 0.0, %v1530
        %v1532 = vpop.f32.mrb[0].mxu0
        %1533 = vmatprep.mubr.f32.mxu0 0.0
        %1534 = vmatmul.mubr.f32.gmra.mrb[0].mxu0 %v1268
        %v1535 = vpop.f32.mrb[0].mxu0
        %v1536 = vadd.f32 0.0, %v1535
        %v1537 = vpop.f32.mrb[0].mxu0
        %1538 = vmatprep.mubr.f32.mxu0 0.0
        %1539 = vmatmul.mubr.f32.gmra.mrb[0].mxu0 %v1269
        %v1540 = vpop.f32.mrb[0].mxu0
        %v1541 = vadd.f32 0.0, %v1540
        %v1542 = vpop.f32.mrb[0].mxu0
        %1543 = vmatprep.mubr.f32.mxu0 0.0
        %1544 = vmatmul.mubr.f32.gmra.mrb[0].mxu0 %v1270
        %v1545 = vpop.f32.mrb[0].mxu0
        %v1546 = vadd.f32 0.0, %v1545
        %v1547 = vpop.f32.mrb[0].mxu0
        %1548 = vmatprep.mubr.f32.mxu0 0.0
        %1549 = vmatmul.mubr.f32.gmra.mrb[0].mxu0 %v1271
        %v1550 = vpop.f32.mrb[0].mxu0
        %v1551 = vadd.f32 0.0, %v1550
        %v1552 = vpop.f32.mrb[0].mxu0
        %1553 = vmatprep.mubr.f32.mxu0 0.0
        %1554 = vmatmul.mubr.f32.gmra.mrb[0].mxu0 %v1272
        %v1555 = vpop.f32.mrb[0].mxu0
        %v1556 = vadd.f32 0.0, %v1555
        %v1557 = vpop.f32.mrb[0].mxu0
        %1558 = vmatprep.mubr.f32.mxu0 0.0
        %1559 = vmatmul.mubr.f32.gmra.mrb[0].mxu0 %v1273
        %v1560 = vpop.f32.mrb[0].mxu0
        %v1561 = vadd.f32 0.0, %v1560
        %v1562 = vpop.f32.mrb[0].mxu0
        %1563 = vdwg.mxu0
        %vm1564 = vcmask 130048
        %v1565 = vsel %vm1564, %v1341, -inf
        %1566 = vmax.xlane.f32.xlu0 %v1565
        %v1567 = vpop.xlane.xlu0 %1566
        %v1568 = vsel %vm1564, %v1346, -inf
        %1569 = vmax.xlane.f32.xlu0 %v1568
        %v1570 = vpop.xlane.xlu0 %1569
        %v1571 = vsel %vm1564, %v1351, -inf
        %1572 = vmax.xlane.f32.xlu0 %v1571
        %v1573 = vpop.xlane.xlu0 %1572
        %v1574 = vsel %vm1564, %v1356, -inf
        %1575 = vmax.xlane.f32.xlu0 %v1574
        %v1576 = vpop.xlane.xlu0 %1575
        %v1577 = vsel %vm1564, %v1361, -inf
        %1578 = vmax.xlane.f32.xlu0 %v1577
        %v1579 = vpop.xlane.xlu0 %1578
        %v1580 = vsel %vm1564, %v1366, -inf
        %1581 = vmax.xlane.f32.xlu0 %v1580
        %v1582 = vpop.xlane.xlu0 %1581
        %v1583 = vsel %vm1564, %v1371, -inf
        %1584 = vmax.xlane.f32.xlu0 %v1583
        %v1585 = vpop.xlane.xlu0 %1584
        %v1586 = vsel %vm1564, %v1376, -inf
        %1587 = vmax.xlane.f32.xlu0 %v1586
        %v1588 = vpop.xlane.xlu0 %1587
        %v1589 = vsel %vm1564, %v1381, -inf
        %1590 = vmax.xlane.f32.xlu0 %v1589
        %v1591 = vpop.xlane.xlu0 %1590
        %v1592 = vsel %vm1564, %v1386, -inf
        %1593 = vmax.xlane.f32.xlu0 %v1592
        %v1594 = vpop.xlane.xlu0 %1593
        %v1595 = vsel %vm1564, %v1391, -inf
        %1596 = vmax.xlane.f32.xlu0 %v1595
        %v1597 = vpop.xlane.xlu0 %1596
        %v1598 = vsel %vm1564, %v1396, -inf
        %1599 = vmax.xlane.f32.xlu0 %v1598
        %v1600 = vpop.xlane.xlu0 %1599
        %v1601 = vsel %vm1564, %v1401, -inf
        %1602 = vmax.xlane.f32.xlu0 %v1601
        %v1603 = vpop.xlane.xlu0 %1602
        %v1604 = vsel %vm1564, %v1406, -inf
        %1605 = vmax.xlane.f32.xlu0 %v1604
        %v1606 = vpop.xlane.xlu0 %1605
        %v1607 = vsel %vm1564, %v1411, -inf
        %1608 = vmax.xlane.f32.xlu0 %v1607
        %v1609 = vpop.xlane.xlu0 %1608
        %v1610 = vsel %vm1564, %v1416, -inf
        %1611 = vmax.xlane.f32.xlu0 %v1610
        %v1612 = vpop.xlane.xlu0 %1611
        %v1613 = vsel %vm1564, %v1486, -inf
        %1614 = vmax.xlane.f32.xlu0 %v1613
        %v1615 = vpop.xlane.xlu0 %1614
        %v1616 = vsel %vm1564, %v1491, -inf
        %1617 = vmax.xlane.f32.xlu0 %v1616
        %v1618 = vpop.xlane.xlu0 %1617
        %v1619 = vsel %vm1564, %v1496, -inf
        %1620 = vmax.xlane.f32.xlu0 %v1619
        %v1621 = vpop.xlane.xlu0 %1620
        %v1622 = vsel %vm1564, %v1501, -inf
        %1623 = vmax.xlane.f32.xlu0 %v1622
        %v1624 = vpop.xlane.xlu0 %1623
        %v1625 = vsel %vm1564, %v1506, -inf
        %1626 = vmax.xlane.f32.xlu0 %v1625
        %v1627 = vpop.xlane.xlu0 %1626
        %v1628 = vsel %vm1564, %v1511, -inf
        %1629 = vmax.xlane.f32.xlu0 %v1628
        %v1630 = vpop.xlane.xlu0 %1629
        %v1631 = vsel %vm1564, %v1516, -inf
        %1632 = vmax.xlane.f32.xlu0 %v1631
        %v1633 = vpop.xlane.xlu0 %1632
        %v1634 = vsel %vm1564, %v1521, -inf
        %1635 = vmax.xlane.f32.xlu0 %v1634
        %v1636 = vpop.xlane.xlu0 %1635
        %v1637 = vsel %vm1564, %v1526, -inf
        %1638 = vmax.xlane.f32.xlu0 %v1637
        %v1639 = vpop.xlane.xlu0 %1638
        %v1640 = vsel %vm1564, %v1531, -inf
        %1641 = vmax.xlane.f32.xlu0 %v1640
        %v1642 = vpop.xlane.xlu0 %1641
        %v1643 = vsel %vm1564, %v1536, -inf
        %1644 = vmax.xlane.f32.xlu0 %v1643
        %v1645 = vpop.xlane.xlu0 %1644
        %v1646 = vsel %vm1564, %v1541, -inf
        %1647 = vmax.xlane.f32.xlu0 %v1646
        %v1648 = vpop.xlane.xlu0 %1647
        %v1649 = vsel %vm1564, %v1546, -inf
        %1650 = vmax.xlane.f32.xlu0 %v1649
        %v1651 = vpop.xlane.xlu0 %1650
        %v1652 = vsel %vm1564, %v1551, -inf
        %1653 = vmax.xlane.f32.xlu0 %v1652
        %v1654 = vpop.xlane.xlu0 %1653
        %v1655 = vsel %vm1564, %v1556, -inf
        %1656 = vmax.xlane.f32.xlu0 %v1655
        %v1657 = vpop.xlane.xlu0 %1656
        %v1658 = vsel %vm1564, %v1561, -inf
        %1659 = vmax.xlane.f32.xlu0 %v1658
        %v1660 = vpop.xlane.xlu0 %1659
        %v1661 = vsub.f32 %v1341, %v1567
        %v1662 = vsub.f32 %v1346, %v1570
        %v1663 = vsub.f32 %v1351, %v1573
        %v1664 = vsub.f32 %v1356, %v1576
        %v1665 = vsub.f32 %v1361, %v1579
        %v1666 = vsub.f32 %v1366, %v1582
        %v1667 = vsub.f32 %v1371, %v1585
        %v1668 = vsub.f32 %v1376, %v1588
        %v1669 = vsub.f32 %v1381, %v1591
        %v1670 = vsub.f32 %v1386, %v1594
        %v1671 = vsub.f32 %v1391, %v1597
        %v1672 = vsub.f32 %v1396, %v1600
        %v1673 = vsub.f32 %v1401, %v1603
        %v1674 = vsub.f32 %v1406, %v1606
        %v1675 = vsub.f32 %v1411, %v1609
        %v1676 = vsub.f32 %v1416, %v1612
        %v1677 = vsub.f32 %v1486, %v1615
        %v1678 = vsub.f32 %v1491, %v1618
        %v1679 = vsub.f32 %v1496, %v1621
        %v1680 = vsub.f32 %v1501, %v1624
        %v1681 = vsub.f32 %v1506, %v1627
        %v1682 = vsub.f32 %v1511, %v1630
        %v1683 = vsub.f32 %v1516, %v1633
        %v1684 = vsub.f32 %v1521, %v1636
        %v1685 = vsub.f32 %v1526, %v1639
        %v1686 = vsub.f32 %v1531, %v1642
        %v1687 = vsub.f32 %v1536, %v1645
        %v1688 = vsub.f32 %v1541, %v1648
        %v1689 = vsub.f32 %v1546, %v1651
        %v1690 = vsub.f32 %v1551, %v1654
        %v1691 = vsub.f32 %v1556, %v1657
        %v1692 = vsub.f32 %v1561, %v1660
        %v1693 = vmul.f32 %v1661, 1.442695
        %v1694 = vpow.pop %v1693
        %v1695 = vmul.f32 %v1662, 1.442695
        %v1696 = vpow.pop %v1695
        %v1697 = vmul.f32 %v1663, 1.442695
        %v1698 = vpow.pop %v1697
        %v1699 = vmul.f32 %v1664, 1.442695
        %v1700 = vpow.pop %v1699
        %v1701 = vmul.f32 %v1665, 1.442695
        %v1702 = vpow.pop %v1701
        %v1703 = vmul.f32 %v1666, 1.442695
        %v1704 = vpow.pop %v1703
        %v1705 = vmul.f32 %v1667, 1.442695
        %v1706 = vpow.pop %v1705
        %v1707 = vmul.f32 %v1668, 1.442695
        %v1708 = vpow.pop %v1707
        %v1709 = vmul.f32 %v1669, 1.442695
        %v1710 = vpow.pop %v1709
        %v1711 = vmul.f32 %v1670, 1.442695
        %v1712 = vpow.pop %v1711
        %v1713 = vmul.f32 %v1671, 1.442695
        %v1714 = vpow.pop %v1713
        %v1715 = vmul.f32 %v1672, 1.442695
        %v1716 = vpow.pop %v1715
        %v1717 = vmul.f32 %v1673, 1.442695
        %v1718 = vpow.pop %v1717
        %v1719 = vmul.f32 %v1674, 1.442695
        %v1720 = vpow.pop %v1719
        %v1721 = vmul.f32 %v1675, 1.442695
        %v1722 = vpow.pop %v1721
        %v1723 = vmul.f32 %v1676, 1.442695
        %v1724 = vpow.pop %v1723
        %v1725 = vmul.f32 %v1677, 1.442695
        %v1726 = vpow.pop %v1725
        %v1727 = vmul.f32 %v1678, 1.442695
        %v1728 = vpow.pop %v1727
        %v1729 = vmul.f32 %v1679, 1.442695
        %v1730 = vpow.pop %v1729
        %v1731 = vmul.f32 %v1680, 1.442695
        %v1732 = vpow.pop %v1731
        %v1733 = vmul.f32 %v1681, 1.442695
        %v1734 = vpow.pop %v1733
        %v1735 = vmul.f32 %v1682, 1.442695
        %v1736 = vpow.pop %v1735
        %v1737 = vmul.f32 %v1683, 1.442695
        %v1738 = vpow.pop %v1737
        %v1739 = vmul.f32 %v1684, 1.442695
        %v1740 = vpow.pop %v1739
        %v1741 = vmul.f32 %v1685, 1.442695
        %v1742 = vpow.pop %v1741
        %v1743 = vmul.f32 %v1686, 1.442695
        %v1744 = vpow.pop %v1743
        %v1745 = vmul.f32 %v1687, 1.442695
        %v1746 = vpow.pop %v1745
        %v1747 = vmul.f32 %v1688, 1.442695
        %v1748 = vpow.pop %v1747
        %v1749 = vmul.f32 %v1689, 1.442695
        %v1750 = vpow.pop %v1749
        %v1751 = vmul.f32 %v1690, 1.442695
        %v1752 = vpow.pop %v1751
        %v1753 = vmul.f32 %v1691, 1.442695
        %v1754 = vpow.pop %v1753
        %v1755 = vmul.f32 %v1692, 1.442695
        %v1756 = vpow.pop %v1755
        %v1757 = vsel %vm1564, %v1694, 0.0
        %1758 = vadd.xlane.f32.xlu0 %v1757
        %v1759 = vpop.xlane.xlu0 %1758
        %v1760 = vsel %vm1564, %v1696, 0.0
        %1761 = vadd.xlane.f32.xlu0 %v1760
        %v1762 = vpop.xlane.xlu0 %1761
        %v1763 = vsel %vm1564, %v1698, 0.0
        %1764 = vadd.xlane.f32.xlu0 %v1763
        %v1765 = vpop.xlane.xlu0 %1764
        %v1766 = vsel %vm1564, %v1700, 0.0
        %1767 = vadd.xlane.f32.xlu0 %v1766
        %v1768 = vpop.xlane.xlu0 %1767
        %v1769 = vsel %vm1564, %v1702, 0.0
        %1770 = vadd.xlane.f32.xlu0 %v1769
        %v1771 = vpop.xlane.xlu0 %1770
        %v1772 = vsel %vm1564, %v1704, 0.0
        %1773 = vadd.xlane.f32.xlu0 %v1772
        %v1774 = vpop.xlane.xlu0 %1773
        %v1775 = vsel %vm1564, %v1706, 0.0
        %1776 = vadd.xlane.f32.xlu0 %v1775
        %v1777 = vpop.xlane.xlu0 %1776
        %v1778 = vsel %vm1564, %v1708, 0.0
        %1779 = vadd.xlane.f32.xlu0 %v1778
        %v1780 = vpop.xlane.xlu0 %1779
        %v1781 = vsel %vm1564, %v1710, 0.0
        %1782 = vadd.xlane.f32.xlu0 %v1781
        %v1783 = vpop.xlane.xlu0 %1782
        %v1784 = vsel %vm1564, %v1712, 0.0
        %1785 = vadd.xlane.f32.xlu0 %v1784
        %v1786 = vpop.xlane.xlu0 %1785
        %v1787 = vsel %vm1564, %v1714, 0.0
        %1788 = vadd.xlane.f32.xlu0 %v1787
        %v1789 = vpop.xlane.xlu0 %1788
        %v1790 = vsel %vm1564, %v1716, 0.0
        %1791 = vadd.xlane.f32.xlu0 %v1790
        %v1792 = vpop.xlane.xlu0 %1791
        %v1793 = vsel %vm1564, %v1718, 0.0
        %1794 = vadd.xlane.f32.xlu0 %v1793
        %v1795 = vpop.xlane.xlu0 %1794
        %v1796 = vsel %vm1564, %v1720, 0.0
        %1797 = vadd.xlane.f32.xlu0 %v1796
        %v1798 = vpop.xlane.xlu0 %1797
        %v1799 = vsel %vm1564, %v1722, 0.0
        %1800 = vadd.xlane.f32.xlu0 %v1799
        %v1801 = vpop.xlane.xlu0 %1800
        %v1802 = vsel %vm1564, %v1724, 0.0
        %1803 = vadd.xlane.f32.xlu0 %v1802
        %v1804 = vpop.xlane.xlu0 %1803
        %v1805 = vsel %vm1564, %v1726, 0.0
        %1806 = vadd.xlane.f32.xlu0 %v1805
        %v1807 = vpop.xlane.xlu0 %1806
        %v1808 = vsel %vm1564, %v1728, 0.0
        %1809 = vadd.xlane.f32.xlu0 %v1808
        %v1810 = vpop.xlane.xlu0 %1809
        %v1811 = vsel %vm1564, %v1730, 0.0
        %1812 = vadd.xlane.f32.xlu0 %v1811
        %v1813 = vpop.xlane.xlu0 %1812
        %v1814 = vsel %vm1564, %v1732, 0.0
        %1815 = vadd.xlane.f32.xlu0 %v1814
        %v1816 = vpop.xlane.xlu0 %1815
        %v1817 = vsel %vm1564, %v1734, 0.0
        %1818 = vadd.xlane.f32.xlu0 %v1817
        %v1819 = vpop.xlane.xlu0 %1818
        %v1820 = vsel %vm1564, %v1736, 0.0
        %1821 = vadd.xlane.f32.xlu0 %v1820
        %v1822 = vpop.xlane.xlu0 %1821
        %v1823 = vsel %vm1564, %v1738, 0.0
        %1824 = vadd.xlane.f32.xlu0 %v1823
        %v1825 = vpop.xlane.xlu0 %1824
        %v1826 = vsel %vm1564, %v1740, 0.0
        %1827 = vadd.xlane.f32.xlu0 %v1826
        %v1828 = vpop.xlane.xlu0 %1827
        %v1829 = vsel %vm1564, %v1742, 0.0
        %1830 = vadd.xlane.f32.xlu0 %v1829
        %v1831 = vpop.xlane.xlu0 %1830
        %v1832 = vsel %vm1564, %v1744, 0.0
        %1833 = vadd.xlane.f32.xlu0 %v1832
        %v1834 = vpop.xlane.xlu0 %1833
        %v1835 = vsel %vm1564, %v1746, 0.0
        %1836 = vadd.xlane.f32.xlu0 %v1835
        %v1837 = vpop.xlane.xlu0 %1836
        %v1838 = vsel %vm1564, %v1748, 0.0
        %1839 = vadd.xlane.f32.xlu0 %v1838
        %v1840 = vpop.xlane.xlu0 %1839
        %v1841 = vsel %vm1564, %v1750, 0.0
        %1842 = vadd.xlane.f32.xlu0 %v1841
        %v1843 = vpop.xlane.xlu0 %1842
        %v1844 = vsel %vm1564, %v1752, 0.0
        %1845 = vadd.xlane.f32.xlu0 %v1844
        %v1846 = vpop.xlane.xlu0 %1845
        %v1847 = vsel %vm1564, %v1754, 0.0
        %1848 = vadd.xlane.f32.xlu0 %v1847
        %v1849 = vpop.xlane.xlu0 %1848
        %v1850 = vsel %vm1564, %v1756, 0.0
        %1851 = vadd.xlane.f32.xlu0 %v1850
        %v1852 = vpop.xlane.xlu0 %1851
        %v1853 = vrcp.pop %v1759
        %v1854 = vrcp.pop %v1762
        %v1855 = vrcp.pop %v1765
        %v1856 = vrcp.pop %v1768
        %v1857 = vrcp.pop %v1771
        %v1858 = vrcp.pop %v1774
        %v1859 = vrcp.pop %v1777
        %v1860 = vrcp.pop %v1780
        %v1861 = vrcp.pop %v1783
        %v1862 = vrcp.pop %v1786
        %v1863 = vrcp.pop %v1789
        %v1864 = vrcp.pop %v1792
        %v1865 = vrcp.pop %v1795
        %v1866 = vrcp.pop %v1798
        %v1867 = vrcp.pop %v1801
        %v1868 = vrcp.pop %v1804
        %v1869 = vrcp.pop %v1807
        %v1870 = vrcp.pop %v1810
        %v1871 = vrcp.pop %v1813
        %v1872 = vrcp.pop %v1816
        %v1873 = vrcp.pop %v1819
        %v1874 = vrcp.pop %v1822
        %v1875 = vrcp.pop %v1825
        %v1876 = vrcp.pop %v1828
        %v1877 = vrcp.pop %v1831
        %v1878 = vrcp.pop %v1834
        %v1879 = vrcp.pop %v1837
        %v1880 = vrcp.pop %v1840
        %v1881 = vrcp.pop %v1843
        %v1882 = vrcp.pop %v1846
        %v1883 = vrcp.pop %v1849
        %v1884 = vrcp.pop %v1852
        %v1885 = vmul.f32 %v1694, %v1853
        %v1886 = vmul.f32 %v1696, %v1854
        %v1887 = vmul.f32 %v1698, %v1855
        %v1888 = vmul.f32 %v1700, %v1856
        %v1889 = vmul.f32 %v1702, %v1857
        %v1890 = vmul.f32 %v1704, %v1858
        %v1891 = vmul.f32 %v1706, %v1859
        %v1892 = vmul.f32 %v1708, %v1860
        %v1893 = vmul.f32 %v1710, %v1861
        %v1894 = vmul.f32 %v1712, %v1862
        %v1895 = vmul.f32 %v1714, %v1863
        %v1896 = vmul.f32 %v1716, %v1864
        %v1897 = vmul.f32 %v1718, %v1865
        %v1898 = vmul.f32 %v1720, %v1866
        %v1899 = vmul.f32 %v1722, %v1867
        %v1900 = vmul.f32 %v1724, %v1868
        %v1901 = vmul.f32 %v1726, %v1869
        %v1902 = vmul.f32 %v1728, %v1870
        %v1903 = vmul.f32 %v1730, %v1871
        %v1904 = vmul.f32 %v1732, %v1872
        %v1905 = vmul.f32 %v1734, %v1873
        %v1906 = vmul.f32 %v1736, %v1874
        %v1907 = vmul.f32 %v1738, %v1875
        %v1908 = vmul.f32 %v1740, %v1876
        %v1909 = vmul.f32 %v1742, %v1877
        %v1910 = vmul.f32 %v1744, %v1878
        %v1911 = vmul.f32 %v1746, %v1879
        %v1912 = vmul.f32 %v1748, %v1880
        %v1913 = vmul.f32 %v1750, %v1881
        %v1914 = vmul.f32 %v1752, %v1882
        %v1915 = vmul.f32 %v1754, %v1883
        %v1916 = vmul.f32 %v1756, %v1884
        %v1918 = vsel %vm1564, %v1885, 0
        %v1921 = vsel %vm1564, %v1886, 0
        %v1924 = vsel %vm1564, %v1887, 0
        %v1927 = vsel %vm1564, %v1888, 0
        %v1930 = vsel %vm1564, %v1889, 0
        %v1933 = vsel %vm1564, %v1890, 0
        %v1936 = vsel %vm1564, %v1891, 0
        %v1939 = vsel %vm1564, %v1892, 0
        %v1942 = vsel %vm1564, %v1893, 0
        %v1945 = vsel %vm1564, %v1894, 0
        %v1948 = vsel %vm1564, %v1895, 0
        %v1951 = vsel %vm1564, %v1896, 0
        %v1954 = vsel %vm1564, %v1897, 0
        %v1957 = vsel %vm1564, %v1898, 0
        %v1960 = vsel %vm1564, %v1899, 0
        %v1963 = vsel %vm1564, %v1900, 0
        %1965 = vmatprep.subr.mxu0 0.0
        %1966 = vmatpush1.msra.mxu0 %v860
        %1967 = vmatprep.subr.mxu0 0.0
        %1968 = vmatpush1.msra.mxu0 %v865
        %1969 = vmatprep.subr.mxu0 0.0
        %1970 = vmatpush1.msra.mxu0 0.0
        %1971 = vmatprep.subr.mxu0 0.0
        %1972 = vmatpush1.msra.mxu0 0.0
        %1973 = vmatprep.subr.mxu0 0.0
        %1974 = vmatpush1.msra.mxu0 0.0
        %1975 = vmatprep.subr.mxu0 0.0
        %1976 = vmatpush1.msra.mxu0 0.0
        %1977 = vmatprep.subr.mxu0 0.0
        %1978 = vmatpush1.msra.mxu0 0.0
        %1979 = vmatprep.subr.mxu0 0.0
        %1980 = vmatpush1.msra.mxu0 0.0
        %1981 = vmatprep.subr.mxu0 0.0
        %1982 = vmatpush1.msra.mxu0 0.0
        %1983 = vmatprep.subr.mxu0 0.0
        %1984 = vmatpush1.msra.mxu0 0.0
        %1985 = vmatprep.subr.mxu0 0.0
        %1986 = vmatpush1.msra.mxu0 0.0
        %1987 = vmatprep.subr.mxu0 0.0
        %1988 = vmatpush1.msra.mxu0 0.0
        %1989 = vmatprep.subr.mxu0 0.0
        %1990 = vmatpush1.msra.mxu0 0.0
        %1991 = vmatprep.subr.mxu0 0.0
        %1992 = vmatpush1.msra.mxu0 0.0
        %1993 = vmatprep.subr.mxu0 0.0
        %1994 = vmatpush1.msra.mxu0 0.0
        %1995 = vmatprep.subr.mxu0 0.0
        %1996 = vmatpush1.msra.mxu0 0.0
        %1997 = vmatprep.subr.mxu0 0.0
        %1998 = vmatpush1.msra.mxu0 0.0
        %1999 = vmatprep.subr.mxu0 0.0
        %2000 = vmatpush1.msra.mxu0 0.0
        %2001 = vmatprep.subr.mxu0 0.0
        %2002 = vmatpush1.msra.mxu0 0.0
        %2003 = vmatprep.subr.mxu0 0.0
        %2004 = vmatpush1.msra.mxu0 0.0
        %2005 = vmatprep.subr.mxu0 0.0
        %2006 = vmatpush1.msra.mxu0 0.0
        %2007 = vmatprep.subr.mxu0 0.0
        %2008 = vmatpush1.msra.mxu0 0.0
        %2009 = vmatprep.subr.mxu0 0.0
        %2010 = vmatpush1.msra.mxu0 0.0
        %2011 = vmatprep.subr.mxu0 0.0
        %2012 = vmatpush1.msra.mxu0 0.0
        %2013 = vmatprep.subr.mxu0 0.0
        %2014 = vmatpush1.msra.mxu0 0.0
        %2015 = vmatprep.subr.mxu0 0.0
        %2016 = vmatpush1.msra.mxu0 0.0
        %2017 = vmatprep.subr.mxu0 0.0
        %2018 = vmatpush1.msra.mxu0 0.0
        %2019 = vmatprep.subr.mxu0 0.0
        %2020 = vmatpush1.msra.mxu0 0.0
        %2021 = vmatprep.subr.mxu0 0.0
        %2022 = vmatpush1.msra.mxu0 0.0
        %2023 = vmatprep.subr.mxu0 0.0
        %2024 = vmatpush1.msra.mxu0 0.0
        %2025 = vmatprep.subr.mxu0 0.0
        %2026 = vmatpush1.msra.mxu0 0.0
        %2027 = vmatprep.subr.mxu0 0.0
        %2028 = vmatpush1.msra.mxu0 0.0
        %2029 = vmatprep.mubr.f32.mxu0 0.0
        %2030 = vmatmul.mubr.f32.gmra.mrb[0].mxu0 %v1918
        %v2031 = vpop.f32.mrb[0].mxu0
        %v2032 = vadd.f32 0.0, %v2031
        %v2033 = vpop.f32.mrb[0].mxu0
        %2034 = vmatprep.mubr.f32.mxu0 0.0
        %2035 = vmatmul.mubr.f32.gmra.mrb[0].mxu0 %v1921
        %v2036 = vpop.f32.mrb[0].mxu0
        %v2037 = vadd.f32 0.0, %v2036
        %v2038 = vpop.f32.mrb[0].mxu0
        %2039 = vmatprep.mubr.f32.mxu0 0.0
        %2040 = vmatmul.mubr.f32.gmra.mrb[0].mxu0 %v1924
        %v2041 = vpop.f32.mrb[0].mxu0
        %v2042 = vadd.f32 0.0, %v2041
        %v2043 = vpop.f32.mrb[0].mxu0
        %2044 = vmatprep.mubr.f32.mxu0 0.0
        %2045 = vmatmul.mubr.f32.gmra.mrb[0].mxu0 %v1927
        %v2046 = vpop.f32.mrb[0].mxu0
        %v2047 = vadd.f32 0.0, %v2046
        %v2048 = vpop.f32.mrb[0].mxu0
        %2049 = vmatprep.mubr.f32.mxu0 0.0
        %2050 = vmatmul.mubr.f32.gmra.mrb[0].mxu0 %v1930
        %v2051 = vpop.f32.mrb[0].mxu0
        %v2052 = vadd.f32 0.0, %v2051
        %v2053 = vpop.f32.mrb[0].mxu0
        %2054 = vmatprep.mubr.f32.mxu0 0.0
        %2055 = vmatmul.mubr.f32.gmra.mrb[0].mxu0 %v1933
        %v2056 = vpop.f32.mrb[0].mxu0
        %v2057 = vadd.f32 0.0, %v2056
        %v2058 = vpop.f32.mrb[0].mxu0
        %2059 = vmatprep.mubr.f32.mxu0 0.0
        %2060 = vmatmul.mubr.f32.gmra.mrb[0].mxu0 %v1936
        %v2061 = vpop.f32.mrb[0].mxu0
        %v2062 = vadd.f32 0.0, %v2061
        %v2063 = vpop.f32.mrb[0].mxu0
        %2064 = vmatprep.mubr.f32.mxu0 0.0
        %2065 = vmatmul.mubr.f32.gmra.mrb[0].mxu0 %v1939
        %v2066 = vpop.f32.mrb[0].mxu0
        %v2067 = vadd.f32 0.0, %v2066
        %v2068 = vpop.f32.mrb[0].mxu0
        %2069 = vmatprep.mubr.f32.mxu0 0.0
        %2070 = vmatmul.mubr.f32.gmra.mrb[0].mxu0 %v1942
        %v2071 = vpop.f32.mrb[0].mxu0
        %v2072 = vadd.f32 0.0, %v2071
        %v2073 = vpop.f32.mrb[0].mxu0
        %2074 = vmatprep.mubr.f32.mxu0 0.0
        %2075 = vmatmul.mubr.f32.gmra.mrb[0].mxu0 %v1945
        %v2076 = vpop.f32.mrb[0].mxu0
        %v2077 = vadd.f32 0.0, %v2076
        %v2078 = vpop.f32.mrb[0].mxu0
        %2079 = vmatprep.mubr.f32.mxu0 0.0
        %2080 = vmatmul.mubr.f32.gmra.mrb[0].mxu0 %v1948
        %v2081 = vpop.f32.mrb[0].mxu0
        %v2082 = vadd.f32 0.0, %v2081
        %v2083 = vpop.f32.mrb[0].mxu0
        %2084 = vmatprep.mubr.f32.mxu0 0.0
        %2085 = vmatmul.mubr.f32.gmra.mrb[0].mxu0 %v1951
        %v2086 = vpop.f32.mrb[0].mxu0
        %v2087 = vadd.f32 0.0, %v2086
        %v2088 = vpop.f32.mrb[0].mxu0
        %2089 = vmatprep.mubr.f32.mxu0 0.0
        %2090 = vmatmul.mubr.f32.gmra.mrb[0].mxu0 %v1954
        %v2091 = vpop.f32.mrb[0].mxu0
        %v2092 = vadd.f32 0.0, %v2091
        %v2093 = vpop.f32.mrb[0].mxu0
        %2094 = vmatprep.mubr.f32.mxu0 0.0
        %2095 = vmatmul.mubr.f32.gmra.mrb[0].mxu0 %v1957
        %v2096 = vpop.f32.mrb[0].mxu0
        %v2097 = vadd.f32 0.0, %v2096
        %v2098 = vpop.f32.mrb[0].mxu0
        %2099 = vmatprep.mubr.f32.mxu0 0.0
        %2100 = vmatmul.mubr.f32.gmra.mrb[0].mxu0 %v1960
        %v2101 = vpop.f32.mrb[0].mxu0
        %v2102 = vadd.f32 0.0, %v2101
        %v2103 = vpop.f32.mrb[0].mxu0
        %2104 = vmatprep.mubr.f32.mxu0 0.0
        %2105 = vmatmul.mubr.f32.gmra.mrb[0].mxu0 %v1963
        %v2106 = vpop.f32.mrb[0].mxu0
        %v2107 = vadd.f32 0.0, %v2106
        %v2108 = vpop.f32.mrb[0].mxu0
        %2109 = vdwg.mxu0
        %v2111 = vsel %vm1564, %v1901, 0
        %v2114 = vsel %vm1564, %v1902, 0
        %v2117 = vsel %vm1564, %v1903, 0
        %v2120 = vsel %vm1564, %v1904, 0
        %v2123 = vsel %vm1564, %v1905, 0
        %v2126 = vsel %vm1564, %v1906, 0
        %v2129 = vsel %vm1564, %v1907, 0
        %v2132 = vsel %vm1564, %v1908, 0
        %v2135 = vsel %vm1564, %v1909, 0
        %v2138 = vsel %vm1564, %v1910, 0
        %v2141 = vsel %vm1564, %v1911, 0
        %v2144 = vsel %vm1564, %v1912, 0
        %v2147 = vsel %vm1564, %v1913, 0
        %v2150 = vsel %vm1564, %v1914, 0
        %v2153 = vsel %vm1564, %v1915, 0
        %v2156 = vsel %vm1564, %v1916, 0
        %2158 = vmatprep.subr.mxu0 0.0
        %2159 = vmatpush1.msra.mxu0 %v870
        %2160 = vmatprep.subr.mxu0 0.0
        %2161 = vmatpush1.msra.mxu0 %v875
        %2162 = vmatprep.subr.mxu0 0.0
        %2163 = vmatpush1.msra.mxu0 0.0
        %2164 = vmatprep.subr.mxu0 0.0
        %2165 = vmatpush1.msra.mxu0 0.0
        %2166 = vmatprep.subr.mxu0 0.0
        %2167 = vmatpush1.msra.mxu0 0.0
        %2168 = vmatprep.subr.mxu0 0.0
        %2169 = vmatpush1.msra.mxu0 0.0
        %2170 = vmatprep.subr.mxu0 0.0
        %2171 = vmatpush1.msra.mxu0 0.0
        %2172 = vmatprep.subr.mxu0 0.0
        %2173 = vmatpush1.msra.mxu0 0.0
        %2174 = vmatprep.subr.mxu0 0.0
        %2175 = vmatpush1.msra.mxu0 0.0
        %2176 = vmatprep.subr.mxu0 0.0
        %2177 = vmatpush1.msra.mxu0 0.0
        %2178 = vmatprep.subr.mxu0 0.0
        %2179 = vmatpush1.msra.mxu0 0.0
        %2180 = vmatprep.subr.mxu0 0.0
        %2181 = vmatpush1.msra.mxu0 0.0
        %2182 = vmatprep.subr.mxu0 0.0
        %2183 = vmatpush1.msra.mxu0 0.0
        %2184 = vmatprep.subr.mxu0 0.0
        %2185 = vmatpush1.msra.mxu0 0.0
        %2186 = vmatprep.subr.mxu0 0.0
        %2187 = vmatpush1.msra.mxu0 0.0
        %2188 = vmatprep.subr.mxu0 0.0
        %2189 = vmatpush1.msra.mxu0 0.0
        %2190 = vmatprep.subr.mxu0 0.0
        %2191 = vmatpush1.msra.mxu0 0.0
        %2192 = vmatprep.subr.mxu0 0.0
        %2193 = vmatpush1.msra.mxu0 0.0
        %2194 = vmatprep.subr.mxu0 0.0
        %2195 = vmatpush1.msra.mxu0 0.0
        %2196 = vmatprep.subr.mxu0 0.0
        %2197 = vmatpush1.msra.mxu0 0.0
        %2198 = vmatprep.subr.mxu0 0.0
        %2199 = vmatpush1.msra.mxu0 0.0
        %2200 = vmatprep.subr.mxu0 0.0
        %2201 = vmatpush1.msra.mxu0 0.0
        %2202 = vmatprep.subr.mxu0 0.0
        %2203 = vmatpush1.msra.mxu0 0.0
        %2204 = vmatprep.subr.mxu0 0.0
        %2205 = vmatpush1.msra.mxu0 0.0
        %2206 = vmatprep.subr.mxu0 0.0
        %2207 = vmatpush1.msra.mxu0 0.0
        %2208 = vmatprep.subr.mxu0 0.0
        %2209 = vmatpush1.msra.mxu0 0.0
        %2210 = vmatprep.subr.mxu0 0.0
        %2211 = vmatpush1.msra.mxu0 0.0
        %2212 = vmatprep.subr.mxu0 0.0
        %2213 = vmatpush1.msra.mxu0 0.0
        %2214 = vmatprep.subr.mxu0 0.0
        %2215 = vmatpush1.msra.mxu0 0.0
        %2216 = vmatprep.subr.mxu0 0.0
        %2217 = vmatpush1.msra.mxu0 0.0
        %2218 = vmatprep.subr.mxu0 0.0
        %2219 = vmatpush1.msra.mxu0 0.0
        %2220 = vmatprep.subr.mxu0 0.0
        %2221 = vmatpush1.msra.mxu0 0.0
        %2222 = vmatprep.mubr.f32.mxu0 0.0
        %2223 = vmatmul.mubr.f32.gmra.mrb[0].mxu0 %v2111
        %v2224 = vpop.f32.mrb[0].mxu0
        %v2225 = vadd.f32 0.0, %v2224
        %v2226 = vpop.f32.mrb[0].mxu0
        %2227 = vmatprep.mubr.f32.mxu0 0.0
        %2228 = vmatmul.mubr.f32.gmra.mrb[0].mxu0 %v2114
        %v2229 = vpop.f32.mrb[0].mxu0
        %v2230 = vadd.f32 0.0, %v2229
        %v2231 = vpop.f32.mrb[0].mxu0
        %2232 = vmatprep.mubr.f32.mxu0 0.0
        %2233 = vmatmul.mubr.f32.gmra.mrb[0].mxu0 %v2117
        %v2234 = vpop.f32.mrb[0].mxu0
        %v2235 = vadd.f32 0.0, %v2234
        %v2236 = vpop.f32.mrb[0].mxu0
        %2237 = vmatprep.mubr.f32.mxu0 0.0
        %2238 = vmatmul.mubr.f32.gmra.mrb[0].mxu0 %v2120
        %v2239 = vpop.f32.mrb[0].mxu0
        %v2240 = vadd.f32 0.0, %v2239
        %v2241 = vpop.f32.mrb[0].mxu0
        %2242 = vmatprep.mubr.f32.mxu0 0.0
        %2243 = vmatmul.mubr.f32.gmra.mrb[0].mxu0 %v2123
        %v2244 = vpop.f32.mrb[0].mxu0
        %v2245 = vadd.f32 0.0, %v2244
        %v2246 = vpop.f32.mrb[0].mxu0
        %2247 = vmatprep.mubr.f32.mxu0 0.0
        %2248 = vmatmul.mubr.f32.gmra.mrb[0].mxu0 %v2126
        %v2249 = vpop.f32.mrb[0].mxu0
        %v2250 = vadd.f32 0.0, %v2249
        %v2251 = vpop.f32.mrb[0].mxu0
        %2252 = vmatprep.mubr.f32.mxu0 0.0
        %2253 = vmatmul.mubr.f32.gmra.mrb[0].mxu0 %v2129
        %v2254 = vpop.f32.mrb[0].mxu0
        %v2255 = vadd.f32 0.0, %v2254
        %v2256 = vpop.f32.mrb[0].mxu0
        %2257 = vmatprep.mubr.f32.mxu0 0.0
        %2258 = vmatmul.mubr.f32.gmra.mrb[0].mxu0 %v2132
        %v2259 = vpop.f32.mrb[0].mxu0
        %v2260 = vadd.f32 0.0, %v2259
        %v2261 = vpop.f32.mrb[0].mxu0
        %2262 = vmatprep.mubr.f32.mxu0 0.0
        %2263 = vmatmul.mubr.f32.gmra.mrb[0].mxu0 %v2135
        %v2264 = vpop.f32.mrb[0].mxu0
        %v2265 = vadd.f32 0.0, %v2264
        %v2266 = vpop.f32.mrb[0].mxu0
        %2267 = vmatprep.mubr.f32.mxu0 0.0
        %2268 = vmatmul.mubr.f32.gmra.mrb[0].mxu0 %v2138
        %v2269 = vpop.f32.mrb[0].mxu0
        %v2270 = vadd.f32 0.0, %v2269
        %v2271 = vpop.f32.mrb[0].mxu0
        %2272 = vmatprep.mubr.f32.mxu0 0.0
        %2273 = vmatmul.mubr.f32.gmra.mrb[0].mxu0 %v2141
        %v2274 = vpop.f32.mrb[0].mxu0
        %v2275 = vadd.f32 0.0, %v2274
        %v2276 = vpop.f32.mrb[0].mxu0
        %2277 = vmatprep.mubr.f32.mxu0 0.0
        %2278 = vmatmul.mubr.f32.gmra.mrb[0].mxu0 %v2144
        %v2279 = vpop.f32.mrb[0].mxu0
        %v2280 = vadd.f32 0.0, %v2279
        %v2281 = vpop.f32.mrb[0].mxu0
        %2282 = vmatprep.mubr.f32.mxu0 0.0
        %2283 = vmatmul.mubr.f32.gmra.mrb[0].mxu0 %v2147
        %v2284 = vpop.f32.mrb[0].mxu0
        %v2285 = vadd.f32 0.0, %v2284
        %v2286 = vpop.f32.mrb[0].mxu0
        %2287 = vmatprep.mubr.f32.mxu0 0.0
        %2288 = vmatmul.mubr.f32.gmra.mrb[0].mxu0 %v2150
        %v2289 = vpop.f32.mrb[0].mxu0
        %v2290 = vadd.f32 0.0, %v2289
        %v2291 = vpop.f32.mrb[0].mxu0
        %2292 = vmatprep.mubr.f32.mxu0 0.0
        %2293 = vmatmul.mubr.f32.gmra.mrb[0].mxu0 %v2153
        %v2294 = vpop.f32.mrb[0].mxu0
        %v2295 = vadd.f32 0.0, %v2294
        %v2296 = vpop.f32.mrb[0].mxu0
        %2297 = vmatprep.mubr.f32.mxu0 0.0
        %2298 = vmatmul.mubr.f32.gmra.mrb[0].mxu0 %v2156
        %v2299 = vpop.f32.mrb[0].mxu0
        %v2300 = vadd.f32 0.0, %v2299
        %v2301 = vpop.f32.mrb[0].mxu0
        %2302 = vdwg.mxu0
        %v2303 = vmul.f32 %v2032, %v584
        %v2304 = vmul.f32 %v2037, %v584
        %v2305 = vmul.f32 %v2042, %v584
        %v2306 = vmul.f32 %v2047, %v584
        %v2307 = vmul.f32 %v2052, %v584
        %v2308 = vmul.f32 %v2057, %v584
        %v2309 = vmul.f32 %v2062, %v584
        %v2310 = vmul.f32 %v2067, %v584
        %v2311 = vmul.f32 %v2072, %v584
        %v2312 = vmul.f32 %v2077, %v584
        %v2313 = vmul.f32 %v2082, %v584
        %v2314 = vmul.f32 %v2087, %v584
        %v2315 = vmul.f32 %v2092, %v584
        %v2316 = vmul.f32 %v2097, %v584
        %v2317 = vmul.f32 %v2102, %v584
        %v2318 = vmul.f32 %v2107, %v584
        %v2319 = vmul.f32 %v2225, %v584
        %v2320 = vmul.f32 %v2230, %v584
        %v2321 = vmul.f32 %v2235, %v584
        %v2322 = vmul.f32 %v2240, %v584
        %v2323 = vmul.f32 %v2245, %v584
        %v2324 = vmul.f32 %v2250, %v584
        %v2325 = vmul.f32 %v2255, %v584
        %v2326 = vmul.f32 %v2260, %v584
        %v2327 = vmul.f32 %v2265, %v584
        %v2328 = vmul.f32 %v2270, %v584
        %v2329 = vmul.f32 %v2275, %v584
        %v2330 = vmul.f32 %v2280, %v584
        %v2331 = vmul.f32 %v2285, %v584
        %v2332 = vmul.f32 %v2290, %v584
        %v2333 = vmul.f32 %v2295, %v584
        %v2334 = vmul.f32 %v2300, %v584
        %v2335 = vrot.slane %v2303, 4
        %v2336 = vadd.f32 %v2303, %v2335
        %v2337 = vrot.slane %v2336, 2
        %v2338 = vadd.f32 %v2336, %v2337
        %v2339 = vrot.slane %v2338, 1
        %v2340 = vadd.f32 %v2338, %v2339
        %v2341 = vrot.slane %v2304, 4
        %v2342 = vadd.f32 %v2304, %v2341
        %v2343 = vrot.slane %v2342, 2
        %v2344 = vadd.f32 %v2342, %v2343
        %v2345 = vrot.slane %v2344, 1
        %v2346 = vadd.f32 %v2344, %v2345
        %v2347 = vrot.slane %v2305, 4
        %v2348 = vadd.f32 %v2305, %v2347
        %v2349 = vrot.slane %v2348, 2
        %v2350 = vadd.f32 %v2348, %v2349
        %v2351 = vrot.slane %v2350, 1
        %v2352 = vadd.f32 %v2350, %v2351
        %v2353 = vrot.slane %v2306, 4
        %v2354 = vadd.f32 %v2306, %v2353
        %v2355 = vrot.slane %v2354, 2
        %v2356 = vadd.f32 %v2354, %v2355
        %v2357 = vrot.slane %v2356, 1
        %v2358 = vadd.f32 %v2356, %v2357
        %v2359 = vrot.slane %v2307, 4
        %v2360 = vadd.f32 %v2307, %v2359
        %v2361 = vrot.slane %v2360, 2
        %v2362 = vadd.f32 %v2360, %v2361
        %v2363 = vrot.slane %v2362, 1
        %v2364 = vadd.f32 %v2362, %v2363
        %v2365 = vrot.slane %v2308, 4
        %v2366 = vadd.f32 %v2308, %v2365
        %v2367 = vrot.slane %v2366, 2
        %v2368 = vadd.f32 %v2366, %v2367
        %v2369 = vrot.slane %v2368, 1
        %v2370 = vadd.f32 %v2368, %v2369
        %v2371 = vrot.slane %v2309, 4
        %v2372 = vadd.f32 %v2309, %v2371
        %v2373 = vrot.slane %v2372, 2
        %v2374 = vadd.f32 %v2372, %v2373
        %v2375 = vrot.slane %v2374, 1
        %v2376 = vadd.f32 %v2374, %v2375
        %v2377 = vrot.slane %v2310, 4
        %v2378 = vadd.f32 %v2310, %v2377
        %v2379 = vrot.slane %v2378, 2
        %v2380 = vadd.f32 %v2378, %v2379
        %v2381 = vrot.slane %v2380, 1
        %v2382 = vadd.f32 %v2380, %v2381
        %v2383 = vrot.slane %v2311, 4
        %v2384 = vadd.f32 %v2311, %v2383
        %v2385 = vrot.slane %v2384, 2
        %v2386 = vadd.f32 %v2384, %v2385
        %v2387 = vrot.slane %v2386, 1
        %v2388 = vadd.f32 %v2386, %v2387
        %v2389 = vrot.slane %v2312, 4
        %v2390 = vadd.f32 %v2312, %v2389
        %v2391 = vrot.slane %v2390, 2
        %v2392 = vadd.f32 %v2390, %v2391
        %v2393 = vrot.slane %v2392, 1
        %v2394 = vadd.f32 %v2392, %v2393
        %v2395 = vrot.slane %v2313, 4
        %v2396 = vadd.f32 %v2313, %v2395
        %v2397 = vrot.slane %v2396, 2
        %v2398 = vadd.f32 %v2396, %v2397
        %v2399 = vrot.slane %v2398, 1
        %v2400 = vadd.f32 %v2398, %v2399
        %v2401 = vrot.slane %v2314, 4
        %v2402 = vadd.f32 %v2314, %v2401
        %v2403 = vrot.slane %v2402, 2
        %v2404 = vadd.f32 %v2402, %v2403
        %v2405 = vrot.slane %v2404, 1
        %v2406 = vadd.f32 %v2404, %v2405
        %v2407 = vrot.slane %v2315, 4
        %v2408 = vadd.f32 %v2315, %v2407
        %v2409 = vrot.slane %v2408, 2
        %v2410 = vadd.f32 %v2408, %v2409
        %v2411 = vrot.slane %v2410, 1
        %v2412 = vadd.f32 %v2410, %v2411
        %v2413 = vrot.slane %v2316, 4
        %v2414 = vadd.f32 %v2316, %v2413
        %v2415 = vrot.slane %v2414, 2
        %v2416 = vadd.f32 %v2414, %v2415
        %v2417 = vrot.slane %v2416, 1
        %v2418 = vadd.f32 %v2416, %v2417
        %v2419 = vrot.slane %v2317, 4
        %v2420 = vadd.f32 %v2317, %v2419
        %v2421 = vrot.slane %v2420, 2
        %v2422 = vadd.f32 %v2420, %v2421
        %v2423 = vrot.slane %v2422, 1
        %v2424 = vadd.f32 %v2422, %v2423
        %v2425 = vrot.slane %v2318, 4
        %v2426 = vadd.f32 %v2318, %v2425
        %v2427 = vrot.slane %v2426, 2
        %v2428 = vadd.f32 %v2426, %v2427
        %v2429 = vrot.slane %v2428, 1
        %v2430 = vadd.f32 %v2428, %v2429
        %v2431 = vrot.slane %v2319, 4
        %v2432 = vadd.f32 %v2319, %v2431
        %v2433 = vrot.slane %v2432, 2
        %v2434 = vadd.f32 %v2432, %v2433
        %v2435 = vrot.slane %v2434, 1
        %v2436 = vadd.f32 %v2434, %v2435
        %v2437 = vrot.slane %v2320, 4
        %v2438 = vadd.f32 %v2320, %v2437
        %v2439 = vrot.slane %v2438, 2
        %v2440 = vadd.f32 %v2438, %v2439
        %v2441 = vrot.slane %v2440, 1
        %v2442 = vadd.f32 %v2440, %v2441
        %v2443 = vrot.slane %v2321, 4
        %v2444 = vadd.f32 %v2321, %v2443
        %v2445 = vrot.slane %v2444, 2
        %v2446 = vadd.f32 %v2444, %v2445
        %v2447 = vrot.slane %v2446, 1
        %v2448 = vadd.f32 %v2446, %v2447
        %v2449 = vrot.slane %v2322, 4
        %v2450 = vadd.f32 %v2322, %v2449
        %v2451 = vrot.slane %v2450, 2
        %v2452 = vadd.f32 %v2450, %v2451
        %v2453 = vrot.slane %v2452, 1
        %v2454 = vadd.f32 %v2452, %v2453
        %v2455 = vrot.slane %v2323, 4
        %v2456 = vadd.f32 %v2323, %v2455
        %v2457 = vrot.slane %v2456, 2
        %v2458 = vadd.f32 %v2456, %v2457
        %v2459 = vrot.slane %v2458, 1
        %v2460 = vadd.f32 %v2458, %v2459
        %v2461 = vrot.slane %v2324, 4
        %v2462 = vadd.f32 %v2324, %v2461
        %v2463 = vrot.slane %v2462, 2
        %v2464 = vadd.f32 %v2462, %v2463
        %v2465 = vrot.slane %v2464, 1
        %v2466 = vadd.f32 %v2464, %v2465
        %v2467 = vrot.slane %v2325, 4
        %v2468 = vadd.f32 %v2325, %v2467
        %v2469 = vrot.slane %v2468, 2
        %v2470 = vadd.f32 %v2468, %v2469
        %v2471 = vrot.slane %v2470, 1
        %v2472 = vadd.f32 %v2470, %v2471
        %v2473 = vrot.slane %v2326, 4
        %v2474 = vadd.f32 %v2326, %v2473
        %v2475 = vrot.slane %v2474, 2
        %v2476 = vadd.f32 %v2474, %v2475
        %v2477 = vrot.slane %v2476, 1
        %v2478 = vadd.f32 %v2476, %v2477
        %v2479 = vrot.slane %v2327, 4
        %v2480 = vadd.f32 %v2327, %v2479
        %v2481 = vrot.slane %v2480, 2
        %v2482 = vadd.f32 %v2480, %v2481
        %v2483 = vrot.slane %v2482, 1
        %v2484 = vadd.f32 %v2482, %v2483
        %v2485 = vrot.slane %v2328, 4
        %v2486 = vadd.f32 %v2328, %v2485
        %v2487 = vrot.slane %v2486, 2
        %v2488 = vadd.f32 %v2486, %v2487
        %v2489 = vrot.slane %v2488, 1
        %v2490 = vadd.f32 %v2488, %v2489
        %v2491 = vrot.slane %v2329, 4
        %v2492 = vadd.f32 %v2329, %v2491
        %v2493 = vrot.slane %v2492, 2
        %v2494 = vadd.f32 %v2492, %v2493
        %v2495 = vrot.slane %v2494, 1
        %v2496 = vadd.f32 %v2494, %v2495
        %v2497 = vrot.slane %v2330, 4
        %v2498 = vadd.f32 %v2330, %v2497
        %v2499 = vrot.slane %v2498, 2
        %v2500 = vadd.f32 %v2498, %v2499
        %v2501 = vrot.slane %v2500, 1
        %v2502 = vadd.f32 %v2500, %v2501
        %v2503 = vrot.slane %v2331, 4
        %v2504 = vadd.f32 %v2331, %v2503
        %v2505 = vrot.slane %v2504, 2
        %v2506 = vadd.f32 %v2504, %v2505
        %v2507 = vrot.slane %v2506, 1
        %v2508 = vadd.f32 %v2506, %v2507
        %v2509 = vrot.slane %v2332, 4
        %v2510 = vadd.f32 %v2332, %v2509
        %v2511 = vrot.slane %v2510, 2
        %v2512 = vadd.f32 %v2510, %v2511
        %v2513 = vrot.slane %v2512, 1
        %v2514 = vadd.f32 %v2512, %v2513
        %v2515 = vrot.slane %v2333, 4
        %v2516 = vadd.f32 %v2333, %v2515
        %v2517 = vrot.slane %v2516, 2
        %v2518 = vadd.f32 %v2516, %v2517
        %v2519 = vrot.slane %v2518, 1
        %v2520 = vadd.f32 %v2518, %v2519
        %v2521 = vrot.slane %v2334, 4
        %v2522 = vadd.f32 %v2334, %v2521
        %v2523 = vrot.slane %v2522, 2
        %v2524 = vadd.f32 %v2522, %v2523
        %v2525 = vrot.slane %v2524, 1
        %v2526 = vadd.f32 %v2524, %v2525
        %v2527 = vld [vmem:[#allocation11] sm:$0xff]
        %v2528 = vld [vmem:[#allocation11 + $0x8] sm:$0xff]
        %v2529 = vld [vmem:[#allocation11 + $0x10] sm:$0xff]
        %v2530 = vld [vmem:[#allocation11 + $0x18] sm:$0xff]
        %v2531 = vld [vmem:[#allocation11 + $0x20] sm:$0xff]
        %v2532 = vld [vmem:[#allocation11 + $0x28] sm:$0xff]
        %v2533 = vld [vmem:[#allocation11 + $0x30] sm:$0xff]
        %v2534 = vld [vmem:[#allocation11 + $0x38] sm:$0xff]
        %v2535 = vld [vmem:[#allocation11 + $0x40] sm:$0xff]
        %v2536 = vld [vmem:[#allocation11 + $0x48] sm:$0xff]
        %v2537 = vld [vmem:[#allocation11 + $0x50] sm:$0xff]
        %v2538 = vld [vmem:[#allocation11 + $0x58] sm:$0xff]
        %v2539 = vld [vmem:[#allocation11 + $0x60] sm:$0xff]
        %v2540 = vld [vmem:[#allocation11 + $0x68] sm:$0xff]
        %v2541 = vld [vmem:[#allocation11 + $0x70] sm:$0xff]
        %v2542 = vld [vmem:[#allocation11 + $0x78] sm:$0xff]
        %vm2575 = vcmask 1041409
        %v2576 = vsel %vm2575, %v2346, %v2340
        %vm2577 = vcmask 1042434
        %v2578 = vsel %vm2577, %v2352, %v2576
        %vm2579 = vcmask 1043459
        %v2580 = vsel %vm2579, %v2358, %v2578
        %vm2581 = vcmask 1044484
        %v2582 = vsel %vm2581, %v2364, %v2580
        %vm2583 = vcmask 1045509
        %v2584 = vsel %vm2583, %v2370, %v2582
        %vm2585 = vcmask 1046534
        %v2586 = vsel %vm2585, %v2376, %v2584
        %vm2587 = vcmask 1047559
        %v2588 = vsel %vm2587, %v2382, %v2586
        %v2589 = vsel %vm2575, %v2394, %v2388
        %v2590 = vsel %vm2577, %v2400, %v2589
        %v2591 = vsel %vm2579, %v2406, %v2590
        %v2592 = vsel %vm2581, %v2412, %v2591
        %v2593 = vsel %vm2583, %v2418, %v2592
        %v2594 = vsel %vm2585, %v2424, %v2593
        %v2595 = vsel %vm2587, %v2430, %v2594
        %v2596 = vsel %vm2575, %v2442, %v2436
        %v2597 = vsel %vm2577, %v2448, %v2596
        %v2598 = vsel %vm2579, %v2454, %v2597
        %v2599 = vsel %vm2581, %v2460, %v2598
        %v2600 = vsel %vm2583, %v2466, %v2599
        %v2601 = vsel %vm2585, %v2472, %v2600
        %v2602 = vsel %vm2587, %v2478, %v2601
        %v2603 = vsel %vm2575, %v2490, %v2484
        %v2604 = vsel %vm2577, %v2496, %v2603
        %v2605 = vsel %vm2579, %v2502, %v2604
        %v2606 = vsel %vm2581, %v2508, %v2605
        %v2607 = vsel %vm2583, %v2514, %v2606
        %v2608 = vsel %vm2585, %v2520, %v2607
        %v2609 = vsel %vm2587, %v2526, %v2608
        %2614 = vmatprep.subr.mxu0 0.0
        %2615 = vmatpush1.msra.mxu0 %v2527
        %2616 = vmatprep.subr.mxu0 0.0
        %2617 = vmatpush1.msra.mxu0 %v2528
        %2618 = vmatprep.subr.mxu0 0.0
        %2619 = vmatpush1.msra.mxu0 %v2529
        %2620 = vmatprep.subr.mxu0 0.0
        %2621 = vmatpush1.msra.mxu0 %v2530
        %2622 = vmatprep.subr.mxu0 0.0
        %2623 = vmatpush1.msra.mxu0 %v2531
        %2624 = vmatprep.subr.mxu0 0.0
        %2625 = vmatpush1.msra.mxu0 %v2532
        %2626 = vmatprep.subr.mxu0 0.0
        %2627 = vmatpush1.msra.mxu0 %v2533
        %2628 = vmatprep.subr.mxu0 0.0
        %2629 = vmatpush1.msra.mxu0 %v2534
        %2630 = vmatprep.subr.mxu0 0.0
        %2631 = vmatpush1.msra.mxu0 %v2535
        %2632 = vmatprep.subr.mxu0 0.0
        %2633 = vmatpush1.msra.mxu0 %v2536
        %2634 = vmatprep.subr.mxu0 0.0
        %2635 = vmatpush1.msra.mxu0 %v2537
        %2636 = vmatprep.subr.mxu0 0.0
        %2637 = vmatpush1.msra.mxu0 %v2538
        %2638 = vmatprep.subr.mxu0 0.0
        %2639 = vmatpush1.msra.mxu0 %v2539
        %2640 = vmatprep.subr.mxu0 0.0
        %2641 = vmatpush1.msra.mxu0 %v2540
        %2642 = vmatprep.subr.mxu0 0.0
        %2643 = vmatpush1.msra.mxu0 %v2541
        %2644 = vmatprep.subr.mxu0 0.0
        %2645 = vmatpush1.msra.mxu0 %v2542
        %2646 = vmatprep.subr.mxu0 0.0
        %2647 = vmatpush1.msra.mxu0 0.0
        %2648 = vmatprep.subr.mxu0 0.0
        %2649 = vmatpush1.msra.mxu0 0.0
        %2650 = vmatprep.subr.mxu0 0.0
        %2651 = vmatpush1.msra.mxu0 0.0
        %2652 = vmatprep.subr.mxu0 0.0
        %2653 = vmatpush1.msra.mxu0 0.0
        %2654 = vmatprep.subr.mxu0 0.0
        %2655 = vmatpush1.msra.mxu0 0.0
        %2656 = vmatprep.subr.mxu0 0.0
        %2657 = vmatpush1.msra.mxu0 0.0
        %2658 = vmatprep.subr.mxu0 0.0
        %2659 = vmatpush1.msra.mxu0 0.0
        %2660 = vmatprep.subr.mxu0 0.0
        %2661 = vmatpush1.msra.mxu0 0.0
        %2662 = vmatprep.subr.mxu0 0.0
        %2663 = vmatpush1.msra.mxu0 0.0
        %2664 = vmatprep.subr.mxu0 0.0
        %2665 = vmatpush1.msra.mxu0 0.0
        %2666 = vmatprep.subr.mxu0 0.0
        %2667 = vmatpush1.msra.mxu0 0.0
        %2668 = vmatprep.subr.mxu0 0.0
        %2669 = vmatpush1.msra.mxu0 0.0
        %2670 = vmatprep.subr.mxu0 0.0
        %2671 = vmatpush1.msra.mxu0 0.0
        %2672 = vmatprep.subr.mxu0 0.0
        %2673 = vmatpush1.msra.mxu0 0.0
        %2674 = vmatprep.subr.mxu0 0.0
        %2675 = vmatpush1.msra.mxu0 0.0
        %2676 = vmatprep.subr.mxu0 0.0
        %2677 = vmatpush1.msra.mxu0 0.0
        %2678 = vmatprep.mubr.f32.mxu0 0.0
        %2679 = vmatmul.mubr.f32.gmra.mrb[0].mxu0 %v2588
        %v2680 = vpop.f32.mrb[0].mxu0
        %v2681 = vadd.f32 0.0, %v2680
        %v2682 = vpop.f32.mrb[0].mxu0
        %2683 = vmatprep.mubr.f32.mxu0 0.0
        %2684 = vmatmul.mubr.f32.gmra.mrb[0].mxu0 %v2595
        %v2685 = vpop.f32.mrb[0].mxu0
        %v2686 = vadd.f32 0.0, %v2685
        %v2687 = vpop.f32.mrb[0].mxu0
        %2688 = vmatprep.mubr.f32.mxu0 0.0
        %2689 = vmatmul.mubr.f32.gmra.mrb[0].mxu0 %v2602
        %v2690 = vpop.f32.mrb[0].mxu0
        %v2691 = vadd.f32 0.0, %v2690
        %v2692 = vpop.f32.mrb[0].mxu0
        %2693 = vmatprep.mubr.f32.mxu0 0.0
        %2694 = vmatmul.mubr.f32.gmra.mrb[0].mxu0 %v2609
        %v2695 = vpop.f32.mrb[0].mxu0
        %v2696 = vadd.f32 0.0, %v2695
        %v2697 = vpop.f32.mrb[0].mxu0
        %2698 = vdwg.mxu0
        %v2699 = vadd.f32 %v580, %v2681
        %v2700 = vadd.f32 %v581, %v2686
        %v2701 = vadd.f32 %v582, %v2691
        %v2702 = vadd.f32 %v583, %v2696
        %2703 = vadd.xlane.f32.xlu0 %v2699
        %v2704 = vpop.xlane.xlu0 %2703
        %2705 = vadd.xlane.f32.xlu0 %v2700
        %v2706 = vpop.xlane.xlu0 %2705
        %2707 = vadd.xlane.f32.xlu0 %v2701
        %v2708 = vpop.xlane.xlu0 %2707
        %2709 = vadd.xlane.f32.xlu0 %v2702
        %v2710 = vpop.xlane.xlu0 %2709
        %v2711 = vmul.f32 %v2704, %v599
        %v2712 = vmul.f32 %v2706, %v599
        %v2713 = vmul.f32 %v2708, %v599
        %v2714 = vmul.f32 %v2710, %v599
        %v2715 = vsub.f32 %v2699, %v2711
        %v2716 = vsub.f32 %v2700, %v2712
        %v2717 = vsub.f32 %v2701, %v2713
        %v2718 = vsub.f32 %v2702, %v2714
        %v2719 = vmul.f32 %v2715, %v2715
        %v2720 = vmul.f32 %v2716, %v2716
        %v2721 = vmul.f32 %v2717, %v2717
        %v2722 = vmul.f32 %v2718, %v2718
        %2723 = vadd.xlane.f32.xlu0 %v2719
        %v2724 = vpop.xlane.xlu0 %2723
        %2725 = vadd.xlane.f32.xlu0 %v2720
        %v2726 = vpop.xlane.xlu0 %2725
        %2727 = vadd.xlane.f32.xlu0 %v2721
        %v2728 = vpop.xlane.xlu0 %2727
        %2729 = vadd.xlane.f32.xlu0 %v2722
        %v2730 = vpop.xlane.xlu0 %2729
        %v2731 = vmul.f32 %v2724, %v599
        %v2732 = vmul.f32 %v2726, %v599
        %v2733 = vmul.f32 %v2728, %v599
        %v2734 = vmul.f32 %v2730, %v599
        %v2735 = vadd.f32 %v2731, 1e-05
        %v2736 = vadd.f32 %v2732, 1e-05
        %v2737 = vadd.f32 %v2733, 1e-05
        %v2738 = vadd.f32 %v2734, 1e-05
        %v2739 = vrsqrt.pop %v2735
        %v2740 = vrsqrt.pop %v2736
        %v2741 = vrsqrt.pop %v2737
        %v2742 = vrsqrt.pop %v2738
        %v2743 = vmul.f32 %v2715, %v2739
        %v2744 = vmul.f32 %v2716, %v2740
        %v2745 = vmul.f32 %v2717, %v2741
        %v2746 = vmul.f32 %v2718, %v2742
        %v2748 = vlaneseq
        %v2749 = vshrl.u32 %v2748, 7
        %v2750 = vsub.s32 0, %v2749
        %v2751 = vrot.slane %v587, %v2750
        %v2753 = vmul.f32 %v2743, %v2751
        %v2754 = vmul.f32 %v2744, %v2751
        %v2755 = vmul.f32 %v2745, %v2751
        %v2756 = vmul.f32 %v2746, %v2751
        %v2758 = vlaneseq
        %v2759 = vshrl.u32 %v2758, 7
        %v2760 = vsub.s32 0, %v2759
        %v2761 = vrot.slane %v588, %v2760
        %v2763 = vadd.f32 %v2753, %v2761
        %v2764 = vadd.f32 %v2754, %v2761
        %v2765 = vadd.f32 %v2755, %v2761
        %v2766 = vadd.f32 %v2756, %v2761
        %v2767 = vld [vmem:[#allocation16] sm:$0xff]
        %v2768 = vld [vmem:[#allocation16 + $0x8] sm:$0xff]
        %v2769 = vld [vmem:[#allocation16 + $0x10] sm:$0xff]
        %v2770 = vld [vmem:[#allocation16 + $0x18] sm:$0xff]
        %v2771 = vld [vmem:[#allocation16 + $0x20] sm:$0xff]
        %v2772 = vld [vmem:[#allocation16 + $0x28] sm:$0xff]
        %v2773 = vld [vmem:[#allocation16 + $0x30] sm:$0xff]
        %v2774 = vld [vmem:[#allocation16 + $0x38] sm:$0xff]
        %v2775 = vld [vmem:[#allocation16 + $0x40] sm:$0xff]
        %v2776 = vld [vmem:[#allocation16 + $0x48] sm:$0xff]
        %v2777 = vld [vmem:[#allocation16 + $0x50] sm:$0xff]
        %v2778 = vld [vmem:[#allocation16 + $0x58] sm:$0xff]
        %v2779 = vld [vmem:[#allocation16 + $0x60] sm:$0xff]
        %v2780 = vld [vmem:[#allocation16 + $0x68] sm:$0xff]
        %v2781 = vld [vmem:[#allocation16 + $0x70] sm:$0xff]
        %v2782 = vld [vmem:[#allocation16 + $0x78] sm:$0xff]
        %v2783 = vld [vmem:[#allocation16 + $0x80] sm:$0xff]
        %v2784 = vld [vmem:[#allocation16 + $0x88] sm:$0xff]
        %v2785 = vld [vmem:[#allocation16 + $0x90] sm:$0xff]
        %v2786 = vld [vmem:[#allocation16 + $0x98] sm:$0xff]
        %v2787 = vld [vmem:[#allocation16 + $0xa0] sm:$0xff]
        %v2788 = vld [vmem:[#allocation16 + $0xa8] sm:$0xff]
        %v2789 = vld [vmem:[#allocation16 + $0xb0] sm:$0xff]
        %v2790 = vld [vmem:[#allocation16 + $0xb8] sm:$0xff]
        %v2791 = vld [vmem:[#allocation16 + $0xc0] sm:$0xff]
        %v2792 = vld [vmem:[#allocation16 + $0xc8] sm:$0xff]
        %v2793 = vld [vmem:[#allocation16 + $0xd0] sm:$0xff]
        %v2794 = vld [vmem:[#allocation16 + $0xd8] sm:$0xff]
        %v2795 = vld [vmem:[#allocation16 + $0xe0] sm:$0xff]
        %v2796 = vld [vmem:[#allocation16 + $0xe8] sm:$0xff]
        %v2797 = vld [vmem:[#allocation16 + $0xf0] sm:$0xff]
        %v2798 = vld [vmem:[#allocation16 + $0xf8] sm:$0xff]
        %v2800 = vlaneseq
        %v2801 = vshrl.u32 %v2800, 7
        %v2802 = vsub.s32 0, %v2801
        %v2803 = vrot.slane %v589, %v2802
        %v2804 = vlaneseq
        %v2805 = vshrl.u32 %v2804, 7
        %v2806 = vsub.s32 1, %v2805
        %v2807 = vrot.slane %v589, %v2806
        %2810 = vmatprep.subr.mxu0 %v2768
        %2811 = vmatpush1.msra.mxu0 %v2767
        %2812 = vmatprep.subr.mxu0 %v2770
        %2813 = vmatpush1.msra.mxu0 %v2769
        %2814 = vmatprep.subr.mxu0 %v2772
        %2815 = vmatpush1.msra.mxu0 %v2771
        %2816 = vmatprep.subr.mxu0 %v2774
        %2817 = vmatpush1.msra.mxu0 %v2773
        %2818 = vmatprep.subr.mxu0 %v2776
        %2819 = vmatpush1.msra.mxu0 %v2775
        %2820 = vmatprep.subr.mxu0 %v2778
        %2821 = vmatpush1.msra.mxu0 %v2777
        %2822 = vmatprep.subr.mxu0 %v2780
        %2823 = vmatpush1.msra.mxu0 %v2779
        %2824 = vmatprep.subr.mxu0 %v2782
        %2825 = vmatpush1.msra.mxu0 %v2781
        %2826 = vmatprep.subr.mxu0 %v2784
        %2827 = vmatpush1.msra.mxu0 %v2783
        %2828 = vmatprep.subr.mxu0 %v2786
        %2829 = vmatpush1.msra.mxu0 %v2785
        %2830 = vmatprep.subr.mxu0 %v2788
        %2831 = vmatpush1.msra.mxu0 %v2787
        %2832 = vmatprep.subr.mxu0 %v2790
        %2833 = vmatpush1.msra.mxu0 %v2789
        %2834 = vmatprep.subr.mxu0 %v2792
        %2835 = vmatpush1.msra.mxu0 %v2791
        %2836 = vmatprep.subr.mxu0 %v2794
        %2837 = vmatpush1.msra.mxu0 %v2793
        %2838 = vmatprep.subr.mxu0 %v2796
        %2839 = vmatpush1.msra.mxu0 %v2795
        %2840 = vmatprep.subr.mxu0 %v2798
        %2841 = vmatpush1.msra.mxu0 %v2797
        %2842 = vmatprep.subr.mxu0 0.0
        %2843 = vmatpush1.msra.mxu0 0.0
        %2844 = vmatprep.subr.mxu0 0.0
        %2845 = vmatpush1.msra.mxu0 0.0
        %2846 = vmatprep.subr.mxu0 0.0
        %2847 = vmatpush1.msra.mxu0 0.0
        %2848 = vmatprep.subr.mxu0 0.0
        %2849 = vmatpush1.msra.mxu0 0.0
        %2850 = vmatprep.subr.mxu0 0.0
        %2851 = vmatpush1.msra.mxu0 0.0
        %2852 = vmatprep.subr.mxu0 0.0
        %2853 = vmatpush1.msra.mxu0 0.0
        %2854 = vmatprep.subr.mxu0 0.0
        %2855 = vmatpush1.msra.mxu0 0.0
        %2856 = vmatprep.subr.mxu0 0.0
        %2857 = vmatpush1.msra.mxu0 0.0
        %2858 = vmatprep.subr.mxu0 0.0
        %2859 = vmatpush1.msra.mxu0 0.0
        %2860 = vmatprep.subr.mxu0 0.0
        %2861 = vmatpush1.msra.mxu0 0.0
        %2862 = vmatprep.subr.mxu0 0.0
        %2863 = vmatpush1.msra.mxu0 0.0
        %2864 = vmatprep.subr.mxu0 0.0
        %2865 = vmatpush1.msra.mxu0 0.0
        %2866 = vmatprep.subr.mxu0 0.0
        %2867 = vmatpush1.msra.mxu0 0.0
        %2868 = vmatprep.subr.mxu0 0.0
        %2869 = vmatpush1.msra.mxu0 0.0
        %2870 = vmatprep.subr.mxu0 0.0
        %2871 = vmatpush1.msra.mxu0 0.0
        %2872 = vmatprep.subr.mxu0 0.0
        %2873 = vmatpush1.msra.mxu0 0.0
        %2874 = vmatprep.mubr.f32.mxu0 0.0
        %2875 = vmatmul.mubr.f32.gmra.mrb[0].mxu0 %v2763
        %v2876 = vpop.f32.mrb[0].mxu0
        %v2877 = vadd.f32 %v2803, %v2876
        %v2878 = vpop.f32.mrb[0].mxu0
        %v2879 = vadd.f32 %v2807, %v2878
        %2880 = vmatprep.mubr.f32.mxu0 0.0
        %2881 = vmatmul.mubr.f32.gmra.mrb[0].mxu0 %v2764
        %v2882 = vpop.f32.mrb[0].mxu0
        %v2883 = vadd.f32 %v2803, %v2882
        %v2884 = vpop.f32.mrb[0].mxu0
        %v2885 = vadd.f32 %v2807, %v2884
        %2886 = vmatprep.mubr.f32.mxu0 0.0
        %2887 = vmatmul.mubr.f32.gmra.mrb[0].mxu0 %v2765
        %v2888 = vpop.f32.mrb[0].mxu0
        %v2889 = vadd.f32 %v2803, %v2888
        %v2890 = vpop.f32.mrb[0].mxu0
        %v2891 = vadd.f32 %v2807, %v2890
        %2892 = vmatprep.mubr.f32.mxu0 0.0
        %2893 = vmatmul.mubr.f32.gmra.mrb[0].mxu0 %v2766
        %v2894 = vpop.f32.mrb[0].mxu0
        %v2895 = vadd.f32 %v2803, %v2894
        %v2896 = vpop.f32.mrb[0].mxu0
        %v2897 = vadd.f32 %v2807, %v2896
        %2898 = vdwg.mxu0
        %v2899 = vmax.f32 %v2877, 0.0
        %v2900 = vmax.f32 %v2879, 0.0
        %v2901 = vmax.f32 %v2883, 0.0
        %v2902 = vmax.f32 %v2885, 0.0
        %v2903 = vmax.f32 %v2889, 0.0
        %v2904 = vmax.f32 %v2891, 0.0
        %v2905 = vmax.f32 %v2895, 0.0
        %v2906 = vmax.f32 %v2897, 0.0
        %v2907 = vld [vmem:[#allocation19] sm:$0xff]
        %v2908 = vld [vmem:[#allocation19 + $0x8] sm:$0xff]
        %v2909 = vld [vmem:[#allocation19 + $0x10] sm:$0xff]
        %v2910 = vld [vmem:[#allocation19 + $0x18] sm:$0xff]
        %v2911 = vld [vmem:[#allocation19 + $0x20] sm:$0xff]
        %v2912 = vld [vmem:[#allocation19 + $0x28] sm:$0xff]
        %v2913 = vld [vmem:[#allocation19 + $0x30] sm:$0xff]
        %v2914 = vld [vmem:[#allocation19 + $0x38] sm:$0xff]
        %v2915 = vld [vmem:[#allocation19 + $0x40] sm:$0xff]
        %v2916 = vld [vmem:[#allocation19 + $0x48] sm:$0xff]
        %v2917 = vld [vmem:[#allocation19 + $0x50] sm:$0xff]
        %v2918 = vld [vmem:[#allocation19 + $0x58] sm:$0xff]
        %v2919 = vld [vmem:[#allocation19 + $0x60] sm:$0xff]
        %v2920 = vld [vmem:[#allocation19 + $0x68] sm:$0xff]
        %v2921 = vld [vmem:[#allocation19 + $0x70] sm:$0xff]
        %v2922 = vld [vmem:[#allocation19 + $0x78] sm:$0xff]
        %v2923 = vld [vmem:[#allocation19 + $0x80] sm:$0xff]
        %v2924 = vld [vmem:[#allocation19 + $0x88] sm:$0xff]
        %v2925 = vld [vmem:[#allocation19 + $0x90] sm:$0xff]
        %v2926 = vld [vmem:[#allocation19 + $0x98] sm:$0xff]
        %v2927 = vld [vmem:[#allocation19 + $0xa0] sm:$0xff]
        %v2928 = vld [vmem:[#allocation19 + $0xa8] sm:$0xff]
        %v2929 = vld [vmem:[#allocation19 + $0xb0] sm:$0xff]
        %v2930 = vld [vmem:[#allocation19 + $0xb8] sm:$0xff]
        %v2931 = vld [vmem:[#allocation19 + $0xc0] sm:$0xff]
        %v2932 = vld [vmem:[#allocation19 + $0xc8] sm:$0xff]
        %v2933 = vld [vmem:[#allocation19 + $0xd0] sm:$0xff]
        %v2934 = vld [vmem:[#allocation19 + $0xd8] sm:$0xff]
        %v2935 = vld [vmem:[#allocation19 + $0xe0] sm:$0xff]
        %v2936 = vld [vmem:[#allocation19 + $0xe8] sm:$0xff]
        %v2937 = vld [vmem:[#allocation19 + $0xf0] sm:$0xff]
        %v2938 = vld [vmem:[#allocation19 + $0xf8] sm:$0xff]
        %2939 = vmatprep.subr.mxu0 0.0
        %2940 = vmatpush1.msra.mxu0 %v2907
        %2941 = vmatprep.subr.mxu0 0.0
        %2942 = vmatpush1.msra.mxu0 %v2908
        %2943 = vmatprep.subr.mxu0 0.0
        %2944 = vmatpush1.msra.mxu0 %v2909
        %2945 = vmatprep.subr.mxu0 0.0
        %2946 = vmatpush1.msra.mxu0 %v2910
        %2947 = vmatprep.subr.mxu0 0.0
        %2948 = vmatpush1.msra.mxu0 %v2911
        %2949 = vmatprep.subr.mxu0 0.0
        %2950 = vmatpush1.msra.mxu0 %v2912
        %2951 = vmatprep.subr.mxu0 0.0
        %2952 = vmatpush1.msra.mxu0 %v2913
        %2953 = vmatprep.subr.mxu0 0.0
        %2954 = vmatpush1.msra.mxu0 %v2914
        %2955 = vmatprep.subr.mxu0 0.0
        %2956 = vmatpush1.msra.mxu0 %v2915
        %2957 = vmatprep.subr.mxu0 0.0
        %2958 = vmatpush1.msra.mxu0 %v2916
        %2959 = vmatprep.subr.mxu0 0.0
        %2960 = vmatpush1.msra.mxu0 %v2917
        %2961 = vmatprep.subr.mxu0 0.0
        %2962 = vmatpush1.msra.mxu0 %v2918
        %2963 = vmatprep.subr.mxu0 0.0
        %2964 = vmatpush1.msra.mxu0 %v2919
        %2965 = vmatprep.subr.mxu0 0.0
        %2966 = vmatpush1.msra.mxu0 %v2920
        %2967 = vmatprep.subr.mxu0 0.0
        %2968 = vmatpush1.msra.mxu0 %v2921
        %2969 = vmatprep.subr.mxu0 0.0
        %2970 = vmatpush1.msra.mxu0 %v2922
        %2971 = vmatprep.subr.mxu0 0.0
        %2972 = vmatpush1.msra.mxu0 %v2923
        %2973 = vmatprep.subr.mxu0 0.0
        %2974 = vmatpush1.msra.mxu0 %v2924
        %2975 = vmatprep.subr.mxu0 0.0
        %2976 = vmatpush1.msra.mxu0 %v2925
        %2977 = vmatprep.subr.mxu0 0.0
        %2978 = vmatpush1.msra.mxu0 %v2926
        %2979 = vmatprep.subr.mxu0 0.0
        %2980 = vmatpush1.msra.mxu0 %v2927
        %2981 = vmatprep.subr.mxu0 0.0
        %2982 = vmatpush1.msra.mxu0 %v2928
        %2983 = vmatprep.subr.mxu0 0.0
        %2984 = vmatpush1.msra.mxu0 %v2929
        %2985 = vmatprep.subr.mxu0 0.0
        %2986 = vmatpush1.msra.mxu0 %v2930
        %2987 = vmatprep.subr.mxu0 0.0
        %2988 = vmatpush1.msra.mxu0 %v2931
        %2989 = vmatprep.subr.mxu0 0.0
        %2990 = vmatpush1.msra.mxu0 %v2932
        %2991 = vmatprep.subr.mxu0 0.0
        %2992 = vmatpush1.msra.mxu0 %v2933
        %2993 = vmatprep.subr.mxu0 0.0
        %2994 = vmatpush1.msra.mxu0 %v2934
        %2995 = vmatprep.subr.mxu0 0.0
        %2996 = vmatpush1.msra.mxu0 %v2935
        %2997 = vmatprep.subr.mxu0 0.0
        %2998 = vmatpush1.msra.mxu0 %v2936
        %2999 = vmatprep.subr.mxu0 0.0
        %3000 = vmatpush1.msra.mxu0 %v2937
        %3001 = vmatprep.subr.mxu0 0.0
        %3002 = vmatpush1.msra.mxu0 %v2938
        %3003 = vmatprep.mubr.f32.mxu0 %v2900
        %3004 = vmatmul.mubr.f32.gmra.mrb[0].mxu0 %v2899
        %v3005 = vpop.f32.mrb[0].mxu0
        %v3006 = vadd.f32 0.0, %v3005
        %v3007 = vpop.f32.mrb[0].mxu0
        %3008 = vmatprep.mubr.f32.mxu0 %v2902
        %3009 = vmatmul.mubr.f32.gmra.mrb[0].mxu0 %v2901
        %v3010 = vpop.f32.mrb[0].mxu0
        %v3011 = vadd.f32 0.0, %v3010
        %v3012 = vpop.f32.mrb[0].mxu0
        %3013 = vmatprep.mubr.f32.mxu0 %v2904
        %3014 = vmatmul.mubr.f32.gmra.mrb[0].mxu0 %v2903
        %v3015 = vpop.f32.mrb[0].mxu0
        %v3016 = vadd.f32 0.0, %v3015
        %v3017 = vpop.f32.mrb[0].mxu0
        %3018 = vmatprep.mubr.f32.mxu0 %v2906
        %3019 = vmatmul.mubr.f32.gmra.mrb[0].mxu0 %v2905
        %v3020 = vpop.f32.mrb[0].mxu0
        %v3021 = vadd.f32 0.0, %v3020
        %v3022 = vpop.f32.mrb[0].mxu0
        %3023 = vdwg.mxu0
        %v3024 = vadd.f32 %v2699, %v3006
        %v3025 = vadd.f32 %v2700, %v3011
        %v3026 = vadd.f32 %v2701, %v3016
        %v3027 = vadd.f32 %v2702, %v3021
        %v3029 = vlaneseq
        %v3030 = vshrl.u32 %v3029, 7
        %v3031 = vsub.s32 0, %v3030
        %v3032 = vrot.slane %v590, %v3031
        %v3034 = vadd.f32 %v3024, %v3032
        %v3035 = vadd.f32 %v3025, %v3032
        %v3036 = vadd.f32 %v3026, %v3032
        %v3037 = vadd.f32 %v3027, %v3032
        %3038 = vst [vmem:[%s577] sm:$0xff] %v3034
        %3039 = vst [vmem:[%s577 + $0x8] sm:$0xff] %v3035
        %3040 = vst [vmem:[%s577 + $0x10] sm:$0xff] %v3036
        %3041 = vst [vmem:[%s577 + $0x18] sm:$0xff] %v3037
        %s3042 = sand.u32 %s300, 1
        %s3043 = scalar_lea.sflag [#allocation4], %s3042
        %s3044 = sand.u32 %s300, 1
        %s3045 = smul.addr %s3044, 32
        %s3046 = scalar_lea.vmem [#allocation22], %s3045
        // Predicated region
        $region117: #{tpu_custom_call.1} parent=67 // pred_check
          %p3047 = pneg %p310
        $region118: #{tpu_custom_call.1} parent=67 // pred_check_branch
          %3049 = sbr.rel (%p3047) target = $region120
        $region119: #{tpu_custom_call.1} parent=67 // pred_region
          %s3050 = smul.u32 4, %s35
          %s3052 = ssub.s32 512, 512
          %3053 = vsyncadd %s3043, %s3052
          %s3054 = smul.addr %s3050, 128
          %s3055 = scalar_lea.hbm %s12, %s3054
          %s3056 = sshll.u32 %s3046, 4
          %s3057 = int_to_ptr.vmem [resolvable:$true] %s3056
          %3062 = dma.vmem_to_hbm [thread:$0]  %s3057, 512, %s3055, %s3043, 128, 128, 8
        $region120: #{tpu_custom_call.1} parent=67 // pred_fallthru
          _
      $region68: #{tpu_custom_call.1} parent=5 // pred_fallthru
        _
      %p3063 = scmp.le.s32.totalorder 2, %s30
      // Predicated region
      $region121: #{tpu_custom_call.1} parent=5 // pred_check
        %p3064 = pneg %p3063
      $region122: #{tpu_custom_call.1} parent=5 // pred_check_branch
        %3066 = sbr.rel (%p3064) target = $region124
      $region123: #{tpu_custom_call.1} parent=5 // pred_region
        %s3067 = ssub.s32 %s30, 2
        // Predicated region
        $region125: #{tpu_custom_call.1} parent=123 // pred_check
          %p3068 = pneg %p316
        $region126: #{tpu_custom_call.1} parent=123 // pred_check_branch
          %3070 = sbr.rel (%p3068) target = $region128
        $region127: #{tpu_custom_call.1} parent=123 // pred_region
          %s3071 = sand.u32 %s301, 1
          %s3072 = scalar_lea.sflag [#allocation4], %s3071
          %s3073 = sand.u32 %s301, 1
          %s3074 = smul.addr %s3073, 32
          %s3075 = scalar_lea.vmem [#allocation22], %s3074
          %3076 = dma.done %s3072, 512
        $region128: #{tpu_custom_call.1} parent=123 // pred_fallthru
          _
      $region124: #{tpu_custom_call.1} parent=5 // pred_fallthru
        _
    $region6: #{tpu_custom_call.1} parent=1 // loop_footer
      %s34 = sadd.s32 1, %s30
    $region7: #{tpu_custom_call.1} parent=1 // loop_footer_branch
      %29 = sbr.rel target = $region3
    $region8: #{tpu_custom_call.1} parent=1 // loop_exit
      _
    %3077 = vsyncpa [#allocation3], 1
    %s3078 = scalar_lea.sflag [#allocation3], 1
    %3079 = vsyncpa %s3078, 1
    %3080 = vsyncpa [#allocation6], 1
    %3081 = vsyncpa [#allocation9], 1
    %3082 = vsyncpa [#allocation12], 1
    %3083 = vsyncpa [#allocation15], 1
    %3084 = vsyncpa [#allocation18], 1
    %3085 = vsyncpa [#allocation21], 1
    %3086 = vsyncpa [#allocation4], 1
    %s3087 = scalar_lea.sflag [#allocation4], 1
    %3088 = vsyncpa %s3087, 1

</llo_original>
